<compile_context>
chip_gen: v6e
topology: v6e:2x2x1
jax: 0.10.0
libtpu: 0.0.40
codegen_flags: <defaults>
</compile_context>

<pallas_src>
import jax
import jax.numpy as jnp
from jax.experimental import pallas as pl
from jax.experimental.pallas import tpu as pltpu


def _cnmp_kernel(ctx_ref, qry_ref, pool_ref, exp_ref,
                 w1_ref, b1_ref, w2_ref, b2_ref,
                 w3r_ref, w3q_ref, b3_ref,
                 w4_ref, b4_ref,
                 out_ref):
    f32 = jnp.float32
    hi = jax.lax.Precision.HIGHEST

    ctx = ctx_ref[...]                    # (Bt*Nc, d_x + d_y) — Bt problems row-stacked
    qry = qry_ref[...]                    # (Bt*Nq, d_x)

    # ---- encoder: Linear -> ReLU -> Linear -> ReLU (big-M MXU matmuls) ----
    h = jnp.dot(ctx, w1_ref[...], preferred_element_type=f32) + b1_ref[...]
    h = jnp.maximum(h, 0.0)
    h = jnp.dot(h, w2_ref[...], preferred_element_type=f32) + b2_ref[...]
    h = jnp.maximum(h, 0.0)               # (Bt*Nc, H)

    # ---- per-problem mean over context points as a block-diagonal (1/Nc) matmul ----
    r = jnp.dot(pool_ref[...], h, preferred_element_type=f32, precision=hi)   # (Bt, H)

    # ---- decoder layer 1 on concat([r.expand(Nq), query], dim=1) ----
    # concat @ W3 == expand(r @ W3[:H]) + query @ W3[H:]; the row expansion is a
    # 0/1 matmul (exact at HIGHEST) on the otherwise idle MXU.
    rr = jnp.dot(r, w3r_ref[...], preferred_element_type=f32)                  # (Bt, H)
    rr = jnp.dot(exp_ref[...], rr, preferred_element_type=f32, precision=hi)   # (Bt*Nq, H)
    d = rr + jnp.dot(qry, w3q_ref[...], preferred_element_type=f32) + b3_ref[...]
    d = jnp.maximum(d, 0.0)               # (Bt*Nq, H)

    # ---- fused decoder head -> (Bt*Nq, 2*d_y); softplus only on the log_std half ----
    out = jnp.dot(d, w4_ref[...], preferred_element_type=f32) + b4_ref[...]
    sp = jnp.maximum(out, 0.0) + jnp.log1p(jnp.exp(-jnp.abs(out))) + 1e-6
    col = jax.lax.broadcasted_iota(jnp.int32, out.shape, 1)
    d_y = out.shape[1] // 2
    out_ref[...] = jnp.where(col < d_y, out, sp)


def prepare_params(params):
    """One-time parameter preprocessing (hoisted out of the per-call wrapper):
    split decoder layer-1 weights for the concat, reshape biases to (1, F)."""
    (w1, b1, w2, b2, w3, b3, w4, b4) = params
    H = w1.shape[1]
    w3r, w3q = w3[:H, :], w3[H:, :]
    return (w1, b1.reshape(1, -1), w2, b2.reshape(1, -1),
            w3r, w3q, b3.reshape(1, -1), w4, b4.reshape(1, -1))


def _choose_chunk(B):
    """Problems per grid step.  Multiples of 8 keep the flattened row-blocks
    (Bt*Nc, Bt*Nq) 8-aligned for any Nc/Nq; small batches use one full block."""
    if B <= 8:
        return B
    return 16 if B >= 32 else 8


def cnmp_forward_batched(context, query, prepped):
    """context: (B, Nc, d_x+d_y) f32, query: (B, Nq, d_x) f32
       -> (mean, std), each (B, Nq, d_y) f32."""
    (w1, b1_, w2, b2_, w3r, w3q, b3_, w4, b4_) = prepped
    B, Nc, d_in = context.shape
    _, Nq, d_x = query.shape
    H = w1.shape[1]
    two_dy = w4.shape[1]
    d_y = two_dy // 2

    Bt = _choose_chunk(B)
    n_chunks = -(-B // Bt)
    B_pad = n_chunks * Bt

    if B_pad != B:
        pad = B_pad - B
        context = jnp.concatenate(
            [context, jnp.zeros((pad, Nc, d_in), context.dtype)], axis=0)
        query = jnp.concatenate(
            [query, jnp.zeros((pad, Nq, d_x), query.dtype)], axis=0)

    # Flatten problems into rows in the wrapper (free HBM reshape) so the kernel
    # never reshapes and every matmul sees Bt problems worth of rows.
    ctx_flat = context.reshape(B_pad * Nc, d_in)
    qry_flat = query.reshape(B_pad * Nq, d_x)

    # Resident pooling / expansion matrices (built once per call, tiny).
    pool = jnp.repeat(jnp.eye(Bt, dtype=jnp.float32), Nc, axis=1) / Nc   # (Bt, Bt*Nc)
    expand = jnp.repeat(jnp.eye(Bt, dtype=jnp.float32), Nq, axis=0)      # (Bt*Nq, Bt)

    resident = (pool, expand, w1, b1_, w2, b2_, w3r, w3q, b3_, w4, b4_)

    def resident_spec(x):
        # Constant index_map -> same block every grid step -> stays resident in VMEM.
        return pl.BlockSpec(x.shape, lambda i, _nd=x.ndim: (0,) * _nd)

    in_specs = [
        pl.BlockSpec((Bt * Nc, d_in), lambda i: (i, 0)),   # chunk of context rows
        pl.BlockSpec((Bt * Nq, d_x), lambda i: (i, 0)),    # chunk of query rows
    ] + [resident_spec(x) for x in resident]

    out_shape = jax.ShapeDtypeStruct((B_pad * Nq, two_dy), jnp.float32)
    out_spec = pl.BlockSpec((Bt * Nq, two_dy), lambda i: (i, 0))

    flops_per_chunk = 2 * (Bt * Nc * d_in * H + Bt * Nc * H * H
                           + Bt * (Bt * Nc) * H + Bt * H * H
                           + (Bt * Nq) * Bt * H + Bt * Nq * d_x * H
                           + Bt * Nq * H * two_dy)
    weight_bytes = sum(int(x.size) * 4 for x in resident)
    cost = pl.CostEstimate(
        flops=int(n_chunks * flops_per_chunk),
        transcendentals=int(2 * B_pad * Nq * two_dy),
        bytes_accessed=int(4 * (ctx_flat.size + qry_flat.size + B_pad * Nq * two_dy)
                           + weight_bytes),
    )

    out = pl.pallas_call(
        _cnmp_kernel,
        out_shape=out_shape,
        grid=(n_chunks,),
        in_specs=in_specs,
        out_specs=out_spec,
        compiler_params=pltpu.CompilerParams(
            dimension_semantics=("parallel",)),
        cost_estimate=cost,
    )(ctx_flat, qry_flat, *resident)

    out = out.reshape(B_pad, Nq, two_dy)[:B]
    return out[..., :d_y], out[..., d_y:]


def cnmp_forward(context, query, prepped):
    """Unbatched forward matching the PyTorch module signature.
       context: (Nc, d_x+d_y), query: (Nq, d_x) -> (mean, std), each (Nq, d_y)."""
    mean, std = cnmp_forward_batched(context[None], query[None], prepped)
    return mean[0], std[0]


def init_params(key, d_x, d_y, hidden_size):
    """Deterministic synthetic init (PyTorch-Linear shapes, stored as (in, out))."""
    ks = jax.random.split(key, 8)

    def lin(kw, kb, fan_in, fan_out):
        bound = 1.0 / jnp.sqrt(fan_in)
        w = jax.random.uniform(kw, (fan_in, fan_out), jnp.float32, -bound, bound)
        b = jax.random.uniform(kb, (fan_out,), jnp.float32, -bound, bound)
        return w, b

    w1, b1 = lin(ks[0], ks[1], d_x + d_y, hidden_size)
    w2, b2 = lin(ks[2], ks[3], hidden_size, hidden_size)
    w3, b3 = lin(ks[4], ks[5], hidden_size + d_x, hidden_size)
    w4, b4 = lin(ks[6], ks[7], hidden_size, 2 * d_y)
    return (w1, b1, w2, b2, w3, b3, w4, b4)


def cnmp_reference(context, query, params):
    """Pure-JAX reference mirroring the PyTorch forward exactly (single problem)."""
    (w1, b1, w2, b2, w3, b3, w4, b4) = params
    h = jnp.maximum(context @ w1 + b1, 0.0)
    h = jnp.maximum(h @ w2 + b2, 0.0)
    r = jnp.mean(h, axis=0, keepdims=True)
    r = jnp.broadcast_to(r, (query.shape[0], r.shape[1]))
    cat = jnp.concatenate([r, query], axis=1)
    d = jnp.maximum(cat @ w3 + b3, 0.0)
    out = d @ w4 + b4
    d_y = w4.shape[1] // 2
    mean, log_std = out[:, :d_y], out[:, d_y:]
    std = jax.nn.softplus(log_std) + 1e-6
    return mean, std


if __name__ == "__main__":
    d_x, d_y, hidden = 2, 2, 128
    n_context, n_query, batch = 10, 8, 32

    key = jax.random.PRNGKey(0)
    k_ctx, k_qry, k_par = jax.random.split(key, 3)

    context_b = jax.random.normal(k_ctx, (batch, n_context, d_x + d_y), jnp.float32)
    query_b = jax.random.normal(k_qry, (batch, n_query, d_x), jnp.float32)
    params = init_params(k_par, d_x, d_y, hidden)
    prepped = prepare_params(params)

    # Batched kernel: Bt=16 problems/step, grid=(2,) "parallel" (both TCs on v7x),
    # encoder matmuls see M = 160 rows, decoder matmuls M = 128 rows.
    mean_b, std_b = cnmp_forward_batched(context_b, query_b, prepped)
    jax.block_until_ready((mean_b, std_b))
    assert mean_b.shape == (batch, n_query, d_y) and std_b.shape == (batch, n_query, d_y)

    mean_ref_b, std_ref_b = jax.vmap(
        lambda c, q: cnmp_reference(c, q, params))(context_b, query_b)
    assert jnp.allclose(mean_b, mean_ref_b, atol=1e-5, rtol=1e-5)
    assert jnp.allclose(std_b, std_ref_b, atol=1e-5, rtol=1e-5)

    # Non-multiple batch exercises the padding path (B=12 -> Bt=8, grid=(2,)).
    mean_o, std_o = cnmp_forward_batched(context_b[:12], query_b[:12], prepped)
    jax.block_until_ready((mean_o, std_o))
    assert jnp.allclose(mean_o, mean_ref_b[:12], atol=1e-5, rtol=1e-5)
    assert jnp.allclose(std_o, std_ref_b[:12], atol=1e-5, rtol=1e-5)

    # Unbatched path matching the original module signature.
    mean1, std1 = cnmp_forward(context_b[0], query_b[0], prepped)
    jax.block_until_ready((mean1, std1))
    mean1_ref, std1_ref = cnmp_reference(context_b[0], query_b[0], params)
    assert jnp.allclose(mean1, mean1_ref, atol=1e-5, rtol=1e-5)
    assert jnp.allclose(std1, std1_ref, atol=1e-5, rtol=1e-5)

    print("KERNEL_OK")
</pallas_src>

<mosaic_0001>
module attributes {stable_mosaic.version = 11 : i64} {
  func.func @_cnmp_kernel(%arg0: i32, %arg1: memref<160x4xf32, #tpu.memory_space<vmem>>, %arg2: memref<128x2xf32, #tpu.memory_space<vmem>>, %arg3: memref<16x160xf32, #tpu.memory_space<vmem>>, %arg4: memref<128x16xf32, #tpu.memory_space<vmem>>, %arg5: memref<4x128xf32, #tpu.memory_space<vmem>>, %arg6: memref<1x128xf32, #tpu.memory_space<vmem>>, %arg7: memref<128x128xf32, #tpu.memory_space<vmem>>, %arg8: memref<1x128xf32, #tpu.memory_space<vmem>>, %arg9: memref<128x128xf32, #tpu.memory_space<vmem>>, %arg10: memref<2x128xf32, #tpu.memory_space<vmem>>, %arg11: memref<1x128xf32, #tpu.memory_space<vmem>>, %arg12: memref<128x4xf32, #tpu.memory_space<vmem>>, %arg13: memref<1x4xf32, #tpu.memory_space<vmem>>, %arg14: memref<128x4xf32, #tpu.memory_space<vmem>>) attributes {dimension_semantics = [#tpu.dimension_semantics<parallel>], iteration_bounds = array<i64: 2>, scalar_prefetch = 0 : i64, scratch_operands = 0 : i64, tpu.core_type = #tpu.core_type<tc>, window_params = [{transform_indices = @transform_0, window_bounds = array<i64: 160, 4>}, {transform_indices = @transform_1, window_bounds = array<i64: 128, 2>}, {pipeline_mode = #tpu.pipeline_mode<synchronous>, transform_indices = @transform_2, window_bounds = array<i64: 16, 160>}, {pipeline_mode = #tpu.pipeline_mode<synchronous>, transform_indices = @transform_3, window_bounds = array<i64: 128, 16>}, {pipeline_mode = #tpu.pipeline_mode<synchronous>, transform_indices = @transform_4, window_bounds = array<i64: 4, 128>}, {pipeline_mode = #tpu.pipeline_mode<synchronous>, transform_indices = @transform_5, window_bounds = array<i64: 1, 128>}, {pipeline_mode = #tpu.pipeline_mode<synchronous>, transform_indices = @transform_6, window_bounds = array<i64: 128, 128>}, {pipeline_mode = #tpu.pipeline_mode<synchronous>, transform_indices = @transform_7, window_bounds = array<i64: 1, 128>}, {pipeline_mode = #tpu.pipeline_mode<synchronous>, transform_indices = @transform_8, window_bounds = array<i64: 128, 128>}, {pipeline_mode = #tpu.pipeline_mode<synchronous>, transform_indices = @transform_9, window_bounds = array<i64: 2, 128>}, {pipeline_mode = #tpu.pipeline_mode<synchronous>, transform_indices = @transform_10, window_bounds = array<i64: 1, 128>}, {pipeline_mode = #tpu.pipeline_mode<synchronous>, transform_indices = @transform_11, window_bounds = array<i64: 128, 4>}, {pipeline_mode = #tpu.pipeline_mode<synchronous>, transform_indices = @transform_12, window_bounds = array<i64: 1, 4>}, {transform_indices = @transform_13, window_bounds = array<i64: 128, 4>}]} {
    %c0 = arith.constant 0 : index
    %c0_0 = arith.constant 0 : index
    %0 = vector.load %arg1[%c0, %c0_0] : memref<160x4xf32, #tpu.memory_space<vmem>>, vector<160x4xf32>
    %c0_1 = arith.constant 0 : index
    %c0_2 = arith.constant 0 : index
    %1 = vector.load %arg2[%c0_1, %c0_2] : memref<128x2xf32, #tpu.memory_space<vmem>>, vector<128x2xf32>
    %c0_3 = arith.constant 0 : index
    %c0_4 = arith.constant 0 : index
    %2 = vector.load %arg5[%c0_3, %c0_4] : memref<4x128xf32, #tpu.memory_space<vmem>>, vector<4x128xf32>
    %cst = arith.constant dense<0.000000e+00> : vector<160x128xf32>
    %3 = tpu.matmul %0, %2, %cst {dimension_numbers = #tpu.dot_dimension_numbers<[1], [0], [0], [1], [0, 0, 1, 1], [], []>} : vector<160x4xf32>, vector<4x128xf32>, vector<160x128xf32> -> vector<160x128xf32>
    %c0_5 = arith.constant 0 : index
    %c0_6 = arith.constant 0 : index
    %4 = vector.load %arg6[%c0_5, %c0_6] : memref<1x128xf32, #tpu.memory_space<vmem>>, vector<1x128xf32>
    %5 = vector.broadcast %4 : vector<1x128xf32> to vector<160x128xf32>
    %6 = arith.addf %3, %5 : vector<160x128xf32>
    %cst_7 = arith.constant 0.000000e+00 : f32
    %7 = vector.broadcast %cst_7 : f32 to vector<160x128xf32>
    %8 = arith.maximumf %6, %7 : vector<160x128xf32>
    %c0_8 = arith.constant 0 : index
    %c0_9 = arith.constant 0 : index
    %9 = vector.load %arg7[%c0_8, %c0_9] : memref<128x128xf32, #tpu.memory_space<vmem>>, vector<128x128xf32>
    %cst_10 = arith.constant dense<0.000000e+00> : vector<160x128xf32>
    %10 = tpu.matmul %8, %9, %cst_10 {dimension_numbers = #tpu.dot_dimension_numbers<[1], [0], [0], [1], [0, 0, 1, 1], [], []>} : vector<160x128xf32>, vector<128x128xf32>, vector<160x128xf32> -> vector<160x128xf32>
    %c0_11 = arith.constant 0 : index
    %c0_12 = arith.constant 0 : index
    %11 = vector.load %arg8[%c0_11, %c0_12] : memref<1x128xf32, #tpu.memory_space<vmem>>, vector<1x128xf32>
    %12 = vector.broadcast %11 : vector<1x128xf32> to vector<160x128xf32>
    %13 = arith.addf %10, %12 : vector<160x128xf32>
    %cst_13 = arith.constant 0.000000e+00 : f32
    %14 = vector.broadcast %cst_13 : f32 to vector<160x128xf32>
    %15 = arith.maximumf %13, %14 : vector<160x128xf32>
    %c0_14 = arith.constant 0 : index
    %c0_15 = arith.constant 0 : index
    %16 = vector.load %arg3[%c0_14, %c0_15] : memref<16x160xf32, #tpu.memory_space<vmem>>, vector<16x160xf32>
    %cst_16 = arith.constant dense<0.000000e+00> : vector<16x128xf32>
    %17 = tpu.matmul %16, %15, %cst_16 {dimension_numbers = #tpu.dot_dimension_numbers<[1], [0], [0], [1], [0, 0, 1, 1], [], []>, precision = #tpu.contract_precision<fp32>} : vector<16x160xf32>, vector<160x128xf32>, vector<16x128xf32> -> vector<16x128xf32>
    %c0_17 = arith.constant 0 : index
    %c0_18 = arith.constant 0 : index
    %18 = vector.load %arg9[%c0_17, %c0_18] : memref<128x128xf32, #tpu.memory_space<vmem>>, vector<128x128xf32>
    %cst_19 = arith.constant dense<0.000000e+00> : vector<16x128xf32>
    %19 = tpu.matmul %17, %18, %cst_19 {dimension_numbers = #tpu.dot_dimension_numbers<[1], [0], [0], [1], [0, 0, 1, 1], [], []>} : vector<16x128xf32>, vector<128x128xf32>, vector<16x128xf32> -> vector<16x128xf32>
    %c0_20 = arith.constant 0 : index
    %c0_21 = arith.constant 0 : index
    %20 = vector.load %arg4[%c0_20, %c0_21] : memref<128x16xf32, #tpu.memory_space<vmem>>, vector<128x16xf32>
    %cst_22 = arith.constant dense<0.000000e+00> : vector<128x128xf32>
    %21 = tpu.matmul %20, %19, %cst_22 {dimension_numbers = #tpu.dot_dimension_numbers<[1], [0], [0], [1], [0, 0, 1, 1], [], []>, precision = #tpu.contract_precision<fp32>} : vector<128x16xf32>, vector<16x128xf32>, vector<128x128xf32> -> vector<128x128xf32>
    %c0_23 = arith.constant 0 : index
    %c0_24 = arith.constant 0 : index
    %22 = vector.load %arg10[%c0_23, %c0_24] : memref<2x128xf32, #tpu.memory_space<vmem>>, vector<2x128xf32>
    %cst_25 = arith.constant dense<0.000000e+00> : vector<128x128xf32>
    %23 = tpu.matmul %1, %22, %cst_25 {dimension_numbers = #tpu.dot_dimension_numbers<[1], [0], [0], [1], [0, 0, 1, 1], [], []>} : vector<128x2xf32>, vector<2x128xf32>, vector<128x128xf32> -> vector<128x128xf32>
    %24 = arith.addf %21, %23 : vector<128x128xf32>
    %c0_26 = arith.constant 0 : index
    %c0_27 = arith.constant 0 : index
    %25 = vector.load %arg11[%c0_26, %c0_27] : memref<1x128xf32, #tpu.memory_space<vmem>>, vector<1x128xf32>
    %26 = vector.broadcast %25 : vector<1x128xf32> to vector<128x128xf32>
    %27 = arith.addf %24, %26 : vector<128x128xf32>
    %cst_28 = arith.constant 0.000000e+00 : f32
    %28 = vector.broadcast %cst_28 : f32 to vector<128x128xf32>
    %29 = arith.maximumf %27, %28 : vector<128x128xf32>
    %c0_29 = arith.constant 0 : index
    %c0_30 = arith.constant 0 : index
    %30 = vector.load %arg12[%c0_29, %c0_30] : memref<128x4xf32, #tpu.memory_space<vmem>>, vector<128x4xf32>
    %cst_31 = arith.constant dense<0.000000e+00> : vector<128x4xf32>
    %31 = tpu.matmul %29, %30, %cst_31 {dimension_numbers = #tpu.dot_dimension_numbers<[1], [0], [0], [1], [0, 0, 1, 1], [], []>} : vector<128x128xf32>, vector<128x4xf32>, vector<128x4xf32> -> vector<128x4xf32>
    %c0_32 = arith.constant 0 : index
    %c0_33 = arith.constant 0 : index
    %32 = vector.load %arg13[%c0_32, %c0_33] : memref<1x4xf32, #tpu.memory_space<vmem>>, vector<1x4xf32>
    %33 = vector.broadcast %32 : vector<1x4xf32> to vector<128x4xf32>
    %34 = arith.addf %31, %33 : vector<128x4xf32>
    %cst_34 = arith.constant 0.000000e+00 : f32
    %35 = vector.broadcast %cst_34 : f32 to vector<128x4xf32>
    %36 = arith.maximumf %34, %35 : vector<128x4xf32>
    %37 = math.absf %34 : vector<128x4xf32>
    %cst_35 = arith.constant 0.000000e+00 : f32
    %38 = vector.broadcast %cst_35 : f32 to vector<128x4xf32>
    %39 = arith.subf %38, %37 : vector<128x4xf32>
    %40 = math.exp %39 : vector<128x4xf32>
    %41 = math.log1p %40 : vector<128x4xf32>
    %42 = arith.addf %36, %41 : vector<128x4xf32>
    %cst_36 = arith.constant 9.99999997E-7 : f32
    %43 = vector.broadcast %cst_36 : f32 to vector<128x4xf32>
    %44 = arith.addf %42, %43 : vector<128x4xf32>
    %45 = tpu.iota {dimensions = array<i32: 1>} : vector<128x4xi32>
    %c2_i32 = arith.constant 2 : i32
    %46 = vector.broadcast %c2_i32 : i32 to vector<128x4xi32>
    %47 = arith.cmpi slt, %45, %46 : vector<128x4xi32>
    %48 = arith.select %47, %34, %44 : vector<128x4xi1>, vector<128x4xf32>
    %c0_37 = arith.constant 0 : index
    %c0_38 = arith.constant 0 : index
    %49 = vector.load %arg14[%c0_37, %c0_38] : memref<128x4xf32, #tpu.memory_space<vmem>>, vector<128x4xf32>
    tpu.vector_store %arg14[%c0_37, %c0_38], %48 {strides = array<i32>} : memref<128x4xf32, #tpu.memory_space<vmem>>, vector<128x4xf32>,
    return
  }
  func.func @transform_0(%arg0: i32) -> (i32, i32) {
    %c0_i32 = arith.constant 0 : i32
    %c0_i32_0 = arith.constant 0 : i32
    return %arg0, %c0_i32 : i32, i32
  }
  func.func @transform_1(%arg0: i32) -> (i32, i32) {
    %c0_i32 = arith.constant 0 : i32
    %c0_i32_0 = arith.constant 0 : i32
    return %arg0, %c0_i32 : i32, i32
  }
  func.func @transform_2(%arg0: i32) -> (i32, i32) {
    %c0_i32 = arith.constant 0 : i32
    %c0_i32_0 = arith.constant 0 : i32
    %c0_i32_1 = arith.constant 0 : i32
    return %c0_i32, %c0_i32_0 : i32, i32
  }
  func.func @transform_3(%arg0: i32) -> (i32, i32) {
    %c0_i32 = arith.constant 0 : i32
    %c0_i32_0 = arith.constant 0 : i32
    %c0_i32_1 = arith.constant 0 : i32
    return %c0_i32, %c0_i32_0 : i32, i32
  }
  func.func @transform_4(%arg0: i32) -> (i32, i32) {
    %c0_i32 = arith.constant 0 : i32
    %c0_i32_0 = arith.constant 0 : i32
    %c0_i32_1 = arith.constant 0 : i32
    return %c0_i32, %c0_i32_0 : i32, i32
  }
  func.func @transform_5(%arg0: i32) -> (i32, i32) {
    %c0_i32 = arith.constant 0 : i32
    %c0_i32_0 = arith.constant 0 : i32
    %c0_i32_1 = arith.constant 0 : i32
    return %c0_i32, %c0_i32_0 : i32, i32
  }
  func.func @transform_6(%arg0: i32) -> (i32, i32) {
    %c0_i32 = arith.constant 0 : i32
    %c0_i32_0 = arith.constant 0 : i32
    %c0_i32_1 = arith.constant 0 : i32
    return %c0_i32, %c0_i32_0 : i32, i32
  }
  func.func @transform_7(%arg0: i32) -> (i32, i32) {
    %c0_i32 = arith.constant 0 : i32
    %c0_i32_0 = arith.constant 0 : i32
    %c0_i32_1 = arith.constant 0 : i32
    return %c0_i32, %c0_i32_0 : i32, i32
  }
  func.func @transform_8(%arg0: i32) -> (i32, i32) {
    %c0_i32 = arith.constant 0 : i32
    %c0_i32_0 = arith.constant 0 : i32
    %c0_i32_1 = arith.constant 0 : i32
    return %c0_i32, %c0_i32_0 : i32, i32
  }
  func.func @transform_9(%arg0: i32) -> (i32, i32) {
    %c0_i32 = arith.constant 0 : i32
    %c0_i32_0 = arith.constant 0 : i32
    %c0_i32_1 = arith.constant 0 : i32
    return %c0_i32, %c0_i32_0 : i32, i32
  }
  func.func @transform_10(%arg0: i32) -> (i32, i32) {
    %c0_i32 = arith.constant 0 : i32
    %c0_i32_0 = arith.constant 0 : i32
    %c0_i32_1 = arith.constant 0 : i32
    return %c0_i32, %c0_i32_0 : i32, i32
  }
  func.func @transform_11(%arg0: i32) -> (i32, i32) {
    %c0_i32 = arith.constant 0 : i32
    %c0_i32_0 = arith.constant 0 : i32
    %c0_i32_1 = arith.constant 0 : i32
    return %c0_i32, %c0_i32_0 : i32, i32
  }
  func.func @transform_12(%arg0: i32) -> (i32, i32) {
    %c0_i32 = arith.constant 0 : i32
    %c0_i32_0 = arith.constant 0 : i32
    %c0_i32_1 = arith.constant 0 : i32
    return %c0_i32, %c0_i32_0 : i32, i32
  }
  func.func @transform_13(%arg0: i32) -> (i32, i32) {
    %c0_i32 = arith.constant 0 : i32
    %c0_i32_0 = arith.constant 0 : i32
    return %arg0, %c0_i32 : i32, i32
  }
}

</mosaic_0001>

<llo_original>
// kernel: tpu_custom_call.1
$region0: #{tpu_custom_call.1}
  #allocation0 [shape = 'u32[]', space=smem, size = 0x4, offset = 0x4, fixed_abs, tag = 'smem constant byte address 0x4 - core index']
  #allocation1 [shape = 'u32[144,128]{1,0:T(1,128)}', space=vmem, size = 0x12000, scoped, tag = 'internal scratch']
  %s0 = inlined_call_operand.vmem [shape: f32[320,4], index: 0, kind: input, shape index: {}]
  %s1 = inlined_call_operand.vmem [shape: f32[256,2], index: 1, kind: input, shape index: {}]
  %s2 = inlined_call_operand.vmem [shape: f32[16,160], index: 2, kind: input, shape index: {}]
  %s3 = inlined_call_operand.vmem [shape: f32[128,16], index: 3, kind: input, shape index: {}]
  %s4 = inlined_call_operand.vmem [shape: f32[4,128], index: 4, kind: input, shape index: {}]
  %s5 = inlined_call_operand.vmem [shape: f32[1,128], index: 5, kind: input, shape index: {}]
  %s6 = inlined_call_operand.vmem [shape: f32[128,128], index: 6, kind: input, shape index: {}]
  %s7 = inlined_call_operand.vmem [shape: f32[1,128], index: 7, kind: input, shape index: {}]
  %s8 = inlined_call_operand.vmem [shape: f32[128,128], index: 8, kind: input, shape index: {}]
  %s9 = inlined_call_operand.vmem [shape: f32[2,128], index: 9, kind: input, shape index: {}]
  %s10 = inlined_call_operand.vmem [shape: f32[1,128], index: 10, kind: input, shape index: {}]
  %s11 = inlined_call_operand.vmem [shape: f32[128,4], index: 11, kind: input, shape index: {}]
  %s12 = inlined_call_operand.vmem [shape: f32[1,4], index: 12, kind: input, shape index: {}]
  %s13 = inlined_call_operand.vmem [shape: f32[256,4], index: 13, kind: output, shape index: {}]
  %s14 = sld [smem:[#allocation0]]
  $region85: #{tpu_custom_call.1} parent=0
    _
  %s16 = ssub.s32 1, %s14
  %s17 = scalar_select 0, %s16, %s14
  loop: start=0, step=1, limit=4
  $region2: #{tpu_custom_call.1} parent=0 // loop_pre_header
    _
  $region3: #{tpu_custom_call.1} parent=0 // loop_header
    %s19 = sphi 0, %s23
    %p20 = scmp.ge.s32.totalorder %s19, 4
    %s29 = sphi 0, %s31
    %s32 = sphi 0, %s29
    %s33 = sphi 0, %s32
    %s49 = sphi 0, %s33
    %s55 = sphi 0, %s57
    %s58 = sphi 0, %s55
    %s59 = sphi 0, %s58
    %s75 = sphi 0, %s59
    %s79 = sphi 0, %s79
    %s81 = sphi 0, %s79
    %s82 = sphi 0, %s81
    %s96 = sphi 0, %s82
    %s100 = sphi 0, %s100
    %s102 = sphi 0, %s100
    %s103 = sphi 0, %s102
    %s117 = sphi 0, %s103
    %s121 = sphi 0, %s121
    %s123 = sphi 0, %s121
    %s124 = sphi 0, %s123
    %s138 = sphi 0, %s124
    %s142 = sphi 0, %s142
    %s144 = sphi 0, %s142
    %s145 = sphi 0, %s144
    %s159 = sphi 0, %s145
    %s163 = sphi 0, %s163
    %s165 = sphi 0, %s163
    %s166 = sphi 0, %s165
    %s180 = sphi 0, %s166
    %s184 = sphi 0, %s184
    %s186 = sphi 0, %s184
    %s187 = sphi 0, %s186
    %s201 = sphi 0, %s187
    %s205 = sphi 0, %s205
    %s207 = sphi 0, %s205
    %s208 = sphi 0, %s207
    %s222 = sphi 0, %s208
    %s226 = sphi 0, %s226
    %s228 = sphi 0, %s226
    %s229 = sphi 0, %s228
    %s243 = sphi 0, %s229
    %s247 = sphi 0, %s247
    %s249 = sphi 0, %s247
    %s250 = sphi 0, %s249
    %s264 = sphi 0, %s250
    %s268 = sphi 0, %s268
    %s270 = sphi 0, %s268
    %s271 = sphi 0, %s270
    %s285 = sphi 0, %s271
    %s289 = sphi 0, %s289
    %s291 = sphi 0, %s289
    %s292 = sphi 0, %s291
    %s306 = sphi 0, %s292
    %s312 = sphi 0, %s314
    %s315 = sphi 0, %s312
    %s316 = sphi 0, %s315
    %s332 = sphi 0, %s316
  $region4: #{tpu_custom_call.1} parent=0 // loop_header_branch
    %22 = sbr.rel (%p20) target = $region8
  $region5: #{tpu_custom_call.1} parent=0 // loop_body
    %s24 = ssub.s32 %s19, 1
    %s25 = ssub.s32 %s19, 2
    %s26 = sadd.s32 %s19, 1
    %s27 = ssub.s32 %s19, %s26
    %p28 = scmp.eq.s32.totalorder %s27, 0
    %s30 = sadd.s32 %s29, 1
    %s31 = scalar_select %p28, %s29, %s30
    %p34 = pneg %p28
    %p35 = scmp.eq.s32.totalorder %s19, 1
    %p36 = por %p34, %p35
    %p37 = scmp.ne.s32.totalorder %s29, %s32
    %p38 = scmp.eq.s32.totalorder %s19, 0
    %p39 = por %p37, %p38
    %p40 = scmp.ne.s32.totalorder %s29, %s32
    %p41 = scmp.eq.s32.totalorder %s24, 1
    %p42 = por %p40, %p41
    %p43 = scmp.ne.s32.totalorder %s32, %s33
    %p44 = scmp.eq.s32.totalorder %s24, 0
    %p45 = por %p43, %p44
    %p46 = scmp.ne.s32.totalorder %s32, %s33
    %p47 = scmp.eq.s32.totalorder %s25, 1
    %p48 = por %p46, %p47
    %p50 = scmp.ne.s32.totalorder %s33, %s49
    %p51 = scmp.eq.s32.totalorder %s25, 0
    %p52 = por %p50, %p51
    %s53 = ssub.s32 %s19, %s26
    %p54 = scmp.eq.s32.totalorder %s53, 0
    %s56 = sadd.s32 %s55, 1
    %s57 = scalar_select %p54, %s55, %s56
    %p60 = pneg %p54
    %p61 = scmp.eq.s32.totalorder %s19, 1
    %p62 = por %p60, %p61
    %p63 = scmp.ne.s32.totalorder %s55, %s58
    %p64 = scmp.eq.s32.totalorder %s19, 0
    %p65 = por %p63, %p64
    %p66 = scmp.ne.s32.totalorder %s55, %s58
    %p67 = scmp.eq.s32.totalorder %s24, 1
    %p68 = por %p66, %p67
    %p69 = scmp.ne.s32.totalorder %s58, %s59
    %p70 = scmp.eq.s32.totalorder %s24, 0
    %p71 = por %p69, %p70
    %p72 = scmp.ne.s32.totalorder %s58, %s59
    %p73 = scmp.eq.s32.totalorder %s25, 1
    %p74 = por %p72, %p73
    %p76 = scmp.ne.s32.totalorder %s59, %s75
    %p77 = scmp.eq.s32.totalorder %s25, 0
    %p78 = por %p76, %p77
    %s80 = sadd.s32 %s79, 1
    %p83 = scmp.eq.s32.totalorder %s19, 1
    %p84 = scmp.ne.s32.totalorder %s79, %s81
    %p85 = scmp.eq.s32.totalorder %s19, 0
    %p86 = por %p84, %p85
    %p87 = scmp.ne.s32.totalorder %s79, %s81
    %p88 = scmp.eq.s32.totalorder %s24, 1
    %p89 = por %p87, %p88
    %p90 = scmp.ne.s32.totalorder %s81, %s82
    %p91 = scmp.eq.s32.totalorder %s24, 0
    %p92 = por %p90, %p91
    %p93 = scmp.ne.s32.totalorder %s81, %s82
    %p94 = scmp.eq.s32.totalorder %s25, 1
    %p95 = por %p93, %p94
    %p97 = scmp.ne.s32.totalorder %s82, %s96
    %p98 = scmp.eq.s32.totalorder %s25, 0
    %p99 = por %p97, %p98
    %s101 = sadd.s32 %s100, 1
    %p104 = scmp.eq.s32.totalorder %s19, 1
    %p105 = scmp.ne.s32.totalorder %s100, %s102
    %p106 = scmp.eq.s32.totalorder %s19, 0
    %p107 = por %p105, %p106
    %p108 = scmp.ne.s32.totalorder %s100, %s102
    %p109 = scmp.eq.s32.totalorder %s24, 1
    %p110 = por %p108, %p109
    %p111 = scmp.ne.s32.totalorder %s102, %s103
    %p112 = scmp.eq.s32.totalorder %s24, 0
    %p113 = por %p111, %p112
    %p114 = scmp.ne.s32.totalorder %s102, %s103
    %p115 = scmp.eq.s32.totalorder %s25, 1
    %p116 = por %p114, %p115
    %p118 = scmp.ne.s32.totalorder %s103, %s117
    %p119 = scmp.eq.s32.totalorder %s25, 0
    %p120 = por %p118, %p119
    %s122 = sadd.s32 %s121, 1
    %p125 = scmp.eq.s32.totalorder %s19, 1
    %p126 = scmp.ne.s32.totalorder %s121, %s123
    %p127 = scmp.eq.s32.totalorder %s19, 0
    %p128 = por %p126, %p127
    %p129 = scmp.ne.s32.totalorder %s121, %s123
    %p130 = scmp.eq.s32.totalorder %s24, 1
    %p131 = por %p129, %p130
    %p132 = scmp.ne.s32.totalorder %s123, %s124
    %p133 = scmp.eq.s32.totalorder %s24, 0
    %p134 = por %p132, %p133
    %p135 = scmp.ne.s32.totalorder %s123, %s124
    %p136 = scmp.eq.s32.totalorder %s25, 1
    %p137 = por %p135, %p136
    %p139 = scmp.ne.s32.totalorder %s124, %s138
    %p140 = scmp.eq.s32.totalorder %s25, 0
    %p141 = por %p139, %p140
    %s143 = sadd.s32 %s142, 1
    %p146 = scmp.eq.s32.totalorder %s19, 1
    %p147 = scmp.ne.s32.totalorder %s142, %s144
    %p148 = scmp.eq.s32.totalorder %s19, 0
    %p149 = por %p147, %p148
    %p150 = scmp.ne.s32.totalorder %s142, %s144
    %p151 = scmp.eq.s32.totalorder %s24, 1
    %p152 = por %p150, %p151
    %p153 = scmp.ne.s32.totalorder %s144, %s145
    %p154 = scmp.eq.s32.totalorder %s24, 0
    %p155 = por %p153, %p154
    %p156 = scmp.ne.s32.totalorder %s144, %s145
    %p157 = scmp.eq.s32.totalorder %s25, 1
    %p158 = por %p156, %p157
    %p160 = scmp.ne.s32.totalorder %s145, %s159
    %p161 = scmp.eq.s32.totalorder %s25, 0
    %p162 = por %p160, %p161
    %s164 = sadd.s32 %s163, 1
    %p167 = scmp.eq.s32.totalorder %s19, 1
    %p168 = scmp.ne.s32.totalorder %s163, %s165
    %p169 = scmp.eq.s32.totalorder %s19, 0
    %p170 = por %p168, %p169
    %p171 = scmp.ne.s32.totalorder %s163, %s165
    %p172 = scmp.eq.s32.totalorder %s24, 1
    %p173 = por %p171, %p172
    %p174 = scmp.ne.s32.totalorder %s165, %s166
    %p175 = scmp.eq.s32.totalorder %s24, 0
    %p176 = por %p174, %p175
    %p177 = scmp.ne.s32.totalorder %s165, %s166
    %p178 = scmp.eq.s32.totalorder %s25, 1
    %p179 = por %p177, %p178
    %p181 = scmp.ne.s32.totalorder %s166, %s180
    %p182 = scmp.eq.s32.totalorder %s25, 0
    %p183 = por %p181, %p182
    %s185 = sadd.s32 %s184, 1
    %p188 = scmp.eq.s32.totalorder %s19, 1
    %p189 = scmp.ne.s32.totalorder %s184, %s186
    %p190 = scmp.eq.s32.totalorder %s19, 0
    %p191 = por %p189, %p190
    %p192 = scmp.ne.s32.totalorder %s184, %s186
    %p193 = scmp.eq.s32.totalorder %s24, 1
    %p194 = por %p192, %p193
    %p195 = scmp.ne.s32.totalorder %s186, %s187
    %p196 = scmp.eq.s32.totalorder %s24, 0
    %p197 = por %p195, %p196
    %p198 = scmp.ne.s32.totalorder %s186, %s187
    %p199 = scmp.eq.s32.totalorder %s25, 1
    %p200 = por %p198, %p199
    %p202 = scmp.ne.s32.totalorder %s187, %s201
    %p203 = scmp.eq.s32.totalorder %s25, 0
    %p204 = por %p202, %p203
    %s206 = sadd.s32 %s205, 1
    %p209 = scmp.eq.s32.totalorder %s19, 1
    %p210 = scmp.ne.s32.totalorder %s205, %s207
    %p211 = scmp.eq.s32.totalorder %s19, 0
    %p212 = por %p210, %p211
    %p213 = scmp.ne.s32.totalorder %s205, %s207
    %p214 = scmp.eq.s32.totalorder %s24, 1
    %p215 = por %p213, %p214
    %p216 = scmp.ne.s32.totalorder %s207, %s208
    %p217 = scmp.eq.s32.totalorder %s24, 0
    %p218 = por %p216, %p217
    %p219 = scmp.ne.s32.totalorder %s207, %s208
    %p220 = scmp.eq.s32.totalorder %s25, 1
    %p221 = por %p219, %p220
    %p223 = scmp.ne.s32.totalorder %s208, %s222
    %p224 = scmp.eq.s32.totalorder %s25, 0
    %p225 = por %p223, %p224
    %s227 = sadd.s32 %s226, 1
    %p230 = scmp.eq.s32.totalorder %s19, 1
    %p231 = scmp.ne.s32.totalorder %s226, %s228
    %p232 = scmp.eq.s32.totalorder %s19, 0
    %p233 = por %p231, %p232
    %p234 = scmp.ne.s32.totalorder %s226, %s228
    %p235 = scmp.eq.s32.totalorder %s24, 1
    %p236 = por %p234, %p235
    %p237 = scmp.ne.s32.totalorder %s228, %s229
    %p238 = scmp.eq.s32.totalorder %s24, 0
    %p239 = por %p237, %p238
    %p240 = scmp.ne.s32.totalorder %s228, %s229
    %p241 = scmp.eq.s32.totalorder %s25, 1
    %p242 = por %p240, %p241
    %p244 = scmp.ne.s32.totalorder %s229, %s243
    %p245 = scmp.eq.s32.totalorder %s25, 0
    %p246 = por %p244, %p245
    %s248 = sadd.s32 %s247, 1
    %p251 = scmp.eq.s32.totalorder %s19, 1
    %p252 = scmp.ne.s32.totalorder %s247, %s249
    %p253 = scmp.eq.s32.totalorder %s19, 0
    %p254 = por %p252, %p253
    %p255 = scmp.ne.s32.totalorder %s247, %s249
    %p256 = scmp.eq.s32.totalorder %s24, 1
    %p257 = por %p255, %p256
    %p258 = scmp.ne.s32.totalorder %s249, %s250
    %p259 = scmp.eq.s32.totalorder %s24, 0
    %p260 = por %p258, %p259
    %p261 = scmp.ne.s32.totalorder %s249, %s250
    %p262 = scmp.eq.s32.totalorder %s25, 1
    %p263 = por %p261, %p262
    %p265 = scmp.ne.s32.totalorder %s250, %s264
    %p266 = scmp.eq.s32.totalorder %s25, 0
    %p267 = por %p265, %p266
    %s269 = sadd.s32 %s268, 1
    %p272 = scmp.eq.s32.totalorder %s19, 1
    %p273 = scmp.ne.s32.totalorder %s268, %s270
    %p274 = scmp.eq.s32.totalorder %s19, 0
    %p275 = por %p273, %p274
    %p276 = scmp.ne.s32.totalorder %s268, %s270
    %p277 = scmp.eq.s32.totalorder %s24, 1
    %p278 = por %p276, %p277
    %p279 = scmp.ne.s32.totalorder %s270, %s271
    %p280 = scmp.eq.s32.totalorder %s24, 0
    %p281 = por %p279, %p280
    %p282 = scmp.ne.s32.totalorder %s270, %s271
    %p283 = scmp.eq.s32.totalorder %s25, 1
    %p284 = por %p282, %p283
    %p286 = scmp.ne.s32.totalorder %s271, %s285
    %p287 = scmp.eq.s32.totalorder %s25, 0
    %p288 = por %p286, %p287
    %s290 = sadd.s32 %s289, 1
    %p293 = scmp.eq.s32.totalorder %s19, 1
    %p294 = scmp.ne.s32.totalorder %s289, %s291
    %p295 = scmp.eq.s32.totalorder %s19, 0
    %p296 = por %p294, %p295
    %p297 = scmp.ne.s32.totalorder %s289, %s291
    %p298 = scmp.eq.s32.totalorder %s24, 1
    %p299 = por %p297, %p298
    %p300 = scmp.ne.s32.totalorder %s291, %s292
    %p301 = scmp.eq.s32.totalorder %s24, 0
    %p302 = por %p300, %p301
    %p303 = scmp.ne.s32.totalorder %s291, %s292
    %p304 = scmp.eq.s32.totalorder %s25, 1
    %p305 = por %p303, %p304
    %p307 = scmp.ne.s32.totalorder %s292, %s306
    %p308 = scmp.eq.s32.totalorder %s25, 0
    %p309 = por %p307, %p308
    %s310 = ssub.s32 %s19, %s26
    %p311 = scmp.eq.s32.totalorder %s310, 0
    %s313 = sadd.s32 %s312, 1
    %s314 = scalar_select %p311, %s312, %s313
    %p317 = pneg %p311
    %p318 = scmp.eq.s32.totalorder %s19, 1
    %p319 = por %p317, %p318
    %p320 = scmp.ne.s32.totalorder %s312, %s315
    %p321 = scmp.eq.s32.totalorder %s19, 0
    %p322 = por %p320, %p321
    %p323 = scmp.ne.s32.totalorder %s312, %s315
    %p324 = scmp.eq.s32.totalorder %s24, 1
    %p325 = por %p323, %p324
    %p326 = scmp.ne.s32.totalorder %s315, %s316
    %p327 = scmp.eq.s32.totalorder %s24, 0
    %p328 = por %p326, %p327
    %p329 = scmp.ne.s32.totalorder %s315, %s316
    %p330 = scmp.eq.s32.totalorder %s25, 1
    %p331 = por %p329, %p330
    %p333 = scmp.ne.s32.totalorder %s316, %s332
    %p334 = scmp.eq.s32.totalorder %s25, 0
    %p335 = por %p333, %p334
    %p336 = scmp.le.s32.totalorder 1, %s19
    %p337 = scmp.lt.s32.totalorder %s19, 3
    %p338 = pnand %p336, %p337
    %p339 = pneg %p338
    // Predicated region
    $region9: #{tpu_custom_call.1} parent=5 // pred_check
      _
    $region10: #{tpu_custom_call.1} parent=5 // pred_check_branch
      %341 = sbr.rel (%p338) target = $region12
    $region11: #{tpu_custom_call.1} parent=5 // pred_region
      %s342 = ssub.s32 %s19, 1
      // Predicated region
      $region13: #{tpu_custom_call.1} parent=11 // pred_check
        %p343 = pneg %p92
      $region14: #{tpu_custom_call.1} parent=11 // pred_check_branch
        %345 = sbr.rel (%p343) target = $region16
      $region15: #{tpu_custom_call.1} parent=11 // pred_region
        _
      $region16: #{tpu_custom_call.1} parent=11 // pred_fallthru
        _
      // Predicated region
      $region17: #{tpu_custom_call.1} parent=11 // pred_check
        %p346 = pneg %p113
      $region18: #{tpu_custom_call.1} parent=11 // pred_check_branch
        %348 = sbr.rel (%p346) target = $region20
      $region19: #{tpu_custom_call.1} parent=11 // pred_region
        _
      $region20: #{tpu_custom_call.1} parent=11 // pred_fallthru
        _
      // Predicated region
      $region21: #{tpu_custom_call.1} parent=11 // pred_check
        %p349 = pneg %p134
      $region22: #{tpu_custom_call.1} parent=11 // pred_check_branch
        %351 = sbr.rel (%p349) target = $region24
      $region23: #{tpu_custom_call.1} parent=11 // pred_region
        _
      $region24: #{tpu_custom_call.1} parent=11 // pred_fallthru
        _
      // Predicated region
      $region25: #{tpu_custom_call.1} parent=11 // pred_check
        %p352 = pneg %p155
      $region26: #{tpu_custom_call.1} parent=11 // pred_check_branch
        %354 = sbr.rel (%p352) target = $region28
      $region27: #{tpu_custom_call.1} parent=11 // pred_region
        _
      $region28: #{tpu_custom_call.1} parent=11 // pred_fallthru
        _
      // Predicated region
      $region29: #{tpu_custom_call.1} parent=11 // pred_check
        %p355 = pneg %p176
      $region30: #{tpu_custom_call.1} parent=11 // pred_check_branch
        %357 = sbr.rel (%p355) target = $region32
      $region31: #{tpu_custom_call.1} parent=11 // pred_region
        _
      $region32: #{tpu_custom_call.1} parent=11 // pred_fallthru
        _
      // Predicated region
      $region33: #{tpu_custom_call.1} parent=11 // pred_check
        %p358 = pneg %p197
      $region34: #{tpu_custom_call.1} parent=11 // pred_check_branch
        %360 = sbr.rel (%p358) target = $region36
      $region35: #{tpu_custom_call.1} parent=11 // pred_region
        _
      $region36: #{tpu_custom_call.1} parent=11 // pred_fallthru
        _
      // Predicated region
      $region37: #{tpu_custom_call.1} parent=11 // pred_check
        %p361 = pneg %p218
      $region38: #{tpu_custom_call.1} parent=11 // pred_check_branch
        %363 = sbr.rel (%p361) target = $region40
      $region39: #{tpu_custom_call.1} parent=11 // pred_region
        _
      $region40: #{tpu_custom_call.1} parent=11 // pred_fallthru
        _
      // Predicated region
      $region41: #{tpu_custom_call.1} parent=11 // pred_check
        %p364 = pneg %p239
      $region42: #{tpu_custom_call.1} parent=11 // pred_check_branch
        %366 = sbr.rel (%p364) target = $region44
      $region43: #{tpu_custom_call.1} parent=11 // pred_region
        _
      $region44: #{tpu_custom_call.1} parent=11 // pred_fallthru
        _
      // Predicated region
      $region45: #{tpu_custom_call.1} parent=11 // pred_check
        %p367 = pneg %p260
      $region46: #{tpu_custom_call.1} parent=11 // pred_check_branch
        %369 = sbr.rel (%p367) target = $region48
      $region47: #{tpu_custom_call.1} parent=11 // pred_region
        _
      $region48: #{tpu_custom_call.1} parent=11 // pred_fallthru
        _
      // Predicated region
      $region49: #{tpu_custom_call.1} parent=11 // pred_check
        %p370 = pneg %p281
      $region50: #{tpu_custom_call.1} parent=11 // pred_check_branch
        %372 = sbr.rel (%p370) target = $region52
      $region51: #{tpu_custom_call.1} parent=11 // pred_region
        _
      $region52: #{tpu_custom_call.1} parent=11 // pred_fallthru
        _
      // Predicated region
      $region53: #{tpu_custom_call.1} parent=11 // pred_check
        %p373 = pneg %p302
      $region54: #{tpu_custom_call.1} parent=11 // pred_check_branch
        %375 = sbr.rel (%p373) target = $region56
      $region55: #{tpu_custom_call.1} parent=11 // pred_region
        _
      $region56: #{tpu_custom_call.1} parent=11 // pred_fallthru
        _
    $region12: #{tpu_custom_call.1} parent=5 // pred_fallthru
      _
    %p376 = scmp.lt.s32.totalorder %s19, 2
    // Predicated region
    $region57: #{tpu_custom_call.1} parent=5 // pred_check
      %p377 = pneg %p376
    $region58: #{tpu_custom_call.1} parent=5 // pred_check_branch
      %379 = sbr.rel (%p377) target = $region60
    $region59: #{tpu_custom_call.1} parent=5 // pred_region
      // Predicated region
      $region61: #{tpu_custom_call.1} parent=59 // pred_check
        %p380 = pneg %p39
      $region62: #{tpu_custom_call.1} parent=59 // pred_check_branch
        %382 = sbr.rel (%p380) target = $region64
      $region63: #{tpu_custom_call.1} parent=59 // pred_region
        %s383 = smul.u32 20, %s19
        %p384 = scmp.lt.s32.totalorder %s383, 39
        %s385 = scalar_select %p384, %s383, 39
        %s386 = smul.addr %s385, 8
        %s387 = scalar_lea.vmem %s0, %s386
        %s388 = smul.u32 20, %s19
      $region64: #{tpu_custom_call.1} parent=59 // pred_fallthru
        _
      // Predicated region
      $region65: #{tpu_custom_call.1} parent=59 // pred_check
        %p389 = pneg %p65
      $region66: #{tpu_custom_call.1} parent=59 // pred_check_branch
        %391 = sbr.rel (%p389) target = $region68
      $region67: #{tpu_custom_call.1} parent=59 // pred_region
        %s392 = smul.u32 16, %s19
        %p393 = scmp.lt.s32.totalorder %s392, 31
        %s394 = scalar_select %p393, %s392, 31
        %s395 = smul.addr %s394, 8
        %s396 = scalar_lea.vmem %s1, %s395
        %s397 = smul.u32 16, %s19
      $region68: #{tpu_custom_call.1} parent=59 // pred_fallthru
        _
    $region60: #{tpu_custom_call.1} parent=5 // pred_fallthru
      _
    %p398 = scmp.le.s32.totalorder 1, %s19
    %p399 = scmp.lt.s32.totalorder %s19, 3
    %p400 = pnand %p398, %p399
    %p401 = pneg %p400
    // Predicated region
    $region69: #{tpu_custom_call.1} parent=5 // pred_check
      _
    $region70: #{tpu_custom_call.1} parent=5 // pred_check_branch
      %403 = sbr.rel (%p400) target = $region72
    $region71: #{tpu_custom_call.1} parent=5 // pred_region
      %s404 = ssub.s32 %s19, 1
      %s405 = smul.u32 20, %s24
      %p406 = scmp.lt.s32.totalorder %s405, 39
      %s407 = scalar_select %p406, %s405, 39
      %s408 = smul.addr %s407, 8
      %s409 = scalar_lea.vmem %s0, %s408
      %p410 = pneg %p45
      %p411 = pneg %p42
      %s412 = smul.u32 16, %s24
      %p413 = scmp.lt.s32.totalorder %s412, 31
      %s414 = scalar_select %p413, %s412, 31
      %s415 = smul.addr %s414, 8
      %s416 = scalar_lea.vmem %s1, %s415
      %p417 = pneg %p71
      %p418 = pneg %p68
      %p419 = pneg %p92
      %p420 = pneg %p89
      %p421 = pneg %p113
      %p422 = pneg %p110
      %p423 = pneg %p134
      %p424 = pneg %p131
      %p425 = pneg %p155
      %p426 = pneg %p152
      %p427 = pneg %p176
      %p428 = pneg %p173
      %p429 = pneg %p197
      %p430 = pneg %p194
      %p431 = pneg %p218
      %p432 = pneg %p215
      %p433 = pneg %p239
      %p434 = pneg %p236
      %p435 = pneg %p260
      %p436 = pneg %p257
      %p437 = pneg %p281
      %p438 = pneg %p278
      %p439 = pneg %p302
      %p440 = pneg %p299
      %p441 = pneg %p328
      %p442 = pneg %p325
      %s443 = smul.u32 16, %s24
      %p444 = scmp.lt.s32.totalorder %s443, 31
      %s445 = scalar_select %p444, %s443, 31
      %s446 = smul.addr %s445, 8
      %s447 = scalar_lea.vmem %s13, %s446
      %s448 = smul.u32 20, %s24
      %p449 = scmp.lt.s32.totalorder %s448, 39
      %s450 = scalar_select %p449, %s448, 39
      %s451 = smul.addr %s450, 8
      %s452 = scalar_lea.vmem %s0, %s451
      %s453 = smul.u32 20, %s24
      %s454 = smul.u32 16, %s24
      %p455 = scmp.lt.s32.totalorder %s454, 31
      %s456 = scalar_select %p455, %s454, 31
      %s457 = smul.addr %s456, 8
      %s458 = scalar_lea.vmem %s1, %s457
      %s459 = smul.u32 16, %s24
      %s460 = smul.u32 16, %s24
      %p461 = scmp.lt.s32.totalorder %s460, 31
      %s462 = scalar_select %p461, %s460, 31
      %s463 = smul.addr %s462, 8
      %s464 = scalar_lea.vmem %s13, %s463
      %s465 = smul.u32 16, %s24
      %v466 = vld [vmem:[%s452] sm:$0xff]
      %v467 = vld [vmem:[%s452 + $0x8] sm:$0xff]
      %v468 = vld [vmem:[%s452 + $0x10] sm:$0xff]
      %v469 = vld [vmem:[%s452 + $0x18] sm:$0xff]
      %v470 = vld [vmem:[%s452 + $0x20] sm:$0xff]
      %v471 = vld [vmem:[%s452 + $0x28] sm:$0xff]
      %v472 = vld [vmem:[%s452 + $0x30] sm:$0xff]
      %v473 = vld [vmem:[%s452 + $0x38] sm:$0xff]
      %v474 = vld [vmem:[%s452 + $0x40] sm:$0xff]
      %v475 = vld [vmem:[%s452 + $0x48] sm:$0xff]
      %v476 = vld [vmem:[%s452 + $0x50] sm:$0xff]
      %v477 = vld [vmem:[%s452 + $0x58] sm:$0xff]
      %v478 = vld [vmem:[%s452 + $0x60] sm:$0xff]
      %v479 = vld [vmem:[%s452 + $0x68] sm:$0xff]
      %v480 = vld [vmem:[%s452 + $0x70] sm:$0xff]
      %v481 = vld [vmem:[%s452 + $0x78] sm:$0xff]
      %v482 = vld [vmem:[%s452 + $0x80] sm:$0xff]
      %v483 = vld [vmem:[%s452 + $0x88] sm:$0xff]
      %v484 = vld [vmem:[%s452 + $0x90] sm:$0xff]
      %v485 = vld [vmem:[%s452 + $0x98] sm:$0xff]
      %v486 = vld [vmem:[%s458] sm:$0xff]
      %v487 = vld [vmem:[%s458 + $0x8] sm:$0xff]
      %v488 = vld [vmem:[%s458 + $0x10] sm:$0xff]
      %v489 = vld [vmem:[%s458 + $0x18] sm:$0xff]
      %v490 = vld [vmem:[%s458 + $0x20] sm:$0xff]
      %v491 = vld [vmem:[%s458 + $0x28] sm:$0xff]
      %v492 = vld [vmem:[%s458 + $0x30] sm:$0xff]
      %v493 = vld [vmem:[%s458 + $0x38] sm:$0xff]
      %v494 = vld [vmem:[%s458 + $0x40] sm:$0xff]
      %v495 = vld [vmem:[%s458 + $0x48] sm:$0xff]
      %v496 = vld [vmem:[%s458 + $0x50] sm:$0xff]
      %v497 = vld [vmem:[%s458 + $0x58] sm:$0xff]
      %v498 = vld [vmem:[%s458 + $0x60] sm:$0xff]
      %v499 = vld [vmem:[%s458 + $0x68] sm:$0xff]
      %v500 = vld [vmem:[%s458 + $0x70] sm:$0xff]
      %v501 = vld [vmem:[%s458 + $0x78] sm:$0xff]
      %v502 = vld [vmem:[%s4] sm:$0xf]
      %v503 = vld [vmem:[%s5] sm:$0x1]
      %v505 = vlaneseq
      %v506 = vshrl.u32 %v505, 7
      %v507 = vsub.s32 0, %v506
      %v508 = vrot.slane %v503, %v507
      %vm510 = vcmask 31744
      %v512 = vsel %vm510, %v466, 0
      %v515 = vsel %vm510, %v467, 0
      %v518 = vsel %vm510, %v468, 0
      %v521 = vsel %vm510, %v469, 0
      %v524 = vsel %vm510, %v470, 0
      %v527 = vsel %vm510, %v471, 0
      %v530 = vsel %vm510, %v472, 0
      %v533 = vsel %vm510, %v473, 0
      %v536 = vsel %vm510, %v474, 0
      %v539 = vsel %vm510, %v475, 0
      %v542 = vsel %vm510, %v476, 0
      %v545 = vsel %vm510, %v477, 0
      %v548 = vsel %vm510, %v478, 0
      %v551 = vsel %vm510, %v479, 0
      %v554 = vsel %vm510, %v480, 0
      %v557 = vsel %vm510, %v481, 0
      %v560 = vsel %vm510, %v482, 0
      %v563 = vsel %vm510, %v483, 0
      %v566 = vsel %vm510, %v484, 0
      %v569 = vsel %vm510, %v485, 0
      %vm571 = vcmask 1043456
      %v573 = vsel %vm571, %v502, 0
      %575 = vmatprep.subr.mxu0 0.0
      %576 = vmatpush1.msra.mxu0 0.0
      %577 = vmatprep.subr.mxu0 0.0
      %578 = vmatpush1.msra.mxu0 0.0
      %579 = vmatprep.subr.mxu0 0.0
      %580 = vmatpush1.msra.mxu0 0.0
      %581 = vmatprep.subr.mxu0 0.0
      %582 = vmatpush1.msra.mxu0 0.0
      %583 = vmatprep.subr.mxu0 0.0
      %584 = vmatpush1.msra.mxu0 0.0
      %585 = vmatprep.subr.mxu0 0.0
      %586 = vmatpush1.msra.mxu0 0.0
      %587 = vmatprep.subr.mxu0 0.0
      %588 = vmatpush1.msra.mxu0 0.0
      %589 = vmatprep.subr.mxu0 0.0
      %590 = vmatpush1.msra.mxu0 0.0
      %591 = vmatprep.subr.mxu0 0.0
      %592 = vmatpush1.msra.mxu0 0.0
      %593 = vmatprep.subr.mxu0 0.0
      %594 = vmatpush1.msra.mxu0 0.0
      %595 = vmatprep.subr.mxu0 0.0
      %596 = vmatpush1.msra.mxu0 0.0
      %597 = vmatprep.subr.mxu0 0.0
      %598 = vmatpush1.msra.mxu0 0.0
      %599 = vmatprep.subr.mxu0 0.0
      %600 = vmatpush1.msra.mxu0 0.0
      %601 = vmatprep.subr.mxu0 0.0
      %602 = vmatpush1.msra.mxu0 0.0
      %603 = vmatprep.subr.mxu0 0.0
      %604 = vmatpush1.msra.mxu0 0.0
      %605 = vmatprep.subr.mxu0 0.0
      %606 = vmatpush1.msra.mxu0 %v573
      %607 = vmatprep.subr.mxu0 0.0
      %608 = vmatpush2.msra.mxu0 0.0
      %609 = vmatprep.subr.mxu0 0.0
      %610 = vmatpush2.msra.mxu0 0.0
      %611 = vmatprep.subr.mxu0 0.0
      %612 = vmatpush2.msra.mxu0 0.0
      %613 = vmatprep.subr.mxu0 0.0
      %614 = vmatpush2.msra.mxu0 0.0
      %615 = vmatprep.subr.mxu0 0.0
      %616 = vmatpush2.msra.mxu0 0.0
      %617 = vmatprep.subr.mxu0 0.0
      %618 = vmatpush2.msra.mxu0 0.0
      %619 = vmatprep.subr.mxu0 0.0
      %620 = vmatpush2.msra.mxu0 0.0
      %621 = vmatprep.subr.mxu0 0.0
      %622 = vmatpush2.msra.mxu0 0.0
      %623 = vmatprep.subr.mxu0 0.0
      %624 = vmatpush2.msra.mxu0 0.0
      %625 = vmatprep.subr.mxu0 0.0
      %626 = vmatpush2.msra.mxu0 0.0
      %627 = vmatprep.subr.mxu0 0.0
      %628 = vmatpush2.msra.mxu0 0.0
      %629 = vmatprep.subr.mxu0 0.0
      %630 = vmatpush2.msra.mxu0 0.0
      %631 = vmatprep.subr.mxu0 0.0
      %632 = vmatpush2.msra.mxu0 0.0
      %633 = vmatprep.subr.mxu0 0.0
      %634 = vmatpush2.msra.mxu0 0.0
      %635 = vmatprep.subr.mxu0 0.0
      %636 = vmatpush2.msra.mxu0 0.0
      %637 = vmatprep.subr.mxu0 0.0
      %638 = vmatpush2.msra.mxu0 0.0
      %639 = vmatprep.mubr.f32.mxu0 0.0
      %640 = vmatmul.mubr.f32.gmra.mxu0 %v512
      %v641 = vpop.f32.mrf.mxu0
      %v642 = vadd.f32 %v508, %v641
      %v643 = vpop.f32.mrf.mxu0
      %644 = vmatprep.mubr.f32.mxu0 0.0
      %645 = vmatmul.mubr.f32.gmra.mxu0 %v515
      %v646 = vpop.f32.mrf.mxu0
      %v647 = vadd.f32 %v508, %v646
      %v648 = vpop.f32.mrf.mxu0
      %649 = vmatprep.mubr.f32.mxu0 0.0
      %650 = vmatmul.mubr.f32.gmra.mxu0 %v518
      %v651 = vpop.f32.mrf.mxu0
      %v652 = vadd.f32 %v508, %v651
      %v653 = vpop.f32.mrf.mxu0
      %654 = vmatprep.mubr.f32.mxu0 0.0
      %655 = vmatmul.mubr.f32.gmra.mxu0 %v521
      %v656 = vpop.f32.mrf.mxu0
      %v657 = vadd.f32 %v508, %v656
      %v658 = vpop.f32.mrf.mxu0
      %659 = vmatprep.mubr.f32.mxu0 0.0
      %660 = vmatmul.mubr.f32.gmra.mxu0 %v524
      %v661 = vpop.f32.mrf.mxu0
      %v662 = vadd.f32 %v508, %v661
      %v663 = vpop.f32.mrf.mxu0
      %664 = vmatprep.mubr.f32.mxu0 0.0
      %665 = vmatmul.mubr.f32.gmra.mxu0 %v527
      %v666 = vpop.f32.mrf.mxu0
      %v667 = vadd.f32 %v508, %v666
      %v668 = vpop.f32.mrf.mxu0
      %669 = vmatprep.mubr.f32.mxu0 0.0
      %670 = vmatmul.mubr.f32.gmra.mxu0 %v530
      %v671 = vpop.f32.mrf.mxu0
      %v672 = vadd.f32 %v508, %v671
      %v673 = vpop.f32.mrf.mxu0
      %674 = vmatprep.mubr.f32.mxu0 0.0
      %675 = vmatmul.mubr.f32.gmra.mxu0 %v533
      %v676 = vpop.f32.mrf.mxu0
      %v677 = vadd.f32 %v508, %v676
      %v678 = vpop.f32.mrf.mxu0
      %679 = vmatprep.mubr.f32.mxu0 0.0
      %680 = vmatmul.mubr.f32.gmra.mxu0 %v536
      %v681 = vpop.f32.mrf.mxu0
      %v682 = vadd.f32 %v508, %v681
      %v683 = vpop.f32.mrf.mxu0
      %684 = vmatprep.mubr.f32.mxu0 0.0
      %685 = vmatmul.mubr.f32.gmra.mxu0 %v539
      %v686 = vpop.f32.mrf.mxu0
      %v687 = vadd.f32 %v508, %v686
      %v688 = vpop.f32.mrf.mxu0
      %689 = vmatprep.mubr.f32.mxu0 0.0
      %690 = vmatmul.mubr.f32.gmra.mxu0 %v542
      %v691 = vpop.f32.mrf.mxu0
      %v692 = vadd.f32 %v508, %v691
      %v693 = vpop.f32.mrf.mxu0
      %694 = vmatprep.mubr.f32.mxu0 0.0
      %695 = vmatmul.mubr.f32.gmra.mxu0 %v545
      %v696 = vpop.f32.mrf.mxu0
      %v697 = vadd.f32 %v508, %v696
      %v698 = vpop.f32.mrf.mxu0
      %699 = vmatprep.mubr.f32.mxu0 0.0
      %700 = vmatmul.mubr.f32.gmra.mxu0 %v548
      %v701 = vpop.f32.mrf.mxu0
      %v702 = vadd.f32 %v508, %v701
      %v703 = vpop.f32.mrf.mxu0
      %704 = vmatprep.mubr.f32.mxu0 0.0
      %705 = vmatmul.mubr.f32.gmra.mxu0 %v551
      %v706 = vpop.f32.mrf.mxu0
      %v707 = vadd.f32 %v508, %v706
      %v708 = vpop.f32.mrf.mxu0
      %709 = vmatprep.mubr.f32.mxu0 0.0
      %710 = vmatmul.mubr.f32.gmra.mxu0 %v554
      %v711 = vpop.f32.mrf.mxu0
      %v712 = vadd.f32 %v508, %v711
      %v713 = vpop.f32.mrf.mxu0
      %714 = vmatprep.mubr.f32.mxu0 0.0
      %715 = vmatmul.mubr.f32.gmra.mxu0 %v557
      %v716 = vpop.f32.mrf.mxu0
      %v717 = vadd.f32 %v508, %v716
      %v718 = vpop.f32.mrf.mxu0
      %719 = vmatprep.mubr.f32.mxu0 0.0
      %720 = vmatmul.mubr.f32.gmra.mxu0 %v560
      %v721 = vpop.f32.mrf.mxu0
      %v722 = vadd.f32 %v508, %v721
      %v723 = vpop.f32.mrf.mxu0
      %724 = vmatprep.mubr.f32.mxu0 0.0
      %725 = vmatmul.mubr.f32.gmra.mxu0 %v563
      %v726 = vpop.f32.mrf.mxu0
      %v727 = vadd.f32 %v508, %v726
      %v728 = vpop.f32.mrf.mxu0
      %729 = vmatprep.mubr.f32.mxu0 0.0
      %730 = vmatmul.mubr.f32.gmra.mxu0 %v566
      %v731 = vpop.f32.mrf.mxu0
      %v732 = vadd.f32 %v508, %v731
      %v733 = vpop.f32.mrf.mxu0
      %734 = vmatprep.mubr.f32.mxu0 0.0
      %735 = vmatmul.mubr.f32.gmra.mxu0 %v569
      %v736 = vpop.f32.mrf.mxu0
      %v737 = vadd.f32 %v508, %v736
      %v738 = vpop.f32.mrf.mxu0
      %739 = vdwg.mxu0
      %v740 = vmax.f32 %v642, 0.0
      %v741 = vmax.f32 %v647, 0.0
      %v742 = vmax.f32 %v652, 0.0
      %v743 = vmax.f32 %v657, 0.0
      %v744 = vmax.f32 %v662, 0.0
      %v745 = vmax.f32 %v667, 0.0
      %v746 = vmax.f32 %v672, 0.0
      %v747 = vmax.f32 %v677, 0.0
      %v748 = vmax.f32 %v682, 0.0
      %v749 = vmax.f32 %v687, 0.0
      %v750 = vmax.f32 %v692, 0.0
      %v751 = vmax.f32 %v697, 0.0
      %v752 = vmax.f32 %v702, 0.0
      %v753 = vmax.f32 %v707, 0.0
      %v754 = vmax.f32 %v712, 0.0
      %v755 = vmax.f32 %v717, 0.0
      %v756 = vmax.f32 %v722, 0.0
      %v757 = vmax.f32 %v727, 0.0
      %v758 = vmax.f32 %v732, 0.0
      %v759 = vmax.f32 %v737, 0.0
      %v760 = vld [vmem:[%s6] sm:$0xff]
      %v761 = vld [vmem:[%s6 + $0x8] sm:$0xff]
      %v762 = vld [vmem:[%s6 + $0x10] sm:$0xff]
      %v763 = vld [vmem:[%s6 + $0x18] sm:$0xff]
      %v764 = vld [vmem:[%s6 + $0x20] sm:$0xff]
      %v765 = vld [vmem:[%s6 + $0x28] sm:$0xff]
      %v766 = vld [vmem:[%s6 + $0x30] sm:$0xff]
      %v767 = vld [vmem:[%s6 + $0x38] sm:$0xff]
      %v768 = vld [vmem:[%s6 + $0x40] sm:$0xff]
      %v769 = vld [vmem:[%s6 + $0x48] sm:$0xff]
      %v770 = vld [vmem:[%s6 + $0x50] sm:$0xff]
      %v771 = vld [vmem:[%s6 + $0x58] sm:$0xff]
      %v772 = vld [vmem:[%s6 + $0x60] sm:$0xff]
      %v773 = vld [vmem:[%s6 + $0x68] sm:$0xff]
      %v774 = vld [vmem:[%s6 + $0x70] sm:$0xff]
      %v775 = vld [vmem:[%s6 + $0x78] sm:$0xff]
      %v776 = vld [vmem:[%s7] sm:$0x1]
      %v778 = vlaneseq
      %v779 = vshrl.u32 %v778, 7
      %v780 = vsub.s32 0, %v779
      %v781 = vrot.slane %v776, %v780
      %783 = vmatprep.subr.mxu0 0.0
      %784 = vmatpush1.msra.mxu0 %v775
      %785 = vmatprep.subr.mxu0 0.0
      %786 = vmatpush1.msra.mxu0 %v774
      %787 = vmatprep.subr.mxu0 0.0
      %788 = vmatpush1.msra.mxu0 %v773
      %789 = vmatprep.subr.mxu0 0.0
      %790 = vmatpush1.msra.mxu0 %v772
      %791 = vmatprep.subr.mxu0 0.0
      %792 = vmatpush1.msra.mxu0 %v771
      %793 = vmatprep.subr.mxu0 0.0
      %794 = vmatpush1.msra.mxu0 %v770
      %795 = vmatprep.subr.mxu0 0.0
      %796 = vmatpush1.msra.mxu0 %v769
      %797 = vmatprep.subr.mxu0 0.0
      %798 = vmatpush1.msra.mxu0 %v768
      %799 = vmatprep.subr.mxu0 0.0
      %800 = vmatpush1.msra.mxu0 %v767
      %801 = vmatprep.subr.mxu0 0.0
      %802 = vmatpush1.msra.mxu0 %v766
      %803 = vmatprep.subr.mxu0 0.0
      %804 = vmatpush1.msra.mxu0 %v765
      %805 = vmatprep.subr.mxu0 0.0
      %806 = vmatpush1.msra.mxu0 %v764
      %807 = vmatprep.subr.mxu0 0.0
      %808 = vmatpush1.msra.mxu0 %v763
      %809 = vmatprep.subr.mxu0 0.0
      %810 = vmatpush1.msra.mxu0 %v762
      %811 = vmatprep.subr.mxu0 0.0
      %812 = vmatpush1.msra.mxu0 %v761
      %813 = vmatprep.subr.mxu0 0.0
      %814 = vmatpush1.msra.mxu0 %v760
      %815 = vmatprep.subr.mxu0 0.0
      %816 = vmatpush2.msra.mxu0 0.0
      %817 = vmatprep.subr.mxu0 0.0
      %818 = vmatpush2.msra.mxu0 0.0
      %819 = vmatprep.subr.mxu0 0.0
      %820 = vmatpush2.msra.mxu0 0.0
      %821 = vmatprep.subr.mxu0 0.0
      %822 = vmatpush2.msra.mxu0 0.0
      %823 = vmatprep.subr.mxu0 0.0
      %824 = vmatpush2.msra.mxu0 0.0
      %825 = vmatprep.subr.mxu0 0.0
      %826 = vmatpush2.msra.mxu0 0.0
      %827 = vmatprep.subr.mxu0 0.0
      %828 = vmatpush2.msra.mxu0 0.0
      %829 = vmatprep.subr.mxu0 0.0
      %830 = vmatpush2.msra.mxu0 0.0
      %831 = vmatprep.subr.mxu0 0.0
      %832 = vmatpush2.msra.mxu0 0.0
      %833 = vmatprep.subr.mxu0 0.0
      %834 = vmatpush2.msra.mxu0 0.0
      %835 = vmatprep.subr.mxu0 0.0
      %836 = vmatpush2.msra.mxu0 0.0
      %837 = vmatprep.subr.mxu0 0.0
      %838 = vmatpush2.msra.mxu0 0.0
      %839 = vmatprep.subr.mxu0 0.0
      %840 = vmatpush2.msra.mxu0 0.0
      %841 = vmatprep.subr.mxu0 0.0
      %842 = vmatpush2.msra.mxu0 0.0
      %843 = vmatprep.subr.mxu0 0.0
      %844 = vmatpush2.msra.mxu0 0.0
      %845 = vmatprep.subr.mxu0 0.0
      %846 = vmatpush2.msra.mxu0 0.0
      %847 = vmatprep.mubr.f32.mxu0 0.0
      %848 = vmatmul.mubr.f32.gmra.mxu0 %v740
      %v849 = vpop.f32.mrf.mxu0
      %v850 = vadd.f32 %v781, %v849
      %v851 = vpop.f32.mrf.mxu0
      %852 = vmatprep.mubr.f32.mxu0 0.0
      %853 = vmatmul.mubr.f32.gmra.mxu0 %v741
      %v854 = vpop.f32.mrf.mxu0
      %v855 = vadd.f32 %v781, %v854
      %v856 = vpop.f32.mrf.mxu0
      %857 = vmatprep.mubr.f32.mxu0 0.0
      %858 = vmatmul.mubr.f32.gmra.mxu0 %v742
      %v859 = vpop.f32.mrf.mxu0
      %v860 = vadd.f32 %v781, %v859
      %v861 = vpop.f32.mrf.mxu0
      %862 = vmatprep.mubr.f32.mxu0 0.0
      %863 = vmatmul.mubr.f32.gmra.mxu0 %v743
      %v864 = vpop.f32.mrf.mxu0
      %v865 = vadd.f32 %v781, %v864
      %v866 = vpop.f32.mrf.mxu0
      %867 = vmatprep.mubr.f32.mxu0 0.0
      %868 = vmatmul.mubr.f32.gmra.mxu0 %v744
      %v869 = vpop.f32.mrf.mxu0
      %v870 = vadd.f32 %v781, %v869
      %v871 = vpop.f32.mrf.mxu0
      %872 = vmatprep.mubr.f32.mxu0 0.0
      %873 = vmatmul.mubr.f32.gmra.mxu0 %v745
      %v874 = vpop.f32.mrf.mxu0
      %v875 = vadd.f32 %v781, %v874
      %v876 = vpop.f32.mrf.mxu0
      %877 = vmatprep.mubr.f32.mxu0 0.0
      %878 = vmatmul.mubr.f32.gmra.mxu0 %v746
      %v879 = vpop.f32.mrf.mxu0
      %v880 = vadd.f32 %v781, %v879
      %v881 = vpop.f32.mrf.mxu0
      %882 = vmatprep.mubr.f32.mxu0 0.0
      %883 = vmatmul.mubr.f32.gmra.mxu0 %v747
      %v884 = vpop.f32.mrf.mxu0
      %v885 = vadd.f32 %v781, %v884
      %v886 = vpop.f32.mrf.mxu0
      %887 = vmatprep.mubr.f32.mxu0 0.0
      %888 = vmatmul.mubr.f32.gmra.mxu0 %v748
      %v889 = vpop.f32.mrf.mxu0
      %v890 = vadd.f32 %v781, %v889
      %v891 = vpop.f32.mrf.mxu0
      %892 = vmatprep.mubr.f32.mxu0 0.0
      %893 = vmatmul.mubr.f32.gmra.mxu0 %v749
      %v894 = vpop.f32.mrf.mxu0
      %v895 = vadd.f32 %v781, %v894
      %v896 = vpop.f32.mrf.mxu0
      %897 = vmatprep.mubr.f32.mxu0 0.0
      %898 = vmatmul.mubr.f32.gmra.mxu0 %v750
      %v899 = vpop.f32.mrf.mxu0
      %v900 = vadd.f32 %v781, %v899
      %v901 = vpop.f32.mrf.mxu0
      %902 = vmatprep.mubr.f32.mxu0 0.0
      %903 = vmatmul.mubr.f32.gmra.mxu0 %v751
      %v904 = vpop.f32.mrf.mxu0
      %v905 = vadd.f32 %v781, %v904
      %v906 = vpop.f32.mrf.mxu0
      %907 = vmatprep.mubr.f32.mxu0 0.0
      %908 = vmatmul.mubr.f32.gmra.mxu0 %v752
      %v909 = vpop.f32.mrf.mxu0
      %v910 = vadd.f32 %v781, %v909
      %v911 = vpop.f32.mrf.mxu0
      %912 = vmatprep.mubr.f32.mxu0 0.0
      %913 = vmatmul.mubr.f32.gmra.mxu0 %v753
      %v914 = vpop.f32.mrf.mxu0
      %v915 = vadd.f32 %v781, %v914
      %v916 = vpop.f32.mrf.mxu0
      %917 = vmatprep.mubr.f32.mxu0 0.0
      %918 = vmatmul.mubr.f32.gmra.mxu0 %v754
      %v919 = vpop.f32.mrf.mxu0
      %v920 = vadd.f32 %v781, %v919
      %v921 = vpop.f32.mrf.mxu0
      %922 = vmatprep.mubr.f32.mxu0 0.0
      %923 = vmatmul.mubr.f32.gmra.mxu0 %v755
      %v924 = vpop.f32.mrf.mxu0
      %v925 = vadd.f32 %v781, %v924
      %v926 = vpop.f32.mrf.mxu0
      %927 = vmatprep.mubr.f32.mxu0 0.0
      %928 = vmatmul.mubr.f32.gmra.mxu0 %v756
      %v929 = vpop.f32.mrf.mxu0
      %v930 = vadd.f32 %v781, %v929
      %v931 = vpop.f32.mrf.mxu0
      %932 = vmatprep.mubr.f32.mxu0 0.0
      %933 = vmatmul.mubr.f32.gmra.mxu0 %v757
      %v934 = vpop.f32.mrf.mxu0
      %v935 = vadd.f32 %v781, %v934
      %v936 = vpop.f32.mrf.mxu0
      %937 = vmatprep.mubr.f32.mxu0 0.0
      %938 = vmatmul.mubr.f32.gmra.mxu0 %v758
      %v939 = vpop.f32.mrf.mxu0
      %v940 = vadd.f32 %v781, %v939
      %v941 = vpop.f32.mrf.mxu0
      %942 = vmatprep.mubr.f32.mxu0 0.0
      %943 = vmatmul.mubr.f32.gmra.mxu0 %v759
      %v944 = vpop.f32.mrf.mxu0
      %v945 = vadd.f32 %v781, %v944
      %v946 = vpop.f32.mrf.mxu0
      %947 = vdwg.mxu0
      %v948 = vmax.f32 %v850, 0.0
      %v949 = vmax.f32 %v855, 0.0
      %v950 = vmax.f32 %v860, 0.0
      %v951 = vmax.f32 %v865, 0.0
      %v952 = vmax.f32 %v870, 0.0
      %v953 = vmax.f32 %v875, 0.0
      %v954 = vmax.f32 %v880, 0.0
      %v955 = vmax.f32 %v885, 0.0
      %v956 = vmax.f32 %v890, 0.0
      %v957 = vmax.f32 %v895, 0.0
      %v958 = vmax.f32 %v900, 0.0
      %v959 = vmax.f32 %v905, 0.0
      %v960 = vmax.f32 %v910, 0.0
      %v961 = vmax.f32 %v915, 0.0
      %v962 = vmax.f32 %v920, 0.0
      %v963 = vmax.f32 %v925, 0.0
      %v964 = vmax.f32 %v930, 0.0
      %v965 = vmax.f32 %v935, 0.0
      %v966 = vmax.f32 %v940, 0.0
      %v967 = vmax.f32 %v945, 0.0
      %v968 = vld [vmem:[%s2] sm:$0xff]
      %v969 = vld [vmem:[%s2 + $0x8] sm:$0xff]
      %v970 = vld [vmem:[%s2 + $0x10] sm:$0xff]
      %v971 = vld [vmem:[%s2 + $0x18] sm:$0xff]
      %vm972 = vcmask 261120
      %v974 = vsel %vm972, %v969, 0
      %v977 = vsel %vm972, %v971, 0
      %979 = vmatprep.subr.mxu0 0.0
      %v980 = vand.u32 %v963, 4294901760
      %981 = vmatpush1.msra.mxu0 %v980
      %982 = vmatprep.subr.mxu0 0.0
      %v983 = vand.u32 %v962, 4294901760
      %984 = vmatpush1.msra.mxu0 %v983
      %985 = vmatprep.subr.mxu0 0.0
      %v986 = vand.u32 %v961, 4294901760
      %987 = vmatpush1.msra.mxu0 %v986
      %988 = vmatprep.subr.mxu0 0.0
      %v989 = vand.u32 %v960, 4294901760
      %990 = vmatpush1.msra.mxu0 %v989
      %991 = vmatprep.subr.mxu0 0.0
      %v992 = vand.u32 %v959, 4294901760
      %993 = vmatpush1.msra.mxu0 %v992
      %994 = vmatprep.subr.mxu0 0.0
      %v995 = vand.u32 %v958, 4294901760
      %996 = vmatpush1.msra.mxu0 %v995
      %997 = vmatprep.subr.mxu0 0.0
      %v998 = vand.u32 %v957, 4294901760
      %999 = vmatpush1.msra.mxu0 %v998
      %1000 = vmatprep.subr.mxu0 0.0
      %v1001 = vand.u32 %v956, 4294901760
      %1002 = vmatpush1.msra.mxu0 %v1001
      %1003 = vmatprep.subr.mxu0 0.0
      %v1004 = vand.u32 %v955, 4294901760
      %1005 = vmatpush1.msra.mxu0 %v1004
      %1006 = vmatprep.subr.mxu0 0.0
      %v1007 = vand.u32 %v954, 4294901760
      %1008 = vmatpush1.msra.mxu0 %v1007
      %1009 = vmatprep.subr.mxu0 0.0
      %v1010 = vand.u32 %v953, 4294901760
      %1011 = vmatpush1.msra.mxu0 %v1010
      %1012 = vmatprep.subr.mxu0 0.0
      %v1013 = vand.u32 %v952, 4294901760
      %1014 = vmatpush1.msra.mxu0 %v1013
      %1015 = vmatprep.subr.mxu0 0.0
      %v1016 = vand.u32 %v951, 4294901760
      %1017 = vmatpush1.msra.mxu0 %v1016
      %1018 = vmatprep.subr.mxu0 0.0
      %v1019 = vand.u32 %v950, 4294901760
      %1020 = vmatpush1.msra.mxu0 %v1019
      %1021 = vmatprep.subr.mxu0 0.0
      %v1022 = vand.u32 %v949, 4294901760
      %1023 = vmatpush1.msra.mxu0 %v1022
      %1024 = vmatprep.subr.mxu0 0.0
      %v1025 = vand.u32 %v948, 4294901760
      %1026 = vmatpush1.msra.mxu0 %v1025
      %1027 = vmatprep.subr.mxu0 0.0
      %1028 = vmatpush2.msra.mxu0 0.0
      %1029 = vmatprep.subr.mxu0 0.0
      %1030 = vmatpush2.msra.mxu0 0.0
      %1031 = vmatprep.subr.mxu0 0.0
      %1032 = vmatpush2.msra.mxu0 0.0
      %1033 = vmatprep.subr.mxu0 0.0
      %1034 = vmatpush2.msra.mxu0 0.0
      %1035 = vmatprep.subr.mxu0 0.0
      %1036 = vmatpush2.msra.mxu0 0.0
      %1037 = vmatprep.subr.mxu0 0.0
      %1038 = vmatpush2.msra.mxu0 0.0
      %1039 = vmatprep.subr.mxu0 0.0
      %1040 = vmatpush2.msra.mxu0 0.0
      %1041 = vmatprep.subr.mxu0 0.0
      %1042 = vmatpush2.msra.mxu0 0.0
      %1043 = vmatprep.subr.mxu0 0.0
      %1044 = vmatpush2.msra.mxu0 0.0
      %1045 = vmatprep.subr.mxu0 0.0
      %1046 = vmatpush2.msra.mxu0 0.0
      %1047 = vmatprep.subr.mxu0 0.0
      %1048 = vmatpush2.msra.mxu0 0.0
      %1049 = vmatprep.subr.mxu0 0.0
      %1050 = vmatpush2.msra.mxu0 0.0
      %1051 = vmatprep.subr.mxu0 0.0
      %v1052 = vand.u32 %v967, 4294901760
      %1053 = vmatpush2.msra.mxu0 %v1052
      %1054 = vmatprep.subr.mxu0 0.0
      %v1055 = vand.u32 %v966, 4294901760
      %1056 = vmatpush2.msra.mxu0 %v1055
      %1057 = vmatprep.subr.mxu0 0.0
      %v1058 = vand.u32 %v965, 4294901760
      %1059 = vmatpush2.msra.mxu0 %v1058
      %1060 = vmatprep.subr.mxu0 0.0
      %v1061 = vand.u32 %v964, 4294901760
      %1062 = vmatpush2.msra.mxu0 %v1061
      %v1063 = vand.u32 %v974, 4294901760
      %v1064 = vsub.f32 %v974, %v1063
      %v1065 = vand.u32 %v1064, 4294901760
      %v1066 = vsub.f32 %v1064, %v1065
      %v1067 = vand.u32 %v1066, 4294901760
      %1068 = vmatprep.mubr.f32.mxu0 %v1067
      %v1069 = vand.u32 %v968, 4294901760
      %v1070 = vsub.f32 %v968, %v1069
      %v1071 = vand.u32 %v1070, 4294901760
      %v1072 = vsub.f32 %v1070, %v1071
      %v1073 = vand.u32 %v1072, 4294901760
      %1074 = vmatmul.mubr.f32.gmra.mxu0 %v1073
      %v1075 = vpop.f32.mrf.mxu0
      %v1076 = vadd.f32 0.0, %v1075
      %v1077 = vpop.f32.mrf.mxu0
      %v1078 = vand.u32 %v977, 4294901760
      %v1079 = vsub.f32 %v977, %v1078
      %v1080 = vand.u32 %v1079, 4294901760
      %v1081 = vsub.f32 %v1079, %v1080
      %v1082 = vand.u32 %v1081, 4294901760
      %1083 = vmatprep.mubr.f32.mxu0 %v1082
      %v1084 = vand.u32 %v970, 4294901760
      %v1085 = vsub.f32 %v970, %v1084
      %v1086 = vand.u32 %v1085, 4294901760
      %v1087 = vsub.f32 %v1085, %v1086
      %v1088 = vand.u32 %v1087, 4294901760
      %1089 = vmatmul.mubr.f32.gmra.mxu0 %v1088
      %v1090 = vpop.f32.mrf.mxu0
      %v1091 = vadd.f32 0.0, %v1090
      %v1092 = vpop.f32.mrf.mxu0
      %1093 = vdwg.mxu0
      %1094 = vmatprep.subr.mxu0 0.0
      %v1095 = vand.u32 %v963, 4294901760
      %v1096 = vsub.f32 %v963, %v1095
      %v1097 = vand.u32 %v1096, 4294901760
      %v1098 = vsub.f32 %v1096, %v1097
      %v1099 = vand.u32 %v1098, 4294901760
      %1100 = vmatpush1.msra.mxu0 %v1099
      %1101 = vmatprep.subr.mxu0 0.0
      %v1102 = vand.u32 %v962, 4294901760
      %v1103 = vsub.f32 %v962, %v1102
      %v1104 = vand.u32 %v1103, 4294901760
      %v1105 = vsub.f32 %v1103, %v1104
      %v1106 = vand.u32 %v1105, 4294901760
      %1107 = vmatpush1.msra.mxu0 %v1106
      %1108 = vmatprep.subr.mxu0 0.0
      %v1109 = vand.u32 %v961, 4294901760
      %v1110 = vsub.f32 %v961, %v1109
      %v1111 = vand.u32 %v1110, 4294901760
      %v1112 = vsub.f32 %v1110, %v1111
      %v1113 = vand.u32 %v1112, 4294901760
      %1114 = vmatpush1.msra.mxu0 %v1113
      %1115 = vmatprep.subr.mxu0 0.0
      %v1116 = vand.u32 %v960, 4294901760
      %v1117 = vsub.f32 %v960, %v1116
      %v1118 = vand.u32 %v1117, 4294901760
      %v1119 = vsub.f32 %v1117, %v1118
      %v1120 = vand.u32 %v1119, 4294901760
      %1121 = vmatpush1.msra.mxu0 %v1120
      %1122 = vmatprep.subr.mxu0 0.0
      %v1123 = vand.u32 %v959, 4294901760
      %v1124 = vsub.f32 %v959, %v1123
      %v1125 = vand.u32 %v1124, 4294901760
      %v1126 = vsub.f32 %v1124, %v1125
      %v1127 = vand.u32 %v1126, 4294901760
      %1128 = vmatpush1.msra.mxu0 %v1127
      %1129 = vmatprep.subr.mxu0 0.0
      %v1130 = vand.u32 %v958, 4294901760
      %v1131 = vsub.f32 %v958, %v1130
      %v1132 = vand.u32 %v1131, 4294901760
      %v1133 = vsub.f32 %v1131, %v1132
      %v1134 = vand.u32 %v1133, 4294901760
      %1135 = vmatpush1.msra.mxu0 %v1134
      %1136 = vmatprep.subr.mxu0 0.0
      %v1137 = vand.u32 %v957, 4294901760
      %v1138 = vsub.f32 %v957, %v1137
      %v1139 = vand.u32 %v1138, 4294901760
      %v1140 = vsub.f32 %v1138, %v1139
      %v1141 = vand.u32 %v1140, 4294901760
      %1142 = vmatpush1.msra.mxu0 %v1141
      %1143 = vmatprep.subr.mxu0 0.0
      %v1144 = vand.u32 %v956, 4294901760
      %v1145 = vsub.f32 %v956, %v1144
      %v1146 = vand.u32 %v1145, 4294901760
      %v1147 = vsub.f32 %v1145, %v1146
      %v1148 = vand.u32 %v1147, 4294901760
      %1149 = vmatpush1.msra.mxu0 %v1148
      %1150 = vmatprep.subr.mxu0 0.0
      %v1151 = vand.u32 %v955, 4294901760
      %v1152 = vsub.f32 %v955, %v1151
      %v1153 = vand.u32 %v1152, 4294901760
      %v1154 = vsub.f32 %v1152, %v1153
      %v1155 = vand.u32 %v1154, 4294901760
      %1156 = vmatpush1.msra.mxu0 %v1155
      %1157 = vmatprep.subr.mxu0 0.0
      %v1158 = vand.u32 %v954, 4294901760
      %v1159 = vsub.f32 %v954, %v1158
      %v1160 = vand.u32 %v1159, 4294901760
      %v1161 = vsub.f32 %v1159, %v1160
      %v1162 = vand.u32 %v1161, 4294901760
      %1163 = vmatpush1.msra.mxu0 %v1162
      %1164 = vmatprep.subr.mxu0 0.0
      %v1165 = vand.u32 %v953, 4294901760
      %v1166 = vsub.f32 %v953, %v1165
      %v1167 = vand.u32 %v1166, 4294901760
      %v1168 = vsub.f32 %v1166, %v1167
      %v1169 = vand.u32 %v1168, 4294901760
      %1170 = vmatpush1.msra.mxu0 %v1169
      %1171 = vmatprep.subr.mxu0 0.0
      %v1172 = vand.u32 %v952, 4294901760
      %v1173 = vsub.f32 %v952, %v1172
      %v1174 = vand.u32 %v1173, 4294901760
      %v1175 = vsub.f32 %v1173, %v1174
      %v1176 = vand.u32 %v1175, 4294901760
      %1177 = vmatpush1.msra.mxu0 %v1176
      %1178 = vmatprep.subr.mxu0 0.0
      %v1179 = vand.u32 %v951, 4294901760
      %v1180 = vsub.f32 %v951, %v1179
      %v1181 = vand.u32 %v1180, 4294901760
      %v1182 = vsub.f32 %v1180, %v1181
      %v1183 = vand.u32 %v1182, 4294901760
      %1184 = vmatpush1.msra.mxu0 %v1183
      %1185 = vmatprep.subr.mxu0 0.0
      %v1186 = vand.u32 %v950, 4294901760
      %v1187 = vsub.f32 %v950, %v1186
      %v1188 = vand.u32 %v1187, 4294901760
      %v1189 = vsub.f32 %v1187, %v1188
      %v1190 = vand.u32 %v1189, 4294901760
      %1191 = vmatpush1.msra.mxu0 %v1190
      %1192 = vmatprep.subr.mxu0 0.0
      %v1193 = vand.u32 %v949, 4294901760
      %v1194 = vsub.f32 %v949, %v1193
      %v1195 = vand.u32 %v1194, 4294901760
      %v1196 = vsub.f32 %v1194, %v1195
      %v1197 = vand.u32 %v1196, 4294901760
      %1198 = vmatpush1.msra.mxu0 %v1197
      %1199 = vmatprep.subr.mxu0 0.0
      %v1200 = vand.u32 %v948, 4294901760
      %v1201 = vsub.f32 %v948, %v1200
      %v1202 = vand.u32 %v1201, 4294901760
      %v1203 = vsub.f32 %v1201, %v1202
      %v1204 = vand.u32 %v1203, 4294901760
      %1205 = vmatpush1.msra.mxu0 %v1204
      %1206 = vmatprep.subr.mxu0 0.0
      %1207 = vmatpush2.msra.mxu0 0.0
      %1208 = vmatprep.subr.mxu0 0.0
      %1209 = vmatpush2.msra.mxu0 0.0
      %1210 = vmatprep.subr.mxu0 0.0
      %1211 = vmatpush2.msra.mxu0 0.0
      %1212 = vmatprep.subr.mxu0 0.0
      %1213 = vmatpush2.msra.mxu0 0.0
      %1214 = vmatprep.subr.mxu0 0.0
      %1215 = vmatpush2.msra.mxu0 0.0
      %1216 = vmatprep.subr.mxu0 0.0
      %1217 = vmatpush2.msra.mxu0 0.0
      %1218 = vmatprep.subr.mxu0 0.0
      %1219 = vmatpush2.msra.mxu0 0.0
      %1220 = vmatprep.subr.mxu0 0.0
      %1221 = vmatpush2.msra.mxu0 0.0
      %1222 = vmatprep.subr.mxu0 0.0
      %1223 = vmatpush2.msra.mxu0 0.0
      %1224 = vmatprep.subr.mxu0 0.0
      %1225 = vmatpush2.msra.mxu0 0.0
      %1226 = vmatprep.subr.mxu0 0.0
      %1227 = vmatpush2.msra.mxu0 0.0
      %1228 = vmatprep.subr.mxu0 0.0
      %1229 = vmatpush2.msra.mxu0 0.0
      %1230 = vmatprep.subr.mxu0 0.0
      %v1231 = vand.u32 %v967, 4294901760
      %v1232 = vsub.f32 %v967, %v1231
      %v1233 = vand.u32 %v1232, 4294901760
      %v1234 = vsub.f32 %v1232, %v1233
      %v1235 = vand.u32 %v1234, 4294901760
      %1236 = vmatpush2.msra.mxu0 %v1235
      %1237 = vmatprep.subr.mxu0 0.0
      %v1238 = vand.u32 %v966, 4294901760
      %v1239 = vsub.f32 %v966, %v1238
      %v1240 = vand.u32 %v1239, 4294901760
      %v1241 = vsub.f32 %v1239, %v1240
      %v1242 = vand.u32 %v1241, 4294901760
      %1243 = vmatpush2.msra.mxu0 %v1242
      %1244 = vmatprep.subr.mxu0 0.0
      %v1245 = vand.u32 %v965, 4294901760
      %v1246 = vsub.f32 %v965, %v1245
      %v1247 = vand.u32 %v1246, 4294901760
      %v1248 = vsub.f32 %v1246, %v1247
      %v1249 = vand.u32 %v1248, 4294901760
      %1250 = vmatpush2.msra.mxu0 %v1249
      %1251 = vmatprep.subr.mxu0 0.0
      %v1252 = vand.u32 %v964, 4294901760
      %v1253 = vsub.f32 %v964, %v1252
      %v1254 = vand.u32 %v1253, 4294901760
      %v1255 = vsub.f32 %v1253, %v1254
      %v1256 = vand.u32 %v1255, 4294901760
      %1257 = vmatpush2.msra.mxu0 %v1256
      %v1258 = vand.u32 %v974, 4294901760
      %1259 = vmatprep.mubr.f32.mxu0 %v1258
      %v1260 = vand.u32 %v968, 4294901760
      %1261 = vmatmul.mubr.f32.gmra.mxu0 %v1260
      %v1262 = vpop.f32.mrf.mxu0
      %v1263 = vadd.f32 %v1076, %v1262
      %v1264 = vpop.f32.mrf.mxu0
      %v1265 = vand.u32 %v977, 4294901760
      %1266 = vmatprep.mubr.f32.mxu0 %v1265
      %v1267 = vand.u32 %v970, 4294901760
      %1268 = vmatmul.mubr.f32.gmra.mxu0 %v1267
      %v1269 = vpop.f32.mrf.mxu0
      %v1270 = vadd.f32 %v1091, %v1269
      %v1271 = vpop.f32.mrf.mxu0
      %1272 = vdwg.mxu0
      %1273 = vmatprep.subr.mxu0 0.0
      %v1274 = vand.u32 %v963, 4294901760
      %v1275 = vsub.f32 %v963, %v1274
      %1276 = vmatpush1.msra.mxu0 %v1275
      %1277 = vmatprep.subr.mxu0 0.0
      %v1278 = vand.u32 %v962, 4294901760
      %v1279 = vsub.f32 %v962, %v1278
      %1280 = vmatpush1.msra.mxu0 %v1279
      %1281 = vmatprep.subr.mxu0 0.0
      %v1282 = vand.u32 %v961, 4294901760
      %v1283 = vsub.f32 %v961, %v1282
      %1284 = vmatpush1.msra.mxu0 %v1283
      %1285 = vmatprep.subr.mxu0 0.0
      %v1286 = vand.u32 %v960, 4294901760
      %v1287 = vsub.f32 %v960, %v1286
      %1288 = vmatpush1.msra.mxu0 %v1287
      %1289 = vmatprep.subr.mxu0 0.0
      %v1290 = vand.u32 %v959, 4294901760
      %v1291 = vsub.f32 %v959, %v1290
      %1292 = vmatpush1.msra.mxu0 %v1291
      %1293 = vmatprep.subr.mxu0 0.0
      %v1294 = vand.u32 %v958, 4294901760
      %v1295 = vsub.f32 %v958, %v1294
      %1296 = vmatpush1.msra.mxu0 %v1295
      %1297 = vmatprep.subr.mxu0 0.0
      %v1298 = vand.u32 %v957, 4294901760
      %v1299 = vsub.f32 %v957, %v1298
      %1300 = vmatpush1.msra.mxu0 %v1299
      %1301 = vmatprep.subr.mxu0 0.0
      %v1302 = vand.u32 %v956, 4294901760
      %v1303 = vsub.f32 %v956, %v1302
      %1304 = vmatpush1.msra.mxu0 %v1303
      %1305 = vmatprep.subr.mxu0 0.0
      %v1306 = vand.u32 %v955, 4294901760
      %v1307 = vsub.f32 %v955, %v1306
      %1308 = vmatpush1.msra.mxu0 %v1307
      %1309 = vmatprep.subr.mxu0 0.0
      %v1310 = vand.u32 %v954, 4294901760
      %v1311 = vsub.f32 %v954, %v1310
      %1312 = vmatpush1.msra.mxu0 %v1311
      %1313 = vmatprep.subr.mxu0 0.0
      %v1314 = vand.u32 %v953, 4294901760
      %v1315 = vsub.f32 %v953, %v1314
      %1316 = vmatpush1.msra.mxu0 %v1315
      %1317 = vmatprep.subr.mxu0 0.0
      %v1318 = vand.u32 %v952, 4294901760
      %v1319 = vsub.f32 %v952, %v1318
      %1320 = vmatpush1.msra.mxu0 %v1319
      %1321 = vmatprep.subr.mxu0 0.0
      %v1322 = vand.u32 %v951, 4294901760
      %v1323 = vsub.f32 %v951, %v1322
      %1324 = vmatpush1.msra.mxu0 %v1323
      %1325 = vmatprep.subr.mxu0 0.0
      %v1326 = vand.u32 %v950, 4294901760
      %v1327 = vsub.f32 %v950, %v1326
      %1328 = vmatpush1.msra.mxu0 %v1327
      %1329 = vmatprep.subr.mxu0 0.0
      %v1330 = vand.u32 %v949, 4294901760
      %v1331 = vsub.f32 %v949, %v1330
      %1332 = vmatpush1.msra.mxu0 %v1331
      %1333 = vmatprep.subr.mxu0 0.0
      %v1334 = vand.u32 %v948, 4294901760
      %v1335 = vsub.f32 %v948, %v1334
      %1336 = vmatpush1.msra.mxu0 %v1335
      %1337 = vmatprep.subr.mxu0 0.0
      %1338 = vmatpush2.msra.mxu0 0.0
      %1339 = vmatprep.subr.mxu0 0.0
      %1340 = vmatpush2.msra.mxu0 0.0
      %1341 = vmatprep.subr.mxu0 0.0
      %1342 = vmatpush2.msra.mxu0 0.0
      %1343 = vmatprep.subr.mxu0 0.0
      %1344 = vmatpush2.msra.mxu0 0.0
      %1345 = vmatprep.subr.mxu0 0.0
      %1346 = vmatpush2.msra.mxu0 0.0
      %1347 = vmatprep.subr.mxu0 0.0
      %1348 = vmatpush2.msra.mxu0 0.0
      %1349 = vmatprep.subr.mxu0 0.0
      %1350 = vmatpush2.msra.mxu0 0.0
      %1351 = vmatprep.subr.mxu0 0.0
      %1352 = vmatpush2.msra.mxu0 0.0
      %1353 = vmatprep.subr.mxu0 0.0
      %1354 = vmatpush2.msra.mxu0 0.0
      %1355 = vmatprep.subr.mxu0 0.0
      %1356 = vmatpush2.msra.mxu0 0.0
      %1357 = vmatprep.subr.mxu0 0.0
      %1358 = vmatpush2.msra.mxu0 0.0
      %1359 = vmatprep.subr.mxu0 0.0
      %1360 = vmatpush2.msra.mxu0 0.0
      %1361 = vmatprep.subr.mxu0 0.0
      %v1362 = vand.u32 %v967, 4294901760
      %v1363 = vsub.f32 %v967, %v1362
      %1364 = vmatpush2.msra.mxu0 %v1363
      %1365 = vmatprep.subr.mxu0 0.0
      %v1366 = vand.u32 %v966, 4294901760
      %v1367 = vsub.f32 %v966, %v1366
      %1368 = vmatpush2.msra.mxu0 %v1367
      %1369 = vmatprep.subr.mxu0 0.0
      %v1370 = vand.u32 %v965, 4294901760
      %v1371 = vsub.f32 %v965, %v1370
      %1372 = vmatpush2.msra.mxu0 %v1371
      %1373 = vmatprep.subr.mxu0 0.0
      %v1374 = vand.u32 %v964, 4294901760
      %v1375 = vsub.f32 %v964, %v1374
      %1376 = vmatpush2.msra.mxu0 %v1375
      %v1377 = vand.u32 %v974, 4294901760
      %v1378 = vsub.f32 %v974, %v1377
      %1379 = vmatprep.mubr.f32.mxu0 %v1378
      %v1380 = vand.u32 %v968, 4294901760
      %v1381 = vsub.f32 %v968, %v1380
      %1382 = vmatmul.mubr.f32.gmra.mxu0 %v1381
      %v1383 = vpop.f32.mrf.mxu0
      %v1384 = vadd.f32 %v1263, %v1383
      %v1385 = vpop.f32.mrf.mxu0
      %v1386 = vand.u32 %v977, 4294901760
      %v1387 = vsub.f32 %v977, %v1386
      %1388 = vmatprep.mubr.f32.mxu0 %v1387
      %v1389 = vand.u32 %v970, 4294901760
      %v1390 = vsub.f32 %v970, %v1389
      %1391 = vmatmul.mubr.f32.gmra.mxu0 %v1390
      %v1392 = vpop.f32.mrf.mxu0
      %v1393 = vadd.f32 %v1270, %v1392
      %v1394 = vpop.f32.mrf.mxu0
      %1395 = vdwg.mxu0
      %1396 = vmatprep.subr.mxu0 0.0
      %v1397 = vand.u32 %v963, 4294901760
      %1398 = vmatpush1.msra.mxu0 %v1397
      %1399 = vmatprep.subr.mxu0 0.0
      %v1400 = vand.u32 %v962, 4294901760
      %1401 = vmatpush1.msra.mxu0 %v1400
      %1402 = vmatprep.subr.mxu0 0.0
      %v1403 = vand.u32 %v961, 4294901760
      %1404 = vmatpush1.msra.mxu0 %v1403
      %1405 = vmatprep.subr.mxu0 0.0
      %v1406 = vand.u32 %v960, 4294901760
      %1407 = vmatpush1.msra.mxu0 %v1406
      %1408 = vmatprep.subr.mxu0 0.0
      %v1409 = vand.u32 %v959, 4294901760
      %1410 = vmatpush1.msra.mxu0 %v1409
      %1411 = vmatprep.subr.mxu0 0.0
      %v1412 = vand.u32 %v958, 4294901760
      %1413 = vmatpush1.msra.mxu0 %v1412
      %1414 = vmatprep.subr.mxu0 0.0
      %v1415 = vand.u32 %v957, 4294901760
      %1416 = vmatpush1.msra.mxu0 %v1415
      %1417 = vmatprep.subr.mxu0 0.0
      %v1418 = vand.u32 %v956, 4294901760
      %1419 = vmatpush1.msra.mxu0 %v1418
      %1420 = vmatprep.subr.mxu0 0.0
      %v1421 = vand.u32 %v955, 4294901760
      %1422 = vmatpush1.msra.mxu0 %v1421
      %1423 = vmatprep.subr.mxu0 0.0
      %v1424 = vand.u32 %v954, 4294901760
      %1425 = vmatpush1.msra.mxu0 %v1424
      %1426 = vmatprep.subr.mxu0 0.0
      %v1427 = vand.u32 %v953, 4294901760
      %1428 = vmatpush1.msra.mxu0 %v1427
      %1429 = vmatprep.subr.mxu0 0.0
      %v1430 = vand.u32 %v952, 4294901760
      %1431 = vmatpush1.msra.mxu0 %v1430
      %1432 = vmatprep.subr.mxu0 0.0
      %v1433 = vand.u32 %v951, 4294901760
      %1434 = vmatpush1.msra.mxu0 %v1433
      %1435 = vmatprep.subr.mxu0 0.0
      %v1436 = vand.u32 %v950, 4294901760
      %1437 = vmatpush1.msra.mxu0 %v1436
      %1438 = vmatprep.subr.mxu0 0.0
      %v1439 = vand.u32 %v949, 4294901760
      %1440 = vmatpush1.msra.mxu0 %v1439
      %1441 = vmatprep.subr.mxu0 0.0
      %v1442 = vand.u32 %v948, 4294901760
      %1443 = vmatpush1.msra.mxu0 %v1442
      %1444 = vmatprep.subr.mxu0 0.0
      %1445 = vmatpush2.msra.mxu0 0.0
      %1446 = vmatprep.subr.mxu0 0.0
      %1447 = vmatpush2.msra.mxu0 0.0
      %1448 = vmatprep.subr.mxu0 0.0
      %1449 = vmatpush2.msra.mxu0 0.0
      %1450 = vmatprep.subr.mxu0 0.0
      %1451 = vmatpush2.msra.mxu0 0.0
      %1452 = vmatprep.subr.mxu0 0.0
      %1453 = vmatpush2.msra.mxu0 0.0
      %1454 = vmatprep.subr.mxu0 0.0
      %1455 = vmatpush2.msra.mxu0 0.0
      %1456 = vmatprep.subr.mxu0 0.0
      %1457 = vmatpush2.msra.mxu0 0.0
      %1458 = vmatprep.subr.mxu0 0.0
      %1459 = vmatpush2.msra.mxu0 0.0
      %1460 = vmatprep.subr.mxu0 0.0
      %1461 = vmatpush2.msra.mxu0 0.0
      %1462 = vmatprep.subr.mxu0 0.0
      %1463 = vmatpush2.msra.mxu0 0.0
      %1464 = vmatprep.subr.mxu0 0.0
      %1465 = vmatpush2.msra.mxu0 0.0
      %1466 = vmatprep.subr.mxu0 0.0
      %1467 = vmatpush2.msra.mxu0 0.0
      %1468 = vmatprep.subr.mxu0 0.0
      %v1469 = vand.u32 %v967, 4294901760
      %1470 = vmatpush2.msra.mxu0 %v1469
      %1471 = vmatprep.subr.mxu0 0.0
      %v1472 = vand.u32 %v966, 4294901760
      %1473 = vmatpush2.msra.mxu0 %v1472
      %1474 = vmatprep.subr.mxu0 0.0
      %v1475 = vand.u32 %v965, 4294901760
      %1476 = vmatpush2.msra.mxu0 %v1475
      %1477 = vmatprep.subr.mxu0 0.0
      %v1478 = vand.u32 %v964, 4294901760
      %1479 = vmatpush2.msra.mxu0 %v1478
      %v1480 = vand.u32 %v974, 4294901760
      %v1481 = vsub.f32 %v974, %v1480
      %v1482 = vand.u32 %v1481, 4294901760
      %1483 = vmatprep.mubr.f32.mxu0 %v1482
      %v1484 = vand.u32 %v968, 4294901760
      %v1485 = vsub.f32 %v968, %v1484
      %v1486 = vand.u32 %v1485, 4294901760
      %1487 = vmatmul.mubr.f32.gmra.mxu0 %v1486
      %v1488 = vpop.f32.mrf.mxu0
      %v1489 = vadd.f32 %v1384, %v1488
      %v1490 = vpop.f32.mrf.mxu0
      %v1491 = vand.u32 %v977, 4294901760
      %v1492 = vsub.f32 %v977, %v1491
      %v1493 = vand.u32 %v1492, 4294901760
      %1494 = vmatprep.mubr.f32.mxu0 %v1493
      %v1495 = vand.u32 %v970, 4294901760
      %v1496 = vsub.f32 %v970, %v1495
      %v1497 = vand.u32 %v1496, 4294901760
      %1498 = vmatmul.mubr.f32.gmra.mxu0 %v1497
      %v1499 = vpop.f32.mrf.mxu0
      %v1500 = vadd.f32 %v1393, %v1499
      %v1501 = vpop.f32.mrf.mxu0
      %1502 = vdwg.mxu0
      %1503 = vmatprep.subr.mxu0 0.0
      %v1504 = vand.u32 %v963, 4294901760
      %v1505 = vsub.f32 %v963, %v1504
      %v1506 = vand.u32 %v1505, 4294901760
      %1507 = vmatpush1.msra.mxu0 %v1506
      %1508 = vmatprep.subr.mxu0 0.0
      %v1509 = vand.u32 %v962, 4294901760
      %v1510 = vsub.f32 %v962, %v1509
      %v1511 = vand.u32 %v1510, 4294901760
      %1512 = vmatpush1.msra.mxu0 %v1511
      %1513 = vmatprep.subr.mxu0 0.0
      %v1514 = vand.u32 %v961, 4294901760
      %v1515 = vsub.f32 %v961, %v1514
      %v1516 = vand.u32 %v1515, 4294901760
      %1517 = vmatpush1.msra.mxu0 %v1516
      %1518 = vmatprep.subr.mxu0 0.0
      %v1519 = vand.u32 %v960, 4294901760
      %v1520 = vsub.f32 %v960, %v1519
      %v1521 = vand.u32 %v1520, 4294901760
      %1522 = vmatpush1.msra.mxu0 %v1521
      %1523 = vmatprep.subr.mxu0 0.0
      %v1524 = vand.u32 %v959, 4294901760
      %v1525 = vsub.f32 %v959, %v1524
      %v1526 = vand.u32 %v1525, 4294901760
      %1527 = vmatpush1.msra.mxu0 %v1526
      %1528 = vmatprep.subr.mxu0 0.0
      %v1529 = vand.u32 %v958, 4294901760
      %v1530 = vsub.f32 %v958, %v1529
      %v1531 = vand.u32 %v1530, 4294901760
      %1532 = vmatpush1.msra.mxu0 %v1531
      %1533 = vmatprep.subr.mxu0 0.0
      %v1534 = vand.u32 %v957, 4294901760
      %v1535 = vsub.f32 %v957, %v1534
      %v1536 = vand.u32 %v1535, 4294901760
      %1537 = vmatpush1.msra.mxu0 %v1536
      %1538 = vmatprep.subr.mxu0 0.0
      %v1539 = vand.u32 %v956, 4294901760
      %v1540 = vsub.f32 %v956, %v1539
      %v1541 = vand.u32 %v1540, 4294901760
      %1542 = vmatpush1.msra.mxu0 %v1541
      %1543 = vmatprep.subr.mxu0 0.0
      %v1544 = vand.u32 %v955, 4294901760
      %v1545 = vsub.f32 %v955, %v1544
      %v1546 = vand.u32 %v1545, 4294901760
      %1547 = vmatpush1.msra.mxu0 %v1546
      %1548 = vmatprep.subr.mxu0 0.0
      %v1549 = vand.u32 %v954, 4294901760
      %v1550 = vsub.f32 %v954, %v1549
      %v1551 = vand.u32 %v1550, 4294901760
      %1552 = vmatpush1.msra.mxu0 %v1551
      %1553 = vmatprep.subr.mxu0 0.0
      %v1554 = vand.u32 %v953, 4294901760
      %v1555 = vsub.f32 %v953, %v1554
      %v1556 = vand.u32 %v1555, 4294901760
      %1557 = vmatpush1.msra.mxu0 %v1556
      %1558 = vmatprep.subr.mxu0 0.0
      %v1559 = vand.u32 %v952, 4294901760
      %v1560 = vsub.f32 %v952, %v1559
      %v1561 = vand.u32 %v1560, 4294901760
      %1562 = vmatpush1.msra.mxu0 %v1561
      %1563 = vmatprep.subr.mxu0 0.0
      %v1564 = vand.u32 %v951, 4294901760
      %v1565 = vsub.f32 %v951, %v1564
      %v1566 = vand.u32 %v1565, 4294901760
      %1567 = vmatpush1.msra.mxu0 %v1566
      %1568 = vmatprep.subr.mxu0 0.0
      %v1569 = vand.u32 %v950, 4294901760
      %v1570 = vsub.f32 %v950, %v1569
      %v1571 = vand.u32 %v1570, 4294901760
      %1572 = vmatpush1.msra.mxu0 %v1571
      %1573 = vmatprep.subr.mxu0 0.0
      %v1574 = vand.u32 %v949, 4294901760
      %v1575 = vsub.f32 %v949, %v1574
      %v1576 = vand.u32 %v1575, 4294901760
      %1577 = vmatpush1.msra.mxu0 %v1576
      %1578 = vmatprep.subr.mxu0 0.0
      %v1579 = vand.u32 %v948, 4294901760
      %v1580 = vsub.f32 %v948, %v1579
      %v1581 = vand.u32 %v1580, 4294901760
      %1582 = vmatpush1.msra.mxu0 %v1581
      %1583 = vmatprep.subr.mxu0 0.0
      %1584 = vmatpush2.msra.mxu0 0.0
      %1585 = vmatprep.subr.mxu0 0.0
      %1586 = vmatpush2.msra.mxu0 0.0
      %1587 = vmatprep.subr.mxu0 0.0
      %1588 = vmatpush2.msra.mxu0 0.0
      %1589 = vmatprep.subr.mxu0 0.0
      %1590 = vmatpush2.msra.mxu0 0.0
      %1591 = vmatprep.subr.mxu0 0.0
      %1592 = vmatpush2.msra.mxu0 0.0
      %1593 = vmatprep.subr.mxu0 0.0
      %1594 = vmatpush2.msra.mxu0 0.0
      %1595 = vmatprep.subr.mxu0 0.0
      %1596 = vmatpush2.msra.mxu0 0.0
      %1597 = vmatprep.subr.mxu0 0.0
      %1598 = vmatpush2.msra.mxu0 0.0
      %1599 = vmatprep.subr.mxu0 0.0
      %1600 = vmatpush2.msra.mxu0 0.0
      %1601 = vmatprep.subr.mxu0 0.0
      %1602 = vmatpush2.msra.mxu0 0.0
      %1603 = vmatprep.subr.mxu0 0.0
      %1604 = vmatpush2.msra.mxu0 0.0
      %1605 = vmatprep.subr.mxu0 0.0
      %1606 = vmatpush2.msra.mxu0 0.0
      %1607 = vmatprep.subr.mxu0 0.0
      %v1608 = vand.u32 %v967, 4294901760
      %v1609 = vsub.f32 %v967, %v1608
      %v1610 = vand.u32 %v1609, 4294901760
      %1611 = vmatpush2.msra.mxu0 %v1610
      %1612 = vmatprep.subr.mxu0 0.0
      %v1613 = vand.u32 %v966, 4294901760
      %v1614 = vsub.f32 %v966, %v1613
      %v1615 = vand.u32 %v1614, 4294901760
      %1616 = vmatpush2.msra.mxu0 %v1615
      %1617 = vmatprep.subr.mxu0 0.0
      %v1618 = vand.u32 %v965, 4294901760
      %v1619 = vsub.f32 %v965, %v1618
      %v1620 = vand.u32 %v1619, 4294901760
      %1621 = vmatpush2.msra.mxu0 %v1620
      %1622 = vmatprep.subr.mxu0 0.0
      %v1623 = vand.u32 %v964, 4294901760
      %v1624 = vsub.f32 %v964, %v1623
      %v1625 = vand.u32 %v1624, 4294901760
      %1626 = vmatpush2.msra.mxu0 %v1625
      %v1627 = vand.u32 %v974, 4294901760
      %1628 = vmatprep.mubr.f32.mxu0 %v1627
      %v1629 = vand.u32 %v968, 4294901760
      %1630 = vmatmul.mubr.f32.gmra.mxu0 %v1629
      %v1631 = vpop.f32.mrf.mxu0
      %v1632 = vadd.f32 %v1489, %v1631
      %v1633 = vpop.f32.mrf.mxu0
      %v1634 = vand.u32 %v977, 4294901760
      %1635 = vmatprep.mubr.f32.mxu0 %v1634
      %v1636 = vand.u32 %v970, 4294901760
      %1637 = vmatmul.mubr.f32.gmra.mxu0 %v1636
      %v1638 = vpop.f32.mrf.mxu0
      %v1639 = vadd.f32 %v1500, %v1638
      %v1640 = vpop.f32.mrf.mxu0
      %1641 = vdwg.mxu0
      %1642 = vmatprep.subr.mxu0 0.0
      %v1643 = vand.u32 %v963, 4294901760
      %1644 = vmatpush1.msra.mxu0 %v1643
      %1645 = vmatprep.subr.mxu0 0.0
      %v1646 = vand.u32 %v962, 4294901760
      %1647 = vmatpush1.msra.mxu0 %v1646
      %1648 = vmatprep.subr.mxu0 0.0
      %v1649 = vand.u32 %v961, 4294901760
      %1650 = vmatpush1.msra.mxu0 %v1649
      %1651 = vmatprep.subr.mxu0 0.0
      %v1652 = vand.u32 %v960, 4294901760
      %1653 = vmatpush1.msra.mxu0 %v1652
      %1654 = vmatprep.subr.mxu0 0.0
      %v1655 = vand.u32 %v959, 4294901760
      %1656 = vmatpush1.msra.mxu0 %v1655
      %1657 = vmatprep.subr.mxu0 0.0
      %v1658 = vand.u32 %v958, 4294901760
      %1659 = vmatpush1.msra.mxu0 %v1658
      %1660 = vmatprep.subr.mxu0 0.0
      %v1661 = vand.u32 %v957, 4294901760
      %1662 = vmatpush1.msra.mxu0 %v1661
      %1663 = vmatprep.subr.mxu0 0.0
      %v1664 = vand.u32 %v956, 4294901760
      %1665 = vmatpush1.msra.mxu0 %v1664
      %1666 = vmatprep.subr.mxu0 0.0
      %v1667 = vand.u32 %v955, 4294901760
      %1668 = vmatpush1.msra.mxu0 %v1667
      %1669 = vmatprep.subr.mxu0 0.0
      %v1670 = vand.u32 %v954, 4294901760
      %1671 = vmatpush1.msra.mxu0 %v1670
      %1672 = vmatprep.subr.mxu0 0.0
      %v1673 = vand.u32 %v953, 4294901760
      %1674 = vmatpush1.msra.mxu0 %v1673
      %1675 = vmatprep.subr.mxu0 0.0
      %v1676 = vand.u32 %v952, 4294901760
      %1677 = vmatpush1.msra.mxu0 %v1676
      %1678 = vmatprep.subr.mxu0 0.0
      %v1679 = vand.u32 %v951, 4294901760
      %1680 = vmatpush1.msra.mxu0 %v1679
      %1681 = vmatprep.subr.mxu0 0.0
      %v1682 = vand.u32 %v950, 4294901760
      %1683 = vmatpush1.msra.mxu0 %v1682
      %1684 = vmatprep.subr.mxu0 0.0
      %v1685 = vand.u32 %v949, 4294901760
      %1686 = vmatpush1.msra.mxu0 %v1685
      %1687 = vmatprep.subr.mxu0 0.0
      %v1688 = vand.u32 %v948, 4294901760
      %1689 = vmatpush1.msra.mxu0 %v1688
      %1690 = vmatprep.subr.mxu0 0.0
      %1691 = vmatpush2.msra.mxu0 0.0
      %1692 = vmatprep.subr.mxu0 0.0
      %1693 = vmatpush2.msra.mxu0 0.0
      %1694 = vmatprep.subr.mxu0 0.0
      %1695 = vmatpush2.msra.mxu0 0.0
      %1696 = vmatprep.subr.mxu0 0.0
      %1697 = vmatpush2.msra.mxu0 0.0
      %1698 = vmatprep.subr.mxu0 0.0
      %1699 = vmatpush2.msra.mxu0 0.0
      %1700 = vmatprep.subr.mxu0 0.0
      %1701 = vmatpush2.msra.mxu0 0.0
      %1702 = vmatprep.subr.mxu0 0.0
      %1703 = vmatpush2.msra.mxu0 0.0
      %1704 = vmatprep.subr.mxu0 0.0
      %1705 = vmatpush2.msra.mxu0 0.0
      %1706 = vmatprep.subr.mxu0 0.0
      %1707 = vmatpush2.msra.mxu0 0.0
      %1708 = vmatprep.subr.mxu0 0.0
      %1709 = vmatpush2.msra.mxu0 0.0
      %1710 = vmatprep.subr.mxu0 0.0
      %1711 = vmatpush2.msra.mxu0 0.0
      %1712 = vmatprep.subr.mxu0 0.0
      %1713 = vmatpush2.msra.mxu0 0.0
      %1714 = vmatprep.subr.mxu0 0.0
      %v1715 = vand.u32 %v967, 4294901760
      %1716 = vmatpush2.msra.mxu0 %v1715
      %1717 = vmatprep.subr.mxu0 0.0
      %v1718 = vand.u32 %v966, 4294901760
      %1719 = vmatpush2.msra.mxu0 %v1718
      %1720 = vmatprep.subr.mxu0 0.0
      %v1721 = vand.u32 %v965, 4294901760
      %1722 = vmatpush2.msra.mxu0 %v1721
      %1723 = vmatprep.subr.mxu0 0.0
      %v1724 = vand.u32 %v964, 4294901760
      %1725 = vmatpush2.msra.mxu0 %v1724
      %v1726 = vand.u32 %v974, 4294901760
      %1727 = vmatprep.mubr.f32.mxu0 %v1726
      %v1728 = vand.u32 %v968, 4294901760
      %1729 = vmatmul.mubr.f32.gmra.mxu0 %v1728
      %v1730 = vpop.f32.mrf.mxu0
      %v1731 = vadd.f32 %v1632, %v1730
      %v1732 = vpop.f32.mrf.mxu0
      %v1733 = vand.u32 %v977, 4294901760
      %1734 = vmatprep.mubr.f32.mxu0 %v1733
      %v1735 = vand.u32 %v970, 4294901760
      %1736 = vmatmul.mubr.f32.gmra.mxu0 %v1735
      %v1737 = vpop.f32.mrf.mxu0
      %v1738 = vadd.f32 %v1639, %v1737
      %v1739 = vpop.f32.mrf.mxu0
      %1740 = vdwg.mxu0
      %v1741 = vld [vmem:[%s8] sm:$0xff]
      %v1742 = vld [vmem:[%s8 + $0x8] sm:$0xff]
      %v1743 = vld [vmem:[%s8 + $0x10] sm:$0xff]
      %v1744 = vld [vmem:[%s8 + $0x18] sm:$0xff]
      %v1745 = vld [vmem:[%s8 + $0x20] sm:$0xff]
      %v1746 = vld [vmem:[%s8 + $0x28] sm:$0xff]
      %v1747 = vld [vmem:[%s8 + $0x30] sm:$0xff]
      %v1748 = vld [vmem:[%s8 + $0x38] sm:$0xff]
      %v1749 = vld [vmem:[%s8 + $0x40] sm:$0xff]
      %v1750 = vld [vmem:[%s8 + $0x48] sm:$0xff]
      %v1751 = vld [vmem:[%s8 + $0x50] sm:$0xff]
      %v1752 = vld [vmem:[%s8 + $0x58] sm:$0xff]
      %v1753 = vld [vmem:[%s8 + $0x60] sm:$0xff]
      %v1754 = vld [vmem:[%s8 + $0x68] sm:$0xff]
      %v1755 = vld [vmem:[%s8 + $0x70] sm:$0xff]
      %v1756 = vld [vmem:[%s8 + $0x78] sm:$0xff]
      %1757 = vmatprep.subr.mxu0 0.0
      %1758 = vmatpush1.msra.mxu0 %v1756
      %1759 = vmatprep.subr.mxu0 0.0
      %1760 = vmatpush1.msra.mxu0 %v1755
      %1761 = vmatprep.subr.mxu0 0.0
      %1762 = vmatpush1.msra.mxu0 %v1754
      %1763 = vmatprep.subr.mxu0 0.0
      %1764 = vmatpush1.msra.mxu0 %v1753
      %1765 = vmatprep.subr.mxu0 0.0
      %1766 = vmatpush1.msra.mxu0 %v1752
      %1767 = vmatprep.subr.mxu0 0.0
      %1768 = vmatpush1.msra.mxu0 %v1751
      %1769 = vmatprep.subr.mxu0 0.0
      %1770 = vmatpush1.msra.mxu0 %v1750
      %1771 = vmatprep.subr.mxu0 0.0
      %1772 = vmatpush1.msra.mxu0 %v1749
      %1773 = vmatprep.subr.mxu0 0.0
      %1774 = vmatpush1.msra.mxu0 %v1748
      %1775 = vmatprep.subr.mxu0 0.0
      %1776 = vmatpush1.msra.mxu0 %v1747
      %1777 = vmatprep.subr.mxu0 0.0
      %1778 = vmatpush1.msra.mxu0 %v1746
      %1779 = vmatprep.subr.mxu0 0.0
      %1780 = vmatpush1.msra.mxu0 %v1745
      %1781 = vmatprep.subr.mxu0 0.0
      %1782 = vmatpush1.msra.mxu0 %v1744
      %1783 = vmatprep.subr.mxu0 0.0
      %1784 = vmatpush1.msra.mxu0 %v1743
      %1785 = vmatprep.subr.mxu0 0.0
      %1786 = vmatpush1.msra.mxu0 %v1742
      %1787 = vmatprep.subr.mxu0 0.0
      %1788 = vmatpush1.msra.mxu0 %v1741
      %1789 = vmatprep.subr.mxu0 0.0
      %1790 = vmatpush2.msra.mxu0 0.0
      %1791 = vmatprep.subr.mxu0 0.0
      %1792 = vmatpush2.msra.mxu0 0.0
      %1793 = vmatprep.subr.mxu0 0.0
      %1794 = vmatpush2.msra.mxu0 0.0
      %1795 = vmatprep.subr.mxu0 0.0
      %1796 = vmatpush2.msra.mxu0 0.0
      %1797 = vmatprep.subr.mxu0 0.0
      %1798 = vmatpush2.msra.mxu0 0.0
      %1799 = vmatprep.subr.mxu0 0.0
      %1800 = vmatpush2.msra.mxu0 0.0
      %1801 = vmatprep.subr.mxu0 0.0
      %1802 = vmatpush2.msra.mxu0 0.0
      %1803 = vmatprep.subr.mxu0 0.0
      %1804 = vmatpush2.msra.mxu0 0.0
      %1805 = vmatprep.subr.mxu0 0.0
      %1806 = vmatpush2.msra.mxu0 0.0
      %1807 = vmatprep.subr.mxu0 0.0
      %1808 = vmatpush2.msra.mxu0 0.0
      %1809 = vmatprep.subr.mxu0 0.0
      %1810 = vmatpush2.msra.mxu0 0.0
      %1811 = vmatprep.subr.mxu0 0.0
      %1812 = vmatpush2.msra.mxu0 0.0
      %1813 = vmatprep.subr.mxu0 0.0
      %1814 = vmatpush2.msra.mxu0 0.0
      %1815 = vmatprep.subr.mxu0 0.0
      %1816 = vmatpush2.msra.mxu0 0.0
      %1817 = vmatprep.subr.mxu0 0.0
      %1818 = vmatpush2.msra.mxu0 0.0
      %1819 = vmatprep.subr.mxu0 0.0
      %1820 = vmatpush2.msra.mxu0 0.0
      %1821 = vmatprep.mubr.f32.mxu0 0.0
      %1822 = vmatmul.mubr.f32.gmra.mxu0 %v1731
      %v1823 = vpop.f32.mrf.mxu0
      %v1824 = vadd.f32 0.0, %v1823
      %v1825 = vpop.f32.mrf.mxu0
      %1826 = vmatprep.mubr.f32.mxu0 0.0
      %1827 = vmatmul.mubr.f32.gmra.mxu0 %v1738
      %v1828 = vpop.f32.mrf.mxu0
      %v1829 = vadd.f32 0.0, %v1828
      %v1830 = vpop.f32.mrf.mxu0
      %1831 = vdwg.mxu0
      %v1832 = vld [vmem:[%s3] sm:$0xff]
      %v1833 = vld [vmem:[%s3 + $0x8] sm:$0xff]
      %v1834 = vld [vmem:[%s3 + $0x10] sm:$0xff]
      %v1835 = vld [vmem:[%s3 + $0x18] sm:$0xff]
      %v1836 = vld [vmem:[%s3 + $0x20] sm:$0xff]
      %v1837 = vld [vmem:[%s3 + $0x28] sm:$0xff]
      %v1838 = vld [vmem:[%s3 + $0x30] sm:$0xff]
      %v1839 = vld [vmem:[%s3 + $0x38] sm:$0xff]
      %v1840 = vld [vmem:[%s3 + $0x40] sm:$0xff]
      %v1841 = vld [vmem:[%s3 + $0x48] sm:$0xff]
      %v1842 = vld [vmem:[%s3 + $0x50] sm:$0xff]
      %v1843 = vld [vmem:[%s3 + $0x58] sm:$0xff]
      %v1844 = vld [vmem:[%s3 + $0x60] sm:$0xff]
      %v1845 = vld [vmem:[%s3 + $0x68] sm:$0xff]
      %v1846 = vld [vmem:[%s3 + $0x70] sm:$0xff]
      %v1847 = vld [vmem:[%s3 + $0x78] sm:$0xff]
      %v1848 = vld [vmem:[%s9] sm:$0x3]
      %vm1849 = vcmask 15360
      %v1851 = vsel %vm1849, %v486, 0
      %v1854 = vsel %vm1849, %v487, 0
      %v1857 = vsel %vm1849, %v488, 0
      %v1860 = vsel %vm1849, %v489, 0
      %v1863 = vsel %vm1849, %v490, 0
      %v1866 = vsel %vm1849, %v491, 0
      %v1869 = vsel %vm1849, %v492, 0
      %v1872 = vsel %vm1849, %v493, 0
      %v1875 = vsel %vm1849, %v494, 0
      %v1878 = vsel %vm1849, %v495, 0
      %v1881 = vsel %vm1849, %v496, 0
      %v1884 = vsel %vm1849, %v497, 0
      %v1887 = vsel %vm1849, %v498, 0
      %v1890 = vsel %vm1849, %v499, 0
      %v1893 = vsel %vm1849, %v500, 0
      %v1896 = vsel %vm1849, %v501, 0
      %vm1898 = vcmask 1041408
      %v1900 = vsel %vm1898, %v1848, 0
      %1902 = vmatprep.subr.mxu0 0.0
      %1903 = vmatpush1.msra.mxu0 0.0
      %1904 = vmatprep.subr.mxu0 0.0
      %1905 = vmatpush1.msra.mxu0 0.0
      %1906 = vmatprep.subr.mxu0 0.0
      %1907 = vmatpush1.msra.mxu0 0.0
      %1908 = vmatprep.subr.mxu0 0.0
      %1909 = vmatpush1.msra.mxu0 0.0
      %1910 = vmatprep.subr.mxu0 0.0
      %1911 = vmatpush1.msra.mxu0 0.0
      %1912 = vmatprep.subr.mxu0 0.0
      %1913 = vmatpush1.msra.mxu0 0.0
      %1914 = vmatprep.subr.mxu0 0.0
      %1915 = vmatpush1.msra.mxu0 0.0
      %1916 = vmatprep.subr.mxu0 0.0
      %1917 = vmatpush1.msra.mxu0 0.0
      %1918 = vmatprep.subr.mxu0 0.0
      %1919 = vmatpush1.msra.mxu0 0.0
      %1920 = vmatprep.subr.mxu0 0.0
      %1921 = vmatpush1.msra.mxu0 0.0
      %1922 = vmatprep.subr.mxu0 0.0
      %1923 = vmatpush1.msra.mxu0 0.0
      %1924 = vmatprep.subr.mxu0 0.0
      %1925 = vmatpush1.msra.mxu0 0.0
      %1926 = vmatprep.subr.mxu0 0.0
      %1927 = vmatpush1.msra.mxu0 0.0
      %1928 = vmatprep.subr.mxu0 0.0
      %1929 = vmatpush1.msra.mxu0 0.0
      %1930 = vmatprep.subr.mxu0 0.0
      %1931 = vmatpush1.msra.mxu0 0.0
      %1932 = vmatprep.subr.mxu0 0.0
      %1933 = vmatpush1.msra.mxu0 %v1900
      %1934 = vmatprep.subr.mxu0 0.0
      %1935 = vmatpush2.msra.mxu0 0.0
      %1936 = vmatprep.subr.mxu0 0.0
      %1937 = vmatpush2.msra.mxu0 0.0
      %1938 = vmatprep.subr.mxu0 0.0
      %1939 = vmatpush2.msra.mxu0 0.0
      %1940 = vmatprep.subr.mxu0 0.0
      %1941 = vmatpush2.msra.mxu0 0.0
      %1942 = vmatprep.subr.mxu0 0.0
      %1943 = vmatpush2.msra.mxu0 0.0
      %1944 = vmatprep.subr.mxu0 0.0
      %1945 = vmatpush2.msra.mxu0 0.0
      %1946 = vmatprep.subr.mxu0 0.0
      %1947 = vmatpush2.msra.mxu0 0.0
      %1948 = vmatprep.subr.mxu0 0.0
      %1949 = vmatpush2.msra.mxu0 0.0
      %1950 = vmatprep.subr.mxu0 0.0
      %1951 = vmatpush2.msra.mxu0 0.0
      %1952 = vmatprep.subr.mxu0 0.0
      %1953 = vmatpush2.msra.mxu0 0.0
      %1954 = vmatprep.subr.mxu0 0.0
      %1955 = vmatpush2.msra.mxu0 0.0
      %1956 = vmatprep.subr.mxu0 0.0
      %1957 = vmatpush2.msra.mxu0 0.0
      %1958 = vmatprep.subr.mxu0 0.0
      %1959 = vmatpush2.msra.mxu0 0.0
      %1960 = vmatprep.subr.mxu0 0.0
      %1961 = vmatpush2.msra.mxu0 0.0
      %1962 = vmatprep.subr.mxu0 0.0
      %1963 = vmatpush2.msra.mxu0 0.0
      %1964 = vmatprep.subr.mxu0 0.0
      %1965 = vmatpush2.msra.mxu0 0.0
      %1966 = vmatprep.mubr.f32.mxu0 0.0
      %1967 = vmatmul.mubr.f32.gmra.mxu0 %v1851
      %v1968 = vpop.f32.mrf.mxu0
      %v1969 = vadd.f32 0.0, %v1968
      %v1970 = vpop.f32.mrf.mxu0
      %1971 = vmatprep.mubr.f32.mxu0 0.0
      %1972 = vmatmul.mubr.f32.gmra.mxu0 %v1854
      %v1973 = vpop.f32.mrf.mxu0
      %v1974 = vadd.f32 0.0, %v1973
      %v1975 = vpop.f32.mrf.mxu0
      %1976 = vmatprep.mubr.f32.mxu0 0.0
      %1977 = vmatmul.mubr.f32.gmra.mxu0 %v1857
      %v1978 = vpop.f32.mrf.mxu0
      %v1979 = vadd.f32 0.0, %v1978
      %v1980 = vpop.f32.mrf.mxu0
      %1981 = vmatprep.mubr.f32.mxu0 0.0
      %1982 = vmatmul.mubr.f32.gmra.mxu0 %v1860
      %v1983 = vpop.f32.mrf.mxu0
      %v1984 = vadd.f32 0.0, %v1983
      %v1985 = vpop.f32.mrf.mxu0
      %1986 = vmatprep.mubr.f32.mxu0 0.0
      %1987 = vmatmul.mubr.f32.gmra.mxu0 %v1863
      %v1988 = vpop.f32.mrf.mxu0
      %v1989 = vadd.f32 0.0, %v1988
      %v1990 = vpop.f32.mrf.mxu0
      %1991 = vmatprep.mubr.f32.mxu0 0.0
      %1992 = vmatmul.mubr.f32.gmra.mxu0 %v1866
      %v1993 = vpop.f32.mrf.mxu0
      %v1994 = vadd.f32 0.0, %v1993
      %v1995 = vpop.f32.mrf.mxu0
      %1996 = vmatprep.mubr.f32.mxu0 0.0
      %1997 = vmatmul.mubr.f32.gmra.mxu0 %v1869
      %v1998 = vpop.f32.mrf.mxu0
      %v1999 = vadd.f32 0.0, %v1998
      %v2000 = vpop.f32.mrf.mxu0
      %2001 = vmatprep.mubr.f32.mxu0 0.0
      %2002 = vmatmul.mubr.f32.gmra.mxu0 %v1872
      %v2003 = vpop.f32.mrf.mxu0
      %v2004 = vadd.f32 0.0, %v2003
      %v2005 = vpop.f32.mrf.mxu0
      %2006 = vmatprep.mubr.f32.mxu0 0.0
      %2007 = vmatmul.mubr.f32.gmra.mxu0 %v1875
      %v2008 = vpop.f32.mrf.mxu0
      %v2009 = vadd.f32 0.0, %v2008
      %v2010 = vpop.f32.mrf.mxu0
      %2011 = vmatprep.mubr.f32.mxu0 0.0
      %2012 = vmatmul.mubr.f32.gmra.mxu0 %v1878
      %v2013 = vpop.f32.mrf.mxu0
      %v2014 = vadd.f32 0.0, %v2013
      %v2015 = vpop.f32.mrf.mxu0
      %2016 = vmatprep.mubr.f32.mxu0 0.0
      %2017 = vmatmul.mubr.f32.gmra.mxu0 %v1881
      %v2018 = vpop.f32.mrf.mxu0
      %v2019 = vadd.f32 0.0, %v2018
      %v2020 = vpop.f32.mrf.mxu0
      %2021 = vmatprep.mubr.f32.mxu0 0.0
      %2022 = vmatmul.mubr.f32.gmra.mxu0 %v1884
      %v2023 = vpop.f32.mrf.mxu0
      %v2024 = vadd.f32 0.0, %v2023
      %v2025 = vpop.f32.mrf.mxu0
      %2026 = vmatprep.mubr.f32.mxu0 0.0
      %2027 = vmatmul.mubr.f32.gmra.mxu0 %v1887
      %v2028 = vpop.f32.mrf.mxu0
      %v2029 = vadd.f32 0.0, %v2028
      %v2030 = vpop.f32.mrf.mxu0
      %2031 = vmatprep.mubr.f32.mxu0 0.0
      %2032 = vmatmul.mubr.f32.gmra.mxu0 %v1890
      %v2033 = vpop.f32.mrf.mxu0
      %v2034 = vadd.f32 0.0, %v2033
      %v2035 = vpop.f32.mrf.mxu0
      %2036 = vmatprep.mubr.f32.mxu0 0.0
      %2037 = vmatmul.mubr.f32.gmra.mxu0 %v1893
      %v2038 = vpop.f32.mrf.mxu0
      %v2039 = vadd.f32 0.0, %v2038
      %v2040 = vpop.f32.mrf.mxu0
      %2041 = vmatprep.mubr.f32.mxu0 0.0
      %2042 = vmatmul.mubr.f32.gmra.mxu0 %v1896
      %v2043 = vpop.f32.mrf.mxu0
      %v2044 = vadd.f32 0.0, %v2043
      %v2045 = vpop.f32.mrf.mxu0
      %2046 = vdwg.mxu0
      %vm2047 = vcmask 130048
      %v2049 = vsel %vm2047, %v1832, 0
      %v2052 = vsel %vm2047, %v1833, 0
      %v2055 = vsel %vm2047, %v1834, 0
      %v2058 = vsel %vm2047, %v1835, 0
      %v2061 = vsel %vm2047, %v1836, 0
      %v2064 = vsel %vm2047, %v1837, 0
      %v2067 = vsel %vm2047, %v1838, 0
      %v2070 = vsel %vm2047, %v1839, 0
      %v2073 = vsel %vm2047, %v1840, 0
      %v2076 = vsel %vm2047, %v1841, 0
      %v2079 = vsel %vm2047, %v1842, 0
      %v2082 = vsel %vm2047, %v1843, 0
      %v2085 = vsel %vm2047, %v1844, 0
      %v2088 = vsel %vm2047, %v1845, 0
      %v2091 = vsel %vm2047, %v1846, 0
      %v2094 = vsel %vm2047, %v1847, 0
      %2096 = vmatprep.subr.mxu0 0.0
      %2097 = vmatpush1.msra.mxu0 0.0
      %2098 = vmatprep.subr.mxu0 0.0
      %2099 = vmatpush1.msra.mxu0 0.0
      %2100 = vmatprep.subr.mxu0 0.0
      %2101 = vmatpush1.msra.mxu0 0.0
      %2102 = vmatprep.subr.mxu0 0.0
      %2103 = vmatpush1.msra.mxu0 0.0
      %2104 = vmatprep.subr.mxu0 0.0
      %2105 = vmatpush1.msra.mxu0 0.0
      %2106 = vmatprep.subr.mxu0 0.0
      %2107 = vmatpush1.msra.mxu0 0.0
      %2108 = vmatprep.subr.mxu0 0.0
      %2109 = vmatpush1.msra.mxu0 0.0
      %2110 = vmatprep.subr.mxu0 0.0
      %2111 = vmatpush1.msra.mxu0 0.0
      %2112 = vmatprep.subr.mxu0 0.0
      %2113 = vmatpush1.msra.mxu0 0.0
      %2114 = vmatprep.subr.mxu0 0.0
      %2115 = vmatpush1.msra.mxu0 0.0
      %2116 = vmatprep.subr.mxu0 0.0
      %2117 = vmatpush1.msra.mxu0 0.0
      %2118 = vmatprep.subr.mxu0 0.0
      %2119 = vmatpush1.msra.mxu0 0.0
      %2120 = vmatprep.subr.mxu0 0.0
      %2121 = vmatpush1.msra.mxu0 0.0
      %2122 = vmatprep.subr.mxu0 0.0
      %2123 = vmatpush1.msra.mxu0 0.0
      %2124 = vmatprep.subr.mxu0 0.0
      %v2125 = vand.u32 %v1829, 4294901760
      %2126 = vmatpush1.msra.mxu0 %v2125
      %2127 = vmatprep.subr.mxu0 0.0
      %v2128 = vand.u32 %v1824, 4294901760
      %2129 = vmatpush1.msra.mxu0 %v2128
      %2130 = vmatprep.subr.mxu0 0.0
      %2131 = vmatpush2.msra.mxu0 0.0
      %2132 = vmatprep.subr.mxu0 0.0
      %2133 = vmatpush2.msra.mxu0 0.0
      %2134 = vmatprep.subr.mxu0 0.0
      %2135 = vmatpush2.msra.mxu0 0.0
      %2136 = vmatprep.subr.mxu0 0.0
      %2137 = vmatpush2.msra.mxu0 0.0
      %2138 = vmatprep.subr.mxu0 0.0
      %2139 = vmatpush2.msra.mxu0 0.0
      %2140 = vmatprep.subr.mxu0 0.0
      %2141 = vmatpush2.msra.mxu0 0.0
      %2142 = vmatprep.subr.mxu0 0.0
      %2143 = vmatpush2.msra.mxu0 0.0
      %2144 = vmatprep.subr.mxu0 0.0
      %2145 = vmatpush2.msra.mxu0 0.0
      %2146 = vmatprep.subr.mxu0 0.0
      %2147 = vmatpush2.msra.mxu0 0.0
      %2148 = vmatprep.subr.mxu0 0.0
      %2149 = vmatpush2.msra.mxu0 0.0
      %2150 = vmatprep.subr.mxu0 0.0
      %2151 = vmatpush2.msra.mxu0 0.0
      %2152 = vmatprep.subr.mxu0 0.0
      %2153 = vmatpush2.msra.mxu0 0.0
      %2154 = vmatprep.subr.mxu0 0.0
      %2155 = vmatpush2.msra.mxu0 0.0
      %2156 = vmatprep.subr.mxu0 0.0
      %2157 = vmatpush2.msra.mxu0 0.0
      %2158 = vmatprep.subr.mxu0 0.0
      %2159 = vmatpush2.msra.mxu0 0.0
      %2160 = vmatprep.subr.mxu0 0.0
      %2161 = vmatpush2.msra.mxu0 0.0
      %2162 = vmatprep.mubr.f32.mxu0 0.0
      %v2163 = vand.u32 %v2049, 4294901760
      %v2164 = vsub.f32 %v2049, %v2163
      %v2165 = vand.u32 %v2164, 4294901760
      %v2166 = vsub.f32 %v2164, %v2165
      %v2167 = vand.u32 %v2166, 4294901760
      %2168 = vmatmul.mubr.f32.gmra.mxu0 %v2167
      %v2169 = vpop.f32.mrf.mxu0
      %v2170 = vadd.f32 %v1969, %v2169
      %v2171 = vpop.f32.mrf.mxu0
      %2172 = vmatprep.mubr.f32.mxu0 0.0
      %v2173 = vand.u32 %v2052, 4294901760
      %v2174 = vsub.f32 %v2052, %v2173
      %v2175 = vand.u32 %v2174, 4294901760
      %v2176 = vsub.f32 %v2174, %v2175
      %v2177 = vand.u32 %v2176, 4294901760
      %2178 = vmatmul.mubr.f32.gmra.mxu0 %v2177
      %v2179 = vpop.f32.mrf.mxu0
      %v2180 = vadd.f32 %v1974, %v2179
      %v2181 = vpop.f32.mrf.mxu0
      %2182 = vmatprep.mubr.f32.mxu0 0.0
      %v2183 = vand.u32 %v2055, 4294901760
      %v2184 = vsub.f32 %v2055, %v2183
      %v2185 = vand.u32 %v2184, 4294901760
      %v2186 = vsub.f32 %v2184, %v2185
      %v2187 = vand.u32 %v2186, 4294901760
      %2188 = vmatmul.mubr.f32.gmra.mxu0 %v2187
      %v2189 = vpop.f32.mrf.mxu0
      %v2190 = vadd.f32 %v1979, %v2189
      %v2191 = vpop.f32.mrf.mxu0
      %2192 = vmatprep.mubr.f32.mxu0 0.0
      %v2193 = vand.u32 %v2058, 4294901760
      %v2194 = vsub.f32 %v2058, %v2193
      %v2195 = vand.u32 %v2194, 4294901760
      %v2196 = vsub.f32 %v2194, %v2195
      %v2197 = vand.u32 %v2196, 4294901760
      %2198 = vmatmul.mubr.f32.gmra.mxu0 %v2197
      %v2199 = vpop.f32.mrf.mxu0
      %v2200 = vadd.f32 %v1984, %v2199
      %v2201 = vpop.f32.mrf.mxu0
      %2202 = vmatprep.mubr.f32.mxu0 0.0
      %v2203 = vand.u32 %v2061, 4294901760
      %v2204 = vsub.f32 %v2061, %v2203
      %v2205 = vand.u32 %v2204, 4294901760
      %v2206 = vsub.f32 %v2204, %v2205
      %v2207 = vand.u32 %v2206, 4294901760
      %2208 = vmatmul.mubr.f32.gmra.mxu0 %v2207
      %v2209 = vpop.f32.mrf.mxu0
      %v2210 = vadd.f32 %v1989, %v2209
      %v2211 = vpop.f32.mrf.mxu0
      %2212 = vmatprep.mubr.f32.mxu0 0.0
      %v2213 = vand.u32 %v2064, 4294901760
      %v2214 = vsub.f32 %v2064, %v2213
      %v2215 = vand.u32 %v2214, 4294901760
      %v2216 = vsub.f32 %v2214, %v2215
      %v2217 = vand.u32 %v2216, 4294901760
      %2218 = vmatmul.mubr.f32.gmra.mxu0 %v2217
      %v2219 = vpop.f32.mrf.mxu0
      %v2220 = vadd.f32 %v1994, %v2219
      %v2221 = vpop.f32.mrf.mxu0
      %2222 = vmatprep.mubr.f32.mxu0 0.0
      %v2223 = vand.u32 %v2067, 4294901760
      %v2224 = vsub.f32 %v2067, %v2223
      %v2225 = vand.u32 %v2224, 4294901760
      %v2226 = vsub.f32 %v2224, %v2225
      %v2227 = vand.u32 %v2226, 4294901760
      %2228 = vmatmul.mubr.f32.gmra.mxu0 %v2227
      %v2229 = vpop.f32.mrf.mxu0
      %v2230 = vadd.f32 %v1999, %v2229
      %v2231 = vpop.f32.mrf.mxu0
      %2232 = vmatprep.mubr.f32.mxu0 0.0
      %v2233 = vand.u32 %v2070, 4294901760
      %v2234 = vsub.f32 %v2070, %v2233
      %v2235 = vand.u32 %v2234, 4294901760
      %v2236 = vsub.f32 %v2234, %v2235
      %v2237 = vand.u32 %v2236, 4294901760
      %2238 = vmatmul.mubr.f32.gmra.mxu0 %v2237
      %v2239 = vpop.f32.mrf.mxu0
      %v2240 = vadd.f32 %v2004, %v2239
      %v2241 = vpop.f32.mrf.mxu0
      %2242 = vmatprep.mubr.f32.mxu0 0.0
      %v2243 = vand.u32 %v2073, 4294901760
      %v2244 = vsub.f32 %v2073, %v2243
      %v2245 = vand.u32 %v2244, 4294901760
      %v2246 = vsub.f32 %v2244, %v2245
      %v2247 = vand.u32 %v2246, 4294901760
      %2248 = vmatmul.mubr.f32.gmra.mxu0 %v2247
      %v2249 = vpop.f32.mrf.mxu0
      %v2250 = vadd.f32 %v2009, %v2249
      %v2251 = vpop.f32.mrf.mxu0
      %2252 = vmatprep.mubr.f32.mxu0 0.0
      %v2253 = vand.u32 %v2076, 4294901760
      %v2254 = vsub.f32 %v2076, %v2253
      %v2255 = vand.u32 %v2254, 4294901760
      %v2256 = vsub.f32 %v2254, %v2255
      %v2257 = vand.u32 %v2256, 4294901760
      %2258 = vmatmul.mubr.f32.gmra.mxu0 %v2257
      %v2259 = vpop.f32.mrf.mxu0
      %v2260 = vadd.f32 %v2014, %v2259
      %v2261 = vpop.f32.mrf.mxu0
      %2262 = vmatprep.mubr.f32.mxu0 0.0
      %v2263 = vand.u32 %v2079, 4294901760
      %v2264 = vsub.f32 %v2079, %v2263
      %v2265 = vand.u32 %v2264, 4294901760
      %v2266 = vsub.f32 %v2264, %v2265
      %v2267 = vand.u32 %v2266, 4294901760
      %2268 = vmatmul.mubr.f32.gmra.mxu0 %v2267
      %v2269 = vpop.f32.mrf.mxu0
      %v2270 = vadd.f32 %v2019, %v2269
      %v2271 = vpop.f32.mrf.mxu0
      %2272 = vmatprep.mubr.f32.mxu0 0.0
      %v2273 = vand.u32 %v2082, 4294901760
      %v2274 = vsub.f32 %v2082, %v2273
      %v2275 = vand.u32 %v2274, 4294901760
      %v2276 = vsub.f32 %v2274, %v2275
      %v2277 = vand.u32 %v2276, 4294901760
      %2278 = vmatmul.mubr.f32.gmra.mxu0 %v2277
      %v2279 = vpop.f32.mrf.mxu0
      %v2280 = vadd.f32 %v2024, %v2279
      %v2281 = vpop.f32.mrf.mxu0
      %2282 = vmatprep.mubr.f32.mxu0 0.0
      %v2283 = vand.u32 %v2085, 4294901760
      %v2284 = vsub.f32 %v2085, %v2283
      %v2285 = vand.u32 %v2284, 4294901760
      %v2286 = vsub.f32 %v2284, %v2285
      %v2287 = vand.u32 %v2286, 4294901760
      %2288 = vmatmul.mubr.f32.gmra.mxu0 %v2287
      %v2289 = vpop.f32.mrf.mxu0
      %v2290 = vadd.f32 %v2029, %v2289
      %v2291 = vpop.f32.mrf.mxu0
      %2292 = vmatprep.mubr.f32.mxu0 0.0
      %v2293 = vand.u32 %v2088, 4294901760
      %v2294 = vsub.f32 %v2088, %v2293
      %v2295 = vand.u32 %v2294, 4294901760
      %v2296 = vsub.f32 %v2294, %v2295
      %v2297 = vand.u32 %v2296, 4294901760
      %2298 = vmatmul.mubr.f32.gmra.mxu0 %v2297
      %v2299 = vpop.f32.mrf.mxu0
      %v2300 = vadd.f32 %v2034, %v2299
      %v2301 = vpop.f32.mrf.mxu0
      %2302 = vmatprep.mubr.f32.mxu0 0.0
      %v2303 = vand.u32 %v2091, 4294901760
      %v2304 = vsub.f32 %v2091, %v2303
      %v2305 = vand.u32 %v2304, 4294901760
      %v2306 = vsub.f32 %v2304, %v2305
      %v2307 = vand.u32 %v2306, 4294901760
      %2308 = vmatmul.mubr.f32.gmra.mxu0 %v2307
      %v2309 = vpop.f32.mrf.mxu0
      %v2310 = vadd.f32 %v2039, %v2309
      %v2311 = vpop.f32.mrf.mxu0
      %2312 = vmatprep.mubr.f32.mxu0 0.0
      %v2313 = vand.u32 %v2094, 4294901760
      %v2314 = vsub.f32 %v2094, %v2313
      %v2315 = vand.u32 %v2314, 4294901760
      %v2316 = vsub.f32 %v2314, %v2315
      %v2317 = vand.u32 %v2316, 4294901760
      %2318 = vmatmul.mubr.f32.gmra.mxu0 %v2317
      %v2319 = vpop.f32.mrf.mxu0
      %v2320 = vadd.f32 %v2044, %v2319
      %v2321 = vpop.f32.mrf.mxu0
      %2322 = vdwg.mxu0
      %2323 = vmatprep.subr.mxu0 0.0
      %2324 = vmatpush1.msra.mxu0 0.0
      %2325 = vmatprep.subr.mxu0 0.0
      %2326 = vmatpush1.msra.mxu0 0.0
      %2327 = vmatprep.subr.mxu0 0.0
      %2328 = vmatpush1.msra.mxu0 0.0
      %2329 = vmatprep.subr.mxu0 0.0
      %2330 = vmatpush1.msra.mxu0 0.0
      %2331 = vmatprep.subr.mxu0 0.0
      %2332 = vmatpush1.msra.mxu0 0.0
      %2333 = vmatprep.subr.mxu0 0.0
      %2334 = vmatpush1.msra.mxu0 0.0
      %2335 = vmatprep.subr.mxu0 0.0
      %2336 = vmatpush1.msra.mxu0 0.0
      %2337 = vmatprep.subr.mxu0 0.0
      %2338 = vmatpush1.msra.mxu0 0.0
      %2339 = vmatprep.subr.mxu0 0.0
      %2340 = vmatpush1.msra.mxu0 0.0
      %2341 = vmatprep.subr.mxu0 0.0
      %2342 = vmatpush1.msra.mxu0 0.0
      %2343 = vmatprep.subr.mxu0 0.0
      %2344 = vmatpush1.msra.mxu0 0.0
      %2345 = vmatprep.subr.mxu0 0.0
      %2346 = vmatpush1.msra.mxu0 0.0
      %2347 = vmatprep.subr.mxu0 0.0
      %2348 = vmatpush1.msra.mxu0 0.0
      %2349 = vmatprep.subr.mxu0 0.0
      %2350 = vmatpush1.msra.mxu0 0.0
      %2351 = vmatprep.subr.mxu0 0.0
      %v2352 = vand.u32 %v1829, 4294901760
      %v2353 = vsub.f32 %v1829, %v2352
      %v2354 = vand.u32 %v2353, 4294901760
      %v2355 = vsub.f32 %v2353, %v2354
      %v2356 = vand.u32 %v2355, 4294901760
      %2357 = vmatpush1.msra.mxu0 %v2356
      %2358 = vmatprep.subr.mxu0 0.0
      %v2359 = vand.u32 %v1824, 4294901760
      %v2360 = vsub.f32 %v1824, %v2359
      %v2361 = vand.u32 %v2360, 4294901760
      %v2362 = vsub.f32 %v2360, %v2361
      %v2363 = vand.u32 %v2362, 4294901760
      %2364 = vmatpush1.msra.mxu0 %v2363
      %2365 = vmatprep.subr.mxu0 0.0
      %2366 = vmatpush2.msra.mxu0 0.0
      %2367 = vmatprep.subr.mxu0 0.0
      %2368 = vmatpush2.msra.mxu0 0.0
      %2369 = vmatprep.subr.mxu0 0.0
      %2370 = vmatpush2.msra.mxu0 0.0
      %2371 = vmatprep.subr.mxu0 0.0
      %2372 = vmatpush2.msra.mxu0 0.0
      %2373 = vmatprep.subr.mxu0 0.0
      %2374 = vmatpush2.msra.mxu0 0.0
      %2375 = vmatprep.subr.mxu0 0.0
      %2376 = vmatpush2.msra.mxu0 0.0
      %2377 = vmatprep.subr.mxu0 0.0
      %2378 = vmatpush2.msra.mxu0 0.0
      %2379 = vmatprep.subr.mxu0 0.0
      %2380 = vmatpush2.msra.mxu0 0.0
      %2381 = vmatprep.subr.mxu0 0.0
      %2382 = vmatpush2.msra.mxu0 0.0
      %2383 = vmatprep.subr.mxu0 0.0
      %2384 = vmatpush2.msra.mxu0 0.0
      %2385 = vmatprep.subr.mxu0 0.0
      %2386 = vmatpush2.msra.mxu0 0.0
      %2387 = vmatprep.subr.mxu0 0.0
      %2388 = vmatpush2.msra.mxu0 0.0
      %2389 = vmatprep.subr.mxu0 0.0
      %2390 = vmatpush2.msra.mxu0 0.0
      %2391 = vmatprep.subr.mxu0 0.0
      %2392 = vmatpush2.msra.mxu0 0.0
      %2393 = vmatprep.subr.mxu0 0.0
      %2394 = vmatpush2.msra.mxu0 0.0
      %2395 = vmatprep.subr.mxu0 0.0
      %2396 = vmatpush2.msra.mxu0 0.0
      %2397 = vmatprep.mubr.f32.mxu0 0.0
      %v2398 = vand.u32 %v2049, 4294901760
      %2399 = vmatmul.mubr.f32.gmra.mxu0 %v2398
      %v2400 = vpop.f32.mrf.mxu0
      %v2401 = vadd.f32 %v2170, %v2400
      %v2402 = vpop.f32.mrf.mxu0
      %2403 = vmatprep.mubr.f32.mxu0 0.0
      %v2404 = vand.u32 %v2052, 4294901760
      %2405 = vmatmul.mubr.f32.gmra.mxu0 %v2404
      %v2406 = vpop.f32.mrf.mxu0
      %v2407 = vadd.f32 %v2180, %v2406
      %v2408 = vpop.f32.mrf.mxu0
      %2409 = vmatprep.mubr.f32.mxu0 0.0
      %v2410 = vand.u32 %v2055, 4294901760
      %2411 = vmatmul.mubr.f32.gmra.mxu0 %v2410
      %v2412 = vpop.f32.mrf.mxu0
      %v2413 = vadd.f32 %v2190, %v2412
      %v2414 = vpop.f32.mrf.mxu0
      %2415 = vmatprep.mubr.f32.mxu0 0.0
      %v2416 = vand.u32 %v2058, 4294901760
      %2417 = vmatmul.mubr.f32.gmra.mxu0 %v2416
      %v2418 = vpop.f32.mrf.mxu0
      %v2419 = vadd.f32 %v2200, %v2418
      %v2420 = vpop.f32.mrf.mxu0
      %2421 = vmatprep.mubr.f32.mxu0 0.0
      %v2422 = vand.u32 %v2061, 4294901760
      %2423 = vmatmul.mubr.f32.gmra.mxu0 %v2422
      %v2424 = vpop.f32.mrf.mxu0
      %v2425 = vadd.f32 %v2210, %v2424
      %v2426 = vpop.f32.mrf.mxu0
      %2427 = vmatprep.mubr.f32.mxu0 0.0
      %v2428 = vand.u32 %v2064, 4294901760
      %2429 = vmatmul.mubr.f32.gmra.mxu0 %v2428
      %v2430 = vpop.f32.mrf.mxu0
      %v2431 = vadd.f32 %v2220, %v2430
      %v2432 = vpop.f32.mrf.mxu0
      %2433 = vmatprep.mubr.f32.mxu0 0.0
      %v2434 = vand.u32 %v2067, 4294901760
      %2435 = vmatmul.mubr.f32.gmra.mxu0 %v2434
      %v2436 = vpop.f32.mrf.mxu0
      %v2437 = vadd.f32 %v2230, %v2436
      %v2438 = vpop.f32.mrf.mxu0
      %2439 = vmatprep.mubr.f32.mxu0 0.0
      %v2440 = vand.u32 %v2070, 4294901760
      %2441 = vmatmul.mubr.f32.gmra.mxu0 %v2440
      %v2442 = vpop.f32.mrf.mxu0
      %v2443 = vadd.f32 %v2240, %v2442
      %v2444 = vpop.f32.mrf.mxu0
      %2445 = vmatprep.mubr.f32.mxu0 0.0
      %v2446 = vand.u32 %v2073, 4294901760
      %2447 = vmatmul.mubr.f32.gmra.mxu0 %v2446
      %v2448 = vpop.f32.mrf.mxu0
      %v2449 = vadd.f32 %v2250, %v2448
      %v2450 = vpop.f32.mrf.mxu0
      %2451 = vmatprep.mubr.f32.mxu0 0.0
      %v2452 = vand.u32 %v2076, 4294901760
      %2453 = vmatmul.mubr.f32.gmra.mxu0 %v2452
      %v2454 = vpop.f32.mrf.mxu0
      %v2455 = vadd.f32 %v2260, %v2454
      %v2456 = vpop.f32.mrf.mxu0
      %2457 = vmatprep.mubr.f32.mxu0 0.0
      %v2458 = vand.u32 %v2079, 4294901760
      %2459 = vmatmul.mubr.f32.gmra.mxu0 %v2458
      %v2460 = vpop.f32.mrf.mxu0
      %v2461 = vadd.f32 %v2270, %v2460
      %v2462 = vpop.f32.mrf.mxu0
      %2463 = vmatprep.mubr.f32.mxu0 0.0
      %v2464 = vand.u32 %v2082, 4294901760
      %2465 = vmatmul.mubr.f32.gmra.mxu0 %v2464
      %v2466 = vpop.f32.mrf.mxu0
      %v2467 = vadd.f32 %v2280, %v2466
      %v2468 = vpop.f32.mrf.mxu0
      %2469 = vmatprep.mubr.f32.mxu0 0.0
      %v2470 = vand.u32 %v2085, 4294901760
      %2471 = vmatmul.mubr.f32.gmra.mxu0 %v2470
      %v2472 = vpop.f32.mrf.mxu0
      %v2473 = vadd.f32 %v2290, %v2472
      %v2474 = vpop.f32.mrf.mxu0
      %2475 = vmatprep.mubr.f32.mxu0 0.0
      %v2476 = vand.u32 %v2088, 4294901760
      %2477 = vmatmul.mubr.f32.gmra.mxu0 %v2476
      %v2478 = vpop.f32.mrf.mxu0
      %v2479 = vadd.f32 %v2300, %v2478
      %v2480 = vpop.f32.mrf.mxu0
      %2481 = vmatprep.mubr.f32.mxu0 0.0
      %v2482 = vand.u32 %v2091, 4294901760
      %2483 = vmatmul.mubr.f32.gmra.mxu0 %v2482
      %v2484 = vpop.f32.mrf.mxu0
      %v2485 = vadd.f32 %v2310, %v2484
      %v2486 = vpop.f32.mrf.mxu0
      %2487 = vmatprep.mubr.f32.mxu0 0.0
      %v2488 = vand.u32 %v2094, 4294901760
      %2489 = vmatmul.mubr.f32.gmra.mxu0 %v2488
      %v2490 = vpop.f32.mrf.mxu0
      %v2491 = vadd.f32 %v2320, %v2490
      %v2492 = vpop.f32.mrf.mxu0
      %2493 = vdwg.mxu0
      %2494 = vmatprep.subr.mxu0 0.0
      %2495 = vmatpush1.msra.mxu0 0.0
      %2496 = vmatprep.subr.mxu0 0.0
      %2497 = vmatpush1.msra.mxu0 0.0
      %2498 = vmatprep.subr.mxu0 0.0
      %2499 = vmatpush1.msra.mxu0 0.0
      %2500 = vmatprep.subr.mxu0 0.0
      %2501 = vmatpush1.msra.mxu0 0.0
      %2502 = vmatprep.subr.mxu0 0.0
      %2503 = vmatpush1.msra.mxu0 0.0
      %2504 = vmatprep.subr.mxu0 0.0
      %2505 = vmatpush1.msra.mxu0 0.0
      %2506 = vmatprep.subr.mxu0 0.0
      %2507 = vmatpush1.msra.mxu0 0.0
      %2508 = vmatprep.subr.mxu0 0.0
      %2509 = vmatpush1.msra.mxu0 0.0
      %2510 = vmatprep.subr.mxu0 0.0
      %2511 = vmatpush1.msra.mxu0 0.0
      %2512 = vmatprep.subr.mxu0 0.0
      %2513 = vmatpush1.msra.mxu0 0.0
      %2514 = vmatprep.subr.mxu0 0.0
      %2515 = vmatpush1.msra.mxu0 0.0
      %2516 = vmatprep.subr.mxu0 0.0
      %2517 = vmatpush1.msra.mxu0 0.0
      %2518 = vmatprep.subr.mxu0 0.0
      %2519 = vmatpush1.msra.mxu0 0.0
      %2520 = vmatprep.subr.mxu0 0.0
      %2521 = vmatpush1.msra.mxu0 0.0
      %2522 = vmatprep.subr.mxu0 0.0
      %v2523 = vand.u32 %v1829, 4294901760
      %v2524 = vsub.f32 %v1829, %v2523
      %2525 = vmatpush1.msra.mxu0 %v2524
      %2526 = vmatprep.subr.mxu0 0.0
      %v2527 = vand.u32 %v1824, 4294901760
      %v2528 = vsub.f32 %v1824, %v2527
      %2529 = vmatpush1.msra.mxu0 %v2528
      %2530 = vmatprep.subr.mxu0 0.0
      %2531 = vmatpush2.msra.mxu0 0.0
      %2532 = vmatprep.subr.mxu0 0.0
      %2533 = vmatpush2.msra.mxu0 0.0
      %2534 = vmatprep.subr.mxu0 0.0
      %2535 = vmatpush2.msra.mxu0 0.0
      %2536 = vmatprep.subr.mxu0 0.0
      %2537 = vmatpush2.msra.mxu0 0.0
      %2538 = vmatprep.subr.mxu0 0.0
      %2539 = vmatpush2.msra.mxu0 0.0
      %2540 = vmatprep.subr.mxu0 0.0
      %2541 = vmatpush2.msra.mxu0 0.0
      %2542 = vmatprep.subr.mxu0 0.0
      %2543 = vmatpush2.msra.mxu0 0.0
      %2544 = vmatprep.subr.mxu0 0.0
      %2545 = vmatpush2.msra.mxu0 0.0
      %2546 = vmatprep.subr.mxu0 0.0
      %2547 = vmatpush2.msra.mxu0 0.0
      %2548 = vmatprep.subr.mxu0 0.0
      %2549 = vmatpush2.msra.mxu0 0.0
      %2550 = vmatprep.subr.mxu0 0.0
      %2551 = vmatpush2.msra.mxu0 0.0
      %2552 = vmatprep.subr.mxu0 0.0
      %2553 = vmatpush2.msra.mxu0 0.0
      %2554 = vmatprep.subr.mxu0 0.0
      %2555 = vmatpush2.msra.mxu0 0.0
      %2556 = vmatprep.subr.mxu0 0.0
      %2557 = vmatpush2.msra.mxu0 0.0
      %2558 = vmatprep.subr.mxu0 0.0
      %2559 = vmatpush2.msra.mxu0 0.0
      %2560 = vmatprep.subr.mxu0 0.0
      %2561 = vmatpush2.msra.mxu0 0.0
      %2562 = vmatprep.mubr.f32.mxu0 0.0
      %v2563 = vand.u32 %v2049, 4294901760
      %v2564 = vsub.f32 %v2049, %v2563
      %2565 = vmatmul.mubr.f32.gmra.mxu0 %v2564
      %v2566 = vpop.f32.mrf.mxu0
      %v2567 = vadd.f32 %v2401, %v2566
      %v2568 = vpop.f32.mrf.mxu0
      %2569 = vmatprep.mubr.f32.mxu0 0.0
      %v2570 = vand.u32 %v2052, 4294901760
      %v2571 = vsub.f32 %v2052, %v2570
      %2572 = vmatmul.mubr.f32.gmra.mxu0 %v2571
      %v2573 = vpop.f32.mrf.mxu0
      %v2574 = vadd.f32 %v2407, %v2573
      %v2575 = vpop.f32.mrf.mxu0
      %2576 = vmatprep.mubr.f32.mxu0 0.0
      %v2577 = vand.u32 %v2055, 4294901760
      %v2578 = vsub.f32 %v2055, %v2577
      %2579 = vmatmul.mubr.f32.gmra.mxu0 %v2578
      %v2580 = vpop.f32.mrf.mxu0
      %v2581 = vadd.f32 %v2413, %v2580
      %v2582 = vpop.f32.mrf.mxu0
      %2583 = vmatprep.mubr.f32.mxu0 0.0
      %v2584 = vand.u32 %v2058, 4294901760
      %v2585 = vsub.f32 %v2058, %v2584
      %2586 = vmatmul.mubr.f32.gmra.mxu0 %v2585
      %v2587 = vpop.f32.mrf.mxu0
      %v2588 = vadd.f32 %v2419, %v2587
      %v2589 = vpop.f32.mrf.mxu0
      %2590 = vmatprep.mubr.f32.mxu0 0.0
      %v2591 = vand.u32 %v2061, 4294901760
      %v2592 = vsub.f32 %v2061, %v2591
      %2593 = vmatmul.mubr.f32.gmra.mxu0 %v2592
      %v2594 = vpop.f32.mrf.mxu0
      %v2595 = vadd.f32 %v2425, %v2594
      %v2596 = vpop.f32.mrf.mxu0
      %2597 = vmatprep.mubr.f32.mxu0 0.0
      %v2598 = vand.u32 %v2064, 4294901760
      %v2599 = vsub.f32 %v2064, %v2598
      %2600 = vmatmul.mubr.f32.gmra.mxu0 %v2599
      %v2601 = vpop.f32.mrf.mxu0
      %v2602 = vadd.f32 %v2431, %v2601
      %v2603 = vpop.f32.mrf.mxu0
      %2604 = vmatprep.mubr.f32.mxu0 0.0
      %v2605 = vand.u32 %v2067, 4294901760
      %v2606 = vsub.f32 %v2067, %v2605
      %2607 = vmatmul.mubr.f32.gmra.mxu0 %v2606
      %v2608 = vpop.f32.mrf.mxu0
      %v2609 = vadd.f32 %v2437, %v2608
      %v2610 = vpop.f32.mrf.mxu0
      %2611 = vmatprep.mubr.f32.mxu0 0.0
      %v2612 = vand.u32 %v2070, 4294901760
      %v2613 = vsub.f32 %v2070, %v2612
      %2614 = vmatmul.mubr.f32.gmra.mxu0 %v2613
      %v2615 = vpop.f32.mrf.mxu0
      %v2616 = vadd.f32 %v2443, %v2615
      %v2617 = vpop.f32.mrf.mxu0
      %2618 = vmatprep.mubr.f32.mxu0 0.0
      %v2619 = vand.u32 %v2073, 4294901760
      %v2620 = vsub.f32 %v2073, %v2619
      %2621 = vmatmul.mubr.f32.gmra.mxu0 %v2620
      %v2622 = vpop.f32.mrf.mxu0
      %v2623 = vadd.f32 %v2449, %v2622
      %v2624 = vpop.f32.mrf.mxu0
      %2625 = vmatprep.mubr.f32.mxu0 0.0
      %v2626 = vand.u32 %v2076, 4294901760
      %v2627 = vsub.f32 %v2076, %v2626
      %2628 = vmatmul.mubr.f32.gmra.mxu0 %v2627
      %v2629 = vpop.f32.mrf.mxu0
      %v2630 = vadd.f32 %v2455, %v2629
      %v2631 = vpop.f32.mrf.mxu0
      %2632 = vmatprep.mubr.f32.mxu0 0.0
      %v2633 = vand.u32 %v2079, 4294901760
      %v2634 = vsub.f32 %v2079, %v2633
      %2635 = vmatmul.mubr.f32.gmra.mxu0 %v2634
      %v2636 = vpop.f32.mrf.mxu0
      %v2637 = vadd.f32 %v2461, %v2636
      %v2638 = vpop.f32.mrf.mxu0
      %2639 = vmatprep.mubr.f32.mxu0 0.0
      %v2640 = vand.u32 %v2082, 4294901760
      %v2641 = vsub.f32 %v2082, %v2640
      %2642 = vmatmul.mubr.f32.gmra.mxu0 %v2641
      %v2643 = vpop.f32.mrf.mxu0
      %v2644 = vadd.f32 %v2467, %v2643
      %v2645 = vpop.f32.mrf.mxu0
      %2646 = vmatprep.mubr.f32.mxu0 0.0
      %v2647 = vand.u32 %v2085, 4294901760
      %v2648 = vsub.f32 %v2085, %v2647
      %2649 = vmatmul.mubr.f32.gmra.mxu0 %v2648
      %v2650 = vpop.f32.mrf.mxu0
      %v2651 = vadd.f32 %v2473, %v2650
      %v2652 = vpop.f32.mrf.mxu0
      %2653 = vmatprep.mubr.f32.mxu0 0.0
      %v2654 = vand.u32 %v2088, 4294901760
      %v2655 = vsub.f32 %v2088, %v2654
      %2656 = vmatmul.mubr.f32.gmra.mxu0 %v2655
      %v2657 = vpop.f32.mrf.mxu0
      %v2658 = vadd.f32 %v2479, %v2657
      %v2659 = vpop.f32.mrf.mxu0
      %2660 = vmatprep.mubr.f32.mxu0 0.0
      %v2661 = vand.u32 %v2091, 4294901760
      %v2662 = vsub.f32 %v2091, %v2661
      %2663 = vmatmul.mubr.f32.gmra.mxu0 %v2662
      %v2664 = vpop.f32.mrf.mxu0
      %v2665 = vadd.f32 %v2485, %v2664
      %v2666 = vpop.f32.mrf.mxu0
      %2667 = vmatprep.mubr.f32.mxu0 0.0
      %v2668 = vand.u32 %v2094, 4294901760
      %v2669 = vsub.f32 %v2094, %v2668
      %2670 = vmatmul.mubr.f32.gmra.mxu0 %v2669
      %v2671 = vpop.f32.mrf.mxu0
      %v2672 = vadd.f32 %v2491, %v2671
      %v2673 = vpop.f32.mrf.mxu0
      %2674 = vdwg.mxu0
      %2675 = vmatprep.subr.mxu0 0.0
      %2676 = vmatpush1.msra.mxu0 0.0
      %2677 = vmatprep.subr.mxu0 0.0
      %2678 = vmatpush1.msra.mxu0 0.0
      %2679 = vmatprep.subr.mxu0 0.0
      %2680 = vmatpush1.msra.mxu0 0.0
      %2681 = vmatprep.subr.mxu0 0.0
      %2682 = vmatpush1.msra.mxu0 0.0
      %2683 = vmatprep.subr.mxu0 0.0
      %2684 = vmatpush1.msra.mxu0 0.0
      %2685 = vmatprep.subr.mxu0 0.0
      %2686 = vmatpush1.msra.mxu0 0.0
      %2687 = vmatprep.subr.mxu0 0.0
      %2688 = vmatpush1.msra.mxu0 0.0
      %2689 = vmatprep.subr.mxu0 0.0
      %2690 = vmatpush1.msra.mxu0 0.0
      %2691 = vmatprep.subr.mxu0 0.0
      %2692 = vmatpush1.msra.mxu0 0.0
      %2693 = vmatprep.subr.mxu0 0.0
      %2694 = vmatpush1.msra.mxu0 0.0
      %2695 = vmatprep.subr.mxu0 0.0
      %2696 = vmatpush1.msra.mxu0 0.0
      %2697 = vmatprep.subr.mxu0 0.0
      %2698 = vmatpush1.msra.mxu0 0.0
      %2699 = vmatprep.subr.mxu0 0.0
      %2700 = vmatpush1.msra.mxu0 0.0
      %2701 = vmatprep.subr.mxu0 0.0
      %2702 = vmatpush1.msra.mxu0 0.0
      %2703 = vmatprep.subr.mxu0 0.0
      %v2704 = vand.u32 %v1829, 4294901760
      %2705 = vmatpush1.msra.mxu0 %v2704
      %2706 = vmatprep.subr.mxu0 0.0
      %v2707 = vand.u32 %v1824, 4294901760
      %2708 = vmatpush1.msra.mxu0 %v2707
      %2709 = vmatprep.subr.mxu0 0.0
      %2710 = vmatpush2.msra.mxu0 0.0
      %2711 = vmatprep.subr.mxu0 0.0
      %2712 = vmatpush2.msra.mxu0 0.0
      %2713 = vmatprep.subr.mxu0 0.0
      %2714 = vmatpush2.msra.mxu0 0.0
      %2715 = vmatprep.subr.mxu0 0.0
      %2716 = vmatpush2.msra.mxu0 0.0
      %2717 = vmatprep.subr.mxu0 0.0
      %2718 = vmatpush2.msra.mxu0 0.0
      %2719 = vmatprep.subr.mxu0 0.0
      %2720 = vmatpush2.msra.mxu0 0.0
      %2721 = vmatprep.subr.mxu0 0.0
      %2722 = vmatpush2.msra.mxu0 0.0
      %2723 = vmatprep.subr.mxu0 0.0
      %2724 = vmatpush2.msra.mxu0 0.0
      %2725 = vmatprep.subr.mxu0 0.0
      %2726 = vmatpush2.msra.mxu0 0.0
      %2727 = vmatprep.subr.mxu0 0.0
      %2728 = vmatpush2.msra.mxu0 0.0
      %2729 = vmatprep.subr.mxu0 0.0
      %2730 = vmatpush2.msra.mxu0 0.0
      %2731 = vmatprep.subr.mxu0 0.0
      %2732 = vmatpush2.msra.mxu0 0.0
      %2733 = vmatprep.subr.mxu0 0.0
      %2734 = vmatpush2.msra.mxu0 0.0
      %2735 = vmatprep.subr.mxu0 0.0
      %2736 = vmatpush2.msra.mxu0 0.0
      %2737 = vmatprep.subr.mxu0 0.0
      %2738 = vmatpush2.msra.mxu0 0.0
      %2739 = vmatprep.subr.mxu0 0.0
      %2740 = vmatpush2.msra.mxu0 0.0
      %2741 = vmatprep.mubr.f32.mxu0 0.0
      %v2742 = vand.u32 %v2049, 4294901760
      %v2743 = vsub.f32 %v2049, %v2742
      %v2744 = vand.u32 %v2743, 4294901760
      %2745 = vmatmul.mubr.f32.gmra.mxu0 %v2744
      %v2746 = vpop.f32.mrf.mxu0
      %v2747 = vadd.f32 %v2567, %v2746
      %v2748 = vpop.f32.mrf.mxu0
      %2749 = vmatprep.mubr.f32.mxu0 0.0
      %v2750 = vand.u32 %v2052, 4294901760
      %v2751 = vsub.f32 %v2052, %v2750
      %v2752 = vand.u32 %v2751, 4294901760
      %2753 = vmatmul.mubr.f32.gmra.mxu0 %v2752
      %v2754 = vpop.f32.mrf.mxu0
      %v2755 = vadd.f32 %v2574, %v2754
      %v2756 = vpop.f32.mrf.mxu0
      %2757 = vmatprep.mubr.f32.mxu0 0.0
      %v2758 = vand.u32 %v2055, 4294901760
      %v2759 = vsub.f32 %v2055, %v2758
      %v2760 = vand.u32 %v2759, 4294901760
      %2761 = vmatmul.mubr.f32.gmra.mxu0 %v2760
      %v2762 = vpop.f32.mrf.mxu0
      %v2763 = vadd.f32 %v2581, %v2762
      %v2764 = vpop.f32.mrf.mxu0
      %2765 = vmatprep.mubr.f32.mxu0 0.0
      %v2766 = vand.u32 %v2058, 4294901760
      %v2767 = vsub.f32 %v2058, %v2766
      %v2768 = vand.u32 %v2767, 4294901760
      %2769 = vmatmul.mubr.f32.gmra.mxu0 %v2768
      %v2770 = vpop.f32.mrf.mxu0
      %v2771 = vadd.f32 %v2588, %v2770
      %v2772 = vpop.f32.mrf.mxu0
      %2773 = vmatprep.mubr.f32.mxu0 0.0
      %v2774 = vand.u32 %v2061, 4294901760
      %v2775 = vsub.f32 %v2061, %v2774
      %v2776 = vand.u32 %v2775, 4294901760
      %2777 = vmatmul.mubr.f32.gmra.mxu0 %v2776
      %v2778 = vpop.f32.mrf.mxu0
      %v2779 = vadd.f32 %v2595, %v2778
      %v2780 = vpop.f32.mrf.mxu0
      %2781 = vmatprep.mubr.f32.mxu0 0.0
      %v2782 = vand.u32 %v2064, 4294901760
      %v2783 = vsub.f32 %v2064, %v2782
      %v2784 = vand.u32 %v2783, 4294901760
      %2785 = vmatmul.mubr.f32.gmra.mxu0 %v2784
      %v2786 = vpop.f32.mrf.mxu0
      %v2787 = vadd.f32 %v2602, %v2786
      %v2788 = vpop.f32.mrf.mxu0
      %2789 = vmatprep.mubr.f32.mxu0 0.0
      %v2790 = vand.u32 %v2067, 4294901760
      %v2791 = vsub.f32 %v2067, %v2790
      %v2792 = vand.u32 %v2791, 4294901760
      %2793 = vmatmul.mubr.f32.gmra.mxu0 %v2792
      %v2794 = vpop.f32.mrf.mxu0
      %v2795 = vadd.f32 %v2609, %v2794
      %v2796 = vpop.f32.mrf.mxu0
      %2797 = vmatprep.mubr.f32.mxu0 0.0
      %v2798 = vand.u32 %v2070, 4294901760
      %v2799 = vsub.f32 %v2070, %v2798
      %v2800 = vand.u32 %v2799, 4294901760
      %2801 = vmatmul.mubr.f32.gmra.mxu0 %v2800
      %v2802 = vpop.f32.mrf.mxu0
      %v2803 = vadd.f32 %v2616, %v2802
      %v2804 = vpop.f32.mrf.mxu0
      %2805 = vmatprep.mubr.f32.mxu0 0.0
      %v2806 = vand.u32 %v2073, 4294901760
      %v2807 = vsub.f32 %v2073, %v2806
      %v2808 = vand.u32 %v2807, 4294901760
      %2809 = vmatmul.mubr.f32.gmra.mxu0 %v2808
      %v2810 = vpop.f32.mrf.mxu0
      %v2811 = vadd.f32 %v2623, %v2810
      %v2812 = vpop.f32.mrf.mxu0
      %2813 = vmatprep.mubr.f32.mxu0 0.0
      %v2814 = vand.u32 %v2076, 4294901760
      %v2815 = vsub.f32 %v2076, %v2814
      %v2816 = vand.u32 %v2815, 4294901760
      %2817 = vmatmul.mubr.f32.gmra.mxu0 %v2816
      %v2818 = vpop.f32.mrf.mxu0
      %v2819 = vadd.f32 %v2630, %v2818
      %v2820 = vpop.f32.mrf.mxu0
      %2821 = vmatprep.mubr.f32.mxu0 0.0
      %v2822 = vand.u32 %v2079, 4294901760
      %v2823 = vsub.f32 %v2079, %v2822
      %v2824 = vand.u32 %v2823, 4294901760
      %2825 = vmatmul.mubr.f32.gmra.mxu0 %v2824
      %v2826 = vpop.f32.mrf.mxu0
      %v2827 = vadd.f32 %v2637, %v2826
      %v2828 = vpop.f32.mrf.mxu0
      %2829 = vmatprep.mubr.f32.mxu0 0.0
      %v2830 = vand.u32 %v2082, 4294901760
      %v2831 = vsub.f32 %v2082, %v2830
      %v2832 = vand.u32 %v2831, 4294901760
      %2833 = vmatmul.mubr.f32.gmra.mxu0 %v2832
      %v2834 = vpop.f32.mrf.mxu0
      %v2835 = vadd.f32 %v2644, %v2834
      %v2836 = vpop.f32.mrf.mxu0
      %2837 = vmatprep.mubr.f32.mxu0 0.0
      %v2838 = vand.u32 %v2085, 4294901760
      %v2839 = vsub.f32 %v2085, %v2838
      %v2840 = vand.u32 %v2839, 4294901760
      %2841 = vmatmul.mubr.f32.gmra.mxu0 %v2840
      %v2842 = vpop.f32.mrf.mxu0
      %v2843 = vadd.f32 %v2651, %v2842
      %v2844 = vpop.f32.mrf.mxu0
      %2845 = vmatprep.mubr.f32.mxu0 0.0
      %v2846 = vand.u32 %v2088, 4294901760
      %v2847 = vsub.f32 %v2088, %v2846
      %v2848 = vand.u32 %v2847, 4294901760
      %2849 = vmatmul.mubr.f32.gmra.mxu0 %v2848
      %v2850 = vpop.f32.mrf.mxu0
      %v2851 = vadd.f32 %v2658, %v2850
      %v2852 = vpop.f32.mrf.mxu0
      %2853 = vmatprep.mubr.f32.mxu0 0.0
      %v2854 = vand.u32 %v2091, 4294901760
      %v2855 = vsub.f32 %v2091, %v2854
      %v2856 = vand.u32 %v2855, 4294901760
      %2857 = vmatmul.mubr.f32.gmra.mxu0 %v2856
      %v2858 = vpop.f32.mrf.mxu0
      %v2859 = vadd.f32 %v2665, %v2858
      %v2860 = vpop.f32.mrf.mxu0
      %2861 = vmatprep.mubr.f32.mxu0 0.0
      %v2862 = vand.u32 %v2094, 4294901760
      %v2863 = vsub.f32 %v2094, %v2862
      %v2864 = vand.u32 %v2863, 4294901760
      %2865 = vmatmul.mubr.f32.gmra.mxu0 %v2864
      %v2866 = vpop.f32.mrf.mxu0
      %v2867 = vadd.f32 %v2672, %v2866
      %v2868 = vpop.f32.mrf.mxu0
      %2869 = vdwg.mxu0
      %2870 = vmatprep.subr.mxu0 0.0
      %2871 = vmatpush1.msra.mxu0 0.0
      %2872 = vmatprep.subr.mxu0 0.0
      %2873 = vmatpush1.msra.mxu0 0.0
      %2874 = vmatprep.subr.mxu0 0.0
      %2875 = vmatpush1.msra.mxu0 0.0
      %2876 = vmatprep.subr.mxu0 0.0
      %2877 = vmatpush1.msra.mxu0 0.0
      %2878 = vmatprep.subr.mxu0 0.0
      %2879 = vmatpush1.msra.mxu0 0.0
      %2880 = vmatprep.subr.mxu0 0.0
      %2881 = vmatpush1.msra.mxu0 0.0
      %2882 = vmatprep.subr.mxu0 0.0
      %2883 = vmatpush1.msra.mxu0 0.0
      %2884 = vmatprep.subr.mxu0 0.0
      %2885 = vmatpush1.msra.mxu0 0.0
      %2886 = vmatprep.subr.mxu0 0.0
      %2887 = vmatpush1.msra.mxu0 0.0
      %2888 = vmatprep.subr.mxu0 0.0
      %2889 = vmatpush1.msra.mxu0 0.0
      %2890 = vmatprep.subr.mxu0 0.0
      %2891 = vmatpush1.msra.mxu0 0.0
      %2892 = vmatprep.subr.mxu0 0.0
      %2893 = vmatpush1.msra.mxu0 0.0
      %2894 = vmatprep.subr.mxu0 0.0
      %2895 = vmatpush1.msra.mxu0 0.0
      %2896 = vmatprep.subr.mxu0 0.0
      %2897 = vmatpush1.msra.mxu0 0.0
      %2898 = vmatprep.subr.mxu0 0.0
      %v2899 = vand.u32 %v1829, 4294901760
      %v2900 = vsub.f32 %v1829, %v2899
      %v2901 = vand.u32 %v2900, 4294901760
      %2902 = vmatpush1.msra.mxu0 %v2901
      %2903 = vmatprep.subr.mxu0 0.0
      %v2904 = vand.u32 %v1824, 4294901760
      %v2905 = vsub.f32 %v1824, %v2904
      %v2906 = vand.u32 %v2905, 4294901760
      %2907 = vmatpush1.msra.mxu0 %v2906
      %2908 = vmatprep.subr.mxu0 0.0
      %2909 = vmatpush2.msra.mxu0 0.0
      %2910 = vmatprep.subr.mxu0 0.0
      %2911 = vmatpush2.msra.mxu0 0.0
      %2912 = vmatprep.subr.mxu0 0.0
      %2913 = vmatpush2.msra.mxu0 0.0
      %2914 = vmatprep.subr.mxu0 0.0
      %2915 = vmatpush2.msra.mxu0 0.0
      %2916 = vmatprep.subr.mxu0 0.0
      %2917 = vmatpush2.msra.mxu0 0.0
      %2918 = vmatprep.subr.mxu0 0.0
      %2919 = vmatpush2.msra.mxu0 0.0
      %2920 = vmatprep.subr.mxu0 0.0
      %2921 = vmatpush2.msra.mxu0 0.0
      %2922 = vmatprep.subr.mxu0 0.0
      %2923 = vmatpush2.msra.mxu0 0.0
      %2924 = vmatprep.subr.mxu0 0.0
      %2925 = vmatpush2.msra.mxu0 0.0
      %2926 = vmatprep.subr.mxu0 0.0
      %2927 = vmatpush2.msra.mxu0 0.0
      %2928 = vmatprep.subr.mxu0 0.0
      %2929 = vmatpush2.msra.mxu0 0.0
      %2930 = vmatprep.subr.mxu0 0.0
      %2931 = vmatpush2.msra.mxu0 0.0
      %2932 = vmatprep.subr.mxu0 0.0
      %2933 = vmatpush2.msra.mxu0 0.0
      %2934 = vmatprep.subr.mxu0 0.0
      %2935 = vmatpush2.msra.mxu0 0.0
      %2936 = vmatprep.subr.mxu0 0.0
      %2937 = vmatpush2.msra.mxu0 0.0
      %2938 = vmatprep.subr.mxu0 0.0
      %2939 = vmatpush2.msra.mxu0 0.0
      %2940 = vmatprep.mubr.f32.mxu0 0.0
      %v2941 = vand.u32 %v2049, 4294901760
      %2942 = vmatmul.mubr.f32.gmra.mxu0 %v2941
      %v2943 = vpop.f32.mrf.mxu0
      %v2944 = vadd.f32 %v2747, %v2943
      %v2945 = vpop.f32.mrf.mxu0
      %2946 = vmatprep.mubr.f32.mxu0 0.0
      %v2947 = vand.u32 %v2052, 4294901760
      %2948 = vmatmul.mubr.f32.gmra.mxu0 %v2947
      %v2949 = vpop.f32.mrf.mxu0
      %v2950 = vadd.f32 %v2755, %v2949
      %v2951 = vpop.f32.mrf.mxu0
      %2952 = vmatprep.mubr.f32.mxu0 0.0
      %v2953 = vand.u32 %v2055, 4294901760
      %2954 = vmatmul.mubr.f32.gmra.mxu0 %v2953
      %v2955 = vpop.f32.mrf.mxu0
      %v2956 = vadd.f32 %v2763, %v2955
      %v2957 = vpop.f32.mrf.mxu0
      %2958 = vmatprep.mubr.f32.mxu0 0.0
      %v2959 = vand.u32 %v2058, 4294901760
      %2960 = vmatmul.mubr.f32.gmra.mxu0 %v2959
      %v2961 = vpop.f32.mrf.mxu0
      %v2962 = vadd.f32 %v2771, %v2961
      %v2963 = vpop.f32.mrf.mxu0
      %2964 = vmatprep.mubr.f32.mxu0 0.0
      %v2965 = vand.u32 %v2061, 4294901760
      %2966 = vmatmul.mubr.f32.gmra.mxu0 %v2965
      %v2967 = vpop.f32.mrf.mxu0
      %v2968 = vadd.f32 %v2779, %v2967
      %v2969 = vpop.f32.mrf.mxu0
      %2970 = vmatprep.mubr.f32.mxu0 0.0
      %v2971 = vand.u32 %v2064, 4294901760
      %2972 = vmatmul.mubr.f32.gmra.mxu0 %v2971
      %v2973 = vpop.f32.mrf.mxu0
      %v2974 = vadd.f32 %v2787, %v2973
      %v2975 = vpop.f32.mrf.mxu0
      %2976 = vmatprep.mubr.f32.mxu0 0.0
      %v2977 = vand.u32 %v2067, 4294901760
      %2978 = vmatmul.mubr.f32.gmra.mxu0 %v2977
      %v2979 = vpop.f32.mrf.mxu0
      %v2980 = vadd.f32 %v2795, %v2979
      %v2981 = vpop.f32.mrf.mxu0
      %2982 = vmatprep.mubr.f32.mxu0 0.0
      %v2983 = vand.u32 %v2070, 4294901760
      %2984 = vmatmul.mubr.f32.gmra.mxu0 %v2983
      %v2985 = vpop.f32.mrf.mxu0
      %v2986 = vadd.f32 %v2803, %v2985
      %v2987 = vpop.f32.mrf.mxu0
      %2988 = vmatprep.mubr.f32.mxu0 0.0
      %v2989 = vand.u32 %v2073, 4294901760
      %2990 = vmatmul.mubr.f32.gmra.mxu0 %v2989
      %v2991 = vpop.f32.mrf.mxu0
      %v2992 = vadd.f32 %v2811, %v2991
      %v2993 = vpop.f32.mrf.mxu0
      %2994 = vmatprep.mubr.f32.mxu0 0.0
      %v2995 = vand.u32 %v2076, 4294901760
      %2996 = vmatmul.mubr.f32.gmra.mxu0 %v2995
      %v2997 = vpop.f32.mrf.mxu0
      %v2998 = vadd.f32 %v2819, %v2997
      %v2999 = vpop.f32.mrf.mxu0
      %3000 = vmatprep.mubr.f32.mxu0 0.0
      %v3001 = vand.u32 %v2079, 4294901760
      %3002 = vmatmul.mubr.f32.gmra.mxu0 %v3001
      %v3003 = vpop.f32.mrf.mxu0
      %v3004 = vadd.f32 %v2827, %v3003
      %v3005 = vpop.f32.mrf.mxu0
      %3006 = vmatprep.mubr.f32.mxu0 0.0
      %v3007 = vand.u32 %v2082, 4294901760
      %3008 = vmatmul.mubr.f32.gmra.mxu0 %v3007
      %v3009 = vpop.f32.mrf.mxu0
      %v3010 = vadd.f32 %v2835, %v3009
      %v3011 = vpop.f32.mrf.mxu0
      %3012 = vmatprep.mubr.f32.mxu0 0.0
      %v3013 = vand.u32 %v2085, 4294901760
      %3014 = vmatmul.mubr.f32.gmra.mxu0 %v3013
      %v3015 = vpop.f32.mrf.mxu0
      %v3016 = vadd.f32 %v2843, %v3015
      %v3017 = vpop.f32.mrf.mxu0
      %3018 = vmatprep.mubr.f32.mxu0 0.0
      %v3019 = vand.u32 %v2088, 4294901760
      %3020 = vmatmul.mubr.f32.gmra.mxu0 %v3019
      %v3021 = vpop.f32.mrf.mxu0
      %v3022 = vadd.f32 %v2851, %v3021
      %v3023 = vpop.f32.mrf.mxu0
      %3024 = vmatprep.mubr.f32.mxu0 0.0
      %v3025 = vand.u32 %v2091, 4294901760
      %3026 = vmatmul.mubr.f32.gmra.mxu0 %v3025
      %v3027 = vpop.f32.mrf.mxu0
      %v3028 = vadd.f32 %v2859, %v3027
      %v3029 = vpop.f32.mrf.mxu0
      %3030 = vmatprep.mubr.f32.mxu0 0.0
      %v3031 = vand.u32 %v2094, 4294901760
      %3032 = vmatmul.mubr.f32.gmra.mxu0 %v3031
      %v3033 = vpop.f32.mrf.mxu0
      %v3034 = vadd.f32 %v2867, %v3033
      %v3035 = vpop.f32.mrf.mxu0
      %3036 = vdwg.mxu0
      %3037 = vmatprep.subr.mxu0 0.0
      %3038 = vmatpush1.msra.mxu0 0.0
      %3039 = vmatprep.subr.mxu0 0.0
      %3040 = vmatpush1.msra.mxu0 0.0
      %3041 = vmatprep.subr.mxu0 0.0
      %3042 = vmatpush1.msra.mxu0 0.0
      %3043 = vmatprep.subr.mxu0 0.0
      %3044 = vmatpush1.msra.mxu0 0.0
      %3045 = vmatprep.subr.mxu0 0.0
      %3046 = vmatpush1.msra.mxu0 0.0
      %3047 = vmatprep.subr.mxu0 0.0
      %3048 = vmatpush1.msra.mxu0 0.0
      %3049 = vmatprep.subr.mxu0 0.0
      %3050 = vmatpush1.msra.mxu0 0.0
      %3051 = vmatprep.subr.mxu0 0.0
      %3052 = vmatpush1.msra.mxu0 0.0
      %3053 = vmatprep.subr.mxu0 0.0
      %3054 = vmatpush1.msra.mxu0 0.0
      %3055 = vmatprep.subr.mxu0 0.0
      %3056 = vmatpush1.msra.mxu0 0.0
      %3057 = vmatprep.subr.mxu0 0.0
      %3058 = vmatpush1.msra.mxu0 0.0
      %3059 = vmatprep.subr.mxu0 0.0
      %3060 = vmatpush1.msra.mxu0 0.0
      %3061 = vmatprep.subr.mxu0 0.0
      %3062 = vmatpush1.msra.mxu0 0.0
      %3063 = vmatprep.subr.mxu0 0.0
      %3064 = vmatpush1.msra.mxu0 0.0
      %3065 = vmatprep.subr.mxu0 0.0
      %v3066 = vand.u32 %v1829, 4294901760
      %3067 = vmatpush1.msra.mxu0 %v3066
      %3068 = vmatprep.subr.mxu0 0.0
      %v3069 = vand.u32 %v1824, 4294901760
      %3070 = vmatpush1.msra.mxu0 %v3069
      %3071 = vmatprep.subr.mxu0 0.0
      %3072 = vmatpush2.msra.mxu0 0.0
      %3073 = vmatprep.subr.mxu0 0.0
      %3074 = vmatpush2.msra.mxu0 0.0
      %3075 = vmatprep.subr.mxu0 0.0
      %3076 = vmatpush2.msra.mxu0 0.0
      %3077 = vmatprep.subr.mxu0 0.0
      %3078 = vmatpush2.msra.mxu0 0.0
      %3079 = vmatprep.subr.mxu0 0.0
      %3080 = vmatpush2.msra.mxu0 0.0
      %3081 = vmatprep.subr.mxu0 0.0
      %3082 = vmatpush2.msra.mxu0 0.0
      %3083 = vmatprep.subr.mxu0 0.0
      %3084 = vmatpush2.msra.mxu0 0.0
      %3085 = vmatprep.subr.mxu0 0.0
      %3086 = vmatpush2.msra.mxu0 0.0
      %3087 = vmatprep.subr.mxu0 0.0
      %3088 = vmatpush2.msra.mxu0 0.0
      %3089 = vmatprep.subr.mxu0 0.0
      %3090 = vmatpush2.msra.mxu0 0.0
      %3091 = vmatprep.subr.mxu0 0.0
      %3092 = vmatpush2.msra.mxu0 0.0
      %3093 = vmatprep.subr.mxu0 0.0
      %3094 = vmatpush2.msra.mxu0 0.0
      %3095 = vmatprep.subr.mxu0 0.0
      %3096 = vmatpush2.msra.mxu0 0.0
      %3097 = vmatprep.subr.mxu0 0.0
      %3098 = vmatpush2.msra.mxu0 0.0
      %3099 = vmatprep.subr.mxu0 0.0
      %3100 = vmatpush2.msra.mxu0 0.0
      %3101 = vmatprep.subr.mxu0 0.0
      %3102 = vmatpush2.msra.mxu0 0.0
      %3103 = vmatprep.mubr.f32.mxu0 0.0
      %v3104 = vand.u32 %v2049, 4294901760
      %3105 = vmatmul.mubr.f32.gmra.mxu0 %v3104
      %v3106 = vpop.f32.mrf.mxu0
      %v3107 = vadd.f32 %v2944, %v3106
      %v3108 = vpop.f32.mrf.mxu0
      %3109 = vmatprep.mubr.f32.mxu0 0.0
      %v3110 = vand.u32 %v2052, 4294901760
      %3111 = vmatmul.mubr.f32.gmra.mxu0 %v3110
      %v3112 = vpop.f32.mrf.mxu0
      %v3113 = vadd.f32 %v2950, %v3112
      %v3114 = vpop.f32.mrf.mxu0
      %3115 = vmatprep.mubr.f32.mxu0 0.0
      %v3116 = vand.u32 %v2055, 4294901760
      %3117 = vmatmul.mubr.f32.gmra.mxu0 %v3116
      %v3118 = vpop.f32.mrf.mxu0
      %v3119 = vadd.f32 %v2956, %v3118
      %v3120 = vpop.f32.mrf.mxu0
      %3121 = vmatprep.mubr.f32.mxu0 0.0
      %v3122 = vand.u32 %v2058, 4294901760
      %3123 = vmatmul.mubr.f32.gmra.mxu0 %v3122
      %v3124 = vpop.f32.mrf.mxu0
      %v3125 = vadd.f32 %v2962, %v3124
      %v3126 = vpop.f32.mrf.mxu0
      %3127 = vmatprep.mubr.f32.mxu0 0.0
      %v3128 = vand.u32 %v2061, 4294901760
      %3129 = vmatmul.mubr.f32.gmra.mxu0 %v3128
      %v3130 = vpop.f32.mrf.mxu0
      %v3131 = vadd.f32 %v2968, %v3130
      %v3132 = vpop.f32.mrf.mxu0
      %3133 = vmatprep.mubr.f32.mxu0 0.0
      %v3134 = vand.u32 %v2064, 4294901760
      %3135 = vmatmul.mubr.f32.gmra.mxu0 %v3134
      %v3136 = vpop.f32.mrf.mxu0
      %v3137 = vadd.f32 %v2974, %v3136
      %v3138 = vpop.f32.mrf.mxu0
      %3139 = vmatprep.mubr.f32.mxu0 0.0
      %v3140 = vand.u32 %v2067, 4294901760
      %3141 = vmatmul.mubr.f32.gmra.mxu0 %v3140
      %v3142 = vpop.f32.mrf.mxu0
      %v3143 = vadd.f32 %v2980, %v3142
      %v3144 = vpop.f32.mrf.mxu0
      %3145 = vmatprep.mubr.f32.mxu0 0.0
      %v3146 = vand.u32 %v2070, 4294901760
      %3147 = vmatmul.mubr.f32.gmra.mxu0 %v3146
      %v3148 = vpop.f32.mrf.mxu0
      %v3149 = vadd.f32 %v2986, %v3148
      %v3150 = vpop.f32.mrf.mxu0
      %3151 = vmatprep.mubr.f32.mxu0 0.0
      %v3152 = vand.u32 %v2073, 4294901760
      %3153 = vmatmul.mubr.f32.gmra.mxu0 %v3152
      %v3154 = vpop.f32.mrf.mxu0
      %v3155 = vadd.f32 %v2992, %v3154
      %v3156 = vpop.f32.mrf.mxu0
      %3157 = vmatprep.mubr.f32.mxu0 0.0
      %v3158 = vand.u32 %v2076, 4294901760
      %3159 = vmatmul.mubr.f32.gmra.mxu0 %v3158
      %v3160 = vpop.f32.mrf.mxu0
      %v3161 = vadd.f32 %v2998, %v3160
      %v3162 = vpop.f32.mrf.mxu0
      %3163 = vmatprep.mubr.f32.mxu0 0.0
      %v3164 = vand.u32 %v2079, 4294901760
      %3165 = vmatmul.mubr.f32.gmra.mxu0 %v3164
      %v3166 = vpop.f32.mrf.mxu0
      %v3167 = vadd.f32 %v3004, %v3166
      %v3168 = vpop.f32.mrf.mxu0
      %3169 = vmatprep.mubr.f32.mxu0 0.0
      %v3170 = vand.u32 %v2082, 4294901760
      %3171 = vmatmul.mubr.f32.gmra.mxu0 %v3170
      %v3172 = vpop.f32.mrf.mxu0
      %v3173 = vadd.f32 %v3010, %v3172
      %v3174 = vpop.f32.mrf.mxu0
      %3175 = vmatprep.mubr.f32.mxu0 0.0
      %v3176 = vand.u32 %v2085, 4294901760
      %3177 = vmatmul.mubr.f32.gmra.mxu0 %v3176
      %v3178 = vpop.f32.mrf.mxu0
      %v3179 = vadd.f32 %v3016, %v3178
      %v3180 = vpop.f32.mrf.mxu0
      %3181 = vmatprep.mubr.f32.mxu0 0.0
      %v3182 = vand.u32 %v2088, 4294901760
      %3183 = vmatmul.mubr.f32.gmra.mxu0 %v3182
      %v3184 = vpop.f32.mrf.mxu0
      %v3185 = vadd.f32 %v3022, %v3184
      %v3186 = vpop.f32.mrf.mxu0
      %3187 = vmatprep.mubr.f32.mxu0 0.0
      %v3188 = vand.u32 %v2091, 4294901760
      %3189 = vmatmul.mubr.f32.gmra.mxu0 %v3188
      %v3190 = vpop.f32.mrf.mxu0
      %v3191 = vadd.f32 %v3028, %v3190
      %v3192 = vpop.f32.mrf.mxu0
      %3193 = vmatprep.mubr.f32.mxu0 0.0
      %v3194 = vand.u32 %v2094, 4294901760
      %3195 = vmatmul.mubr.f32.gmra.mxu0 %v3194
      %v3196 = vpop.f32.mrf.mxu0
      %v3197 = vadd.f32 %v3034, %v3196
      %v3198 = vpop.f32.mrf.mxu0
      %3199 = vdwg.mxu0
      %v3200 = vld [vmem:[%s10] sm:$0x1]
      %v3202 = vlaneseq
      %v3203 = vshrl.u32 %v3202, 7
      %v3204 = vsub.s32 0, %v3203
      %v3205 = vrot.slane %v3200, %v3204
      %v3207 = vadd.f32 %v3107, %v3205
      %v3208 = vadd.f32 %v3113, %v3205
      %v3209 = vadd.f32 %v3119, %v3205
      %v3210 = vadd.f32 %v3125, %v3205
      %v3211 = vadd.f32 %v3131, %v3205
      %v3212 = vadd.f32 %v3137, %v3205
      %v3213 = vadd.f32 %v3143, %v3205
      %v3214 = vadd.f32 %v3149, %v3205
      %v3215 = vadd.f32 %v3155, %v3205
      %v3216 = vadd.f32 %v3161, %v3205
      %v3217 = vadd.f32 %v3167, %v3205
      %v3218 = vadd.f32 %v3173, %v3205
      %v3219 = vadd.f32 %v3179, %v3205
      %v3220 = vadd.f32 %v3185, %v3205
      %v3221 = vadd.f32 %v3191, %v3205
      %v3222 = vadd.f32 %v3197, %v3205
      %v3223 = vmax.f32 %v3207, 0.0
      %v3224 = vmax.f32 %v3208, 0.0
      %v3225 = vmax.f32 %v3209, 0.0
      %v3226 = vmax.f32 %v3210, 0.0
      %v3227 = vmax.f32 %v3211, 0.0
      %v3228 = vmax.f32 %v3212, 0.0
      %v3229 = vmax.f32 %v3213, 0.0
      %v3230 = vmax.f32 %v3214, 0.0
      %v3231 = vmax.f32 %v3215, 0.0
      %v3232 = vmax.f32 %v3216, 0.0
      %v3233 = vmax.f32 %v3217, 0.0
      %v3234 = vmax.f32 %v3218, 0.0
      %v3235 = vmax.f32 %v3219, 0.0
      %v3236 = vmax.f32 %v3220, 0.0
      %v3237 = vmax.f32 %v3221, 0.0
      %v3238 = vmax.f32 %v3222, 0.0
      %v3239 = vld [vmem:[%s11] sm:$0xff]
      %v3240 = vld [vmem:[%s11 + $0x8] sm:$0xff]
      %v3241 = vld [vmem:[%s11 + $0x10] sm:$0xff]
      %v3242 = vld [vmem:[%s11 + $0x18] sm:$0xff]
      %v3243 = vld [vmem:[%s11 + $0x20] sm:$0xff]
      %v3244 = vld [vmem:[%s11 + $0x28] sm:$0xff]
      %v3245 = vld [vmem:[%s11 + $0x30] sm:$0xff]
      %v3246 = vld [vmem:[%s11 + $0x38] sm:$0xff]
      %v3247 = vld [vmem:[%s11 + $0x40] sm:$0xff]
      %v3248 = vld [vmem:[%s11 + $0x48] sm:$0xff]
      %v3249 = vld [vmem:[%s11 + $0x50] sm:$0xff]
      %v3250 = vld [vmem:[%s11 + $0x58] sm:$0xff]
      %v3251 = vld [vmem:[%s11 + $0x60] sm:$0xff]
      %v3252 = vld [vmem:[%s11 + $0x68] sm:$0xff]
      %v3253 = vld [vmem:[%s11 + $0x70] sm:$0xff]
      %v3254 = vld [vmem:[%s11 + $0x78] sm:$0xff]
      %v3255 = vld [vmem:[%s12] sm:$0x1]
      %v3257 = vlaneseq
      %v3258 = vshrl.u32 %v3257, 7
      %v3259 = vsub.s32 0, %v3258
      %v3260 = vrot.slane %v3255, %v3259
      %3262 = vmatprep.subr.mxu0 0.0
      %3263 = vmatpush1.msra.mxu0 %v3254
      %3264 = vmatprep.subr.mxu0 0.0
      %3265 = vmatpush1.msra.mxu0 %v3253
      %3266 = vmatprep.subr.mxu0 0.0
      %3267 = vmatpush1.msra.mxu0 %v3252
      %3268 = vmatprep.subr.mxu0 0.0
      %3269 = vmatpush1.msra.mxu0 %v3251
      %3270 = vmatprep.subr.mxu0 0.0
      %3271 = vmatpush1.msra.mxu0 %v3250
      %3272 = vmatprep.subr.mxu0 0.0
      %3273 = vmatpush1.msra.mxu0 %v3249
      %3274 = vmatprep.subr.mxu0 0.0
      %3275 = vmatpush1.msra.mxu0 %v3248
      %3276 = vmatprep.subr.mxu0 0.0
      %3277 = vmatpush1.msra.mxu0 %v3247
      %3278 = vmatprep.subr.mxu0 0.0
      %3279 = vmatpush1.msra.mxu0 %v3246
      %3280 = vmatprep.subr.mxu0 0.0
      %3281 = vmatpush1.msra.mxu0 %v3245
      %3282 = vmatprep.subr.mxu0 0.0
      %3283 = vmatpush1.msra.mxu0 %v3244
      %3284 = vmatprep.subr.mxu0 0.0
      %3285 = vmatpush1.msra.mxu0 %v3243
      %3286 = vmatprep.subr.mxu0 0.0
      %3287 = vmatpush1.msra.mxu0 %v3242
      %3288 = vmatprep.subr.mxu0 0.0
      %3289 = vmatpush1.msra.mxu0 %v3241
      %3290 = vmatprep.subr.mxu0 0.0
      %3291 = vmatpush1.msra.mxu0 %v3240
      %3292 = vmatprep.subr.mxu0 0.0
      %3293 = vmatpush1.msra.mxu0 %v3239
      %3294 = vmatprep.subr.mxu0 0.0
      %3295 = vmatpush2.msra.mxu0 0.0
      %3296 = vmatprep.subr.mxu0 0.0
      %3297 = vmatpush2.msra.mxu0 0.0
      %3298 = vmatprep.subr.mxu0 0.0
      %3299 = vmatpush2.msra.mxu0 0.0
      %3300 = vmatprep.subr.mxu0 0.0
      %3301 = vmatpush2.msra.mxu0 0.0
      %3302 = vmatprep.subr.mxu0 0.0
      %3303 = vmatpush2.msra.mxu0 0.0
      %3304 = vmatprep.subr.mxu0 0.0
      %3305 = vmatpush2.msra.mxu0 0.0
      %3306 = vmatprep.subr.mxu0 0.0
      %3307 = vmatpush2.msra.mxu0 0.0
      %3308 = vmatprep.subr.mxu0 0.0
      %3309 = vmatpush2.msra.mxu0 0.0
      %3310 = vmatprep.subr.mxu0 0.0
      %3311 = vmatpush2.msra.mxu0 0.0
      %3312 = vmatprep.subr.mxu0 0.0
      %3313 = vmatpush2.msra.mxu0 0.0
      %3314 = vmatprep.subr.mxu0 0.0
      %3315 = vmatpush2.msra.mxu0 0.0
      %3316 = vmatprep.subr.mxu0 0.0
      %3317 = vmatpush2.msra.mxu0 0.0
      %3318 = vmatprep.subr.mxu0 0.0
      %3319 = vmatpush2.msra.mxu0 0.0
      %3320 = vmatprep.subr.mxu0 0.0
      %3321 = vmatpush2.msra.mxu0 0.0
      %3322 = vmatprep.subr.mxu0 0.0
      %3323 = vmatpush2.msra.mxu0 0.0
      %3324 = vmatprep.subr.mxu0 0.0
      %3325 = vmatpush2.msra.mxu0 0.0
      %3326 = vmatprep.mubr.f32.mxu0 0.0
      %3327 = vmatmul.mubr.f32.gmra.mxu0 %v3223
      %v3328 = vpop.f32.mrf.mxu0
      %v3329 = vadd.f32 %v3260, %v3328
      %v3330 = vpop.f32.mrf.mxu0
      %3331 = vmatprep.mubr.f32.mxu0 0.0
      %3332 = vmatmul.mubr.f32.gmra.mxu0 %v3224
      %v3333 = vpop.f32.mrf.mxu0
      %v3334 = vadd.f32 %v3260, %v3333
      %v3335 = vpop.f32.mrf.mxu0
      %3336 = vmatprep.mubr.f32.mxu0 0.0
      %3337 = vmatmul.mubr.f32.gmra.mxu0 %v3225
      %v3338 = vpop.f32.mrf.mxu0
      %v3339 = vadd.f32 %v3260, %v3338
      %v3340 = vpop.f32.mrf.mxu0
      %3341 = vmatprep.mubr.f32.mxu0 0.0
      %3342 = vmatmul.mubr.f32.gmra.mxu0 %v3226
      %v3343 = vpop.f32.mrf.mxu0
      %v3344 = vadd.f32 %v3260, %v3343
      %v3345 = vpop.f32.mrf.mxu0
      %3346 = vmatprep.mubr.f32.mxu0 0.0
      %3347 = vmatmul.mubr.f32.gmra.mxu0 %v3227
      %v3348 = vpop.f32.mrf.mxu0
      %v3349 = vadd.f32 %v3260, %v3348
      %v3350 = vpop.f32.mrf.mxu0
      %3351 = vmatprep.mubr.f32.mxu0 0.0
      %3352 = vmatmul.mubr.f32.gmra.mxu0 %v3228
      %v3353 = vpop.f32.mrf.mxu0
      %v3354 = vadd.f32 %v3260, %v3353
      %v3355 = vpop.f32.mrf.mxu0
      %3356 = vmatprep.mubr.f32.mxu0 0.0
      %3357 = vmatmul.mubr.f32.gmra.mxu0 %v3229
      %v3358 = vpop.f32.mrf.mxu0
      %v3359 = vadd.f32 %v3260, %v3358
      %v3360 = vpop.f32.mrf.mxu0
      %3361 = vmatprep.mubr.f32.mxu0 0.0
      %3362 = vmatmul.mubr.f32.gmra.mxu0 %v3230
      %v3363 = vpop.f32.mrf.mxu0
      %v3364 = vadd.f32 %v3260, %v3363
      %v3365 = vpop.f32.mrf.mxu0
      %3366 = vmatprep.mubr.f32.mxu0 0.0
      %3367 = vmatmul.mubr.f32.gmra.mxu0 %v3231
      %v3368 = vpop.f32.mrf.mxu0
      %v3369 = vadd.f32 %v3260, %v3368
      %v3370 = vpop.f32.mrf.mxu0
      %3371 = vmatprep.mubr.f32.mxu0 0.0
      %3372 = vmatmul.mubr.f32.gmra.mxu0 %v3232
      %v3373 = vpop.f32.mrf.mxu0
      %v3374 = vadd.f32 %v3260, %v3373
      %v3375 = vpop.f32.mrf.mxu0
      %3376 = vmatprep.mubr.f32.mxu0 0.0
      %3377 = vmatmul.mubr.f32.gmra.mxu0 %v3233
      %v3378 = vpop.f32.mrf.mxu0
      %v3379 = vadd.f32 %v3260, %v3378
      %v3380 = vpop.f32.mrf.mxu0
      %3381 = vmatprep.mubr.f32.mxu0 0.0
      %3382 = vmatmul.mubr.f32.gmra.mxu0 %v3234
      %v3383 = vpop.f32.mrf.mxu0
      %v3384 = vadd.f32 %v3260, %v3383
      %v3385 = vpop.f32.mrf.mxu0
      %3386 = vmatprep.mubr.f32.mxu0 0.0
      %3387 = vmatmul.mubr.f32.gmra.mxu0 %v3235
      %v3388 = vpop.f32.mrf.mxu0
      %v3389 = vadd.f32 %v3260, %v3388
      %v3390 = vpop.f32.mrf.mxu0
      %3391 = vmatprep.mubr.f32.mxu0 0.0
      %3392 = vmatmul.mubr.f32.gmra.mxu0 %v3236
      %v3393 = vpop.f32.mrf.mxu0
      %v3394 = vadd.f32 %v3260, %v3393
      %v3395 = vpop.f32.mrf.mxu0
      %3396 = vmatprep.mubr.f32.mxu0 0.0
      %3397 = vmatmul.mubr.f32.gmra.mxu0 %v3237
      %v3398 = vpop.f32.mrf.mxu0
      %v3399 = vadd.f32 %v3260, %v3398
      %v3400 = vpop.f32.mrf.mxu0
      %3401 = vmatprep.mubr.f32.mxu0 0.0
      %3402 = vmatmul.mubr.f32.gmra.mxu0 %v3238
      %v3403 = vpop.f32.mrf.mxu0
      %v3404 = vadd.f32 %v3260, %v3403
      %v3405 = vpop.f32.mrf.mxu0
      %3406 = vdwg.mxu0
      %v3407 = vmax.f32 %v3329, 0.0
      %v3408 = vmax.f32 %v3334, 0.0
      %v3409 = vmax.f32 %v3339, 0.0
      %v3410 = vmax.f32 %v3344, 0.0
      %v3411 = vmax.f32 %v3349, 0.0
      %v3412 = vmax.f32 %v3354, 0.0
      %v3413 = vmax.f32 %v3359, 0.0
      %v3414 = vmax.f32 %v3364, 0.0
      %v3415 = vmax.f32 %v3369, 0.0
      %v3416 = vmax.f32 %v3374, 0.0
      %v3417 = vmax.f32 %v3379, 0.0
      %v3418 = vmax.f32 %v3384, 0.0
      %v3419 = vmax.f32 %v3389, 0.0
      %v3420 = vmax.f32 %v3394, 0.0
      %v3421 = vmax.f32 %v3399, 0.0
      %v3422 = vmax.f32 %v3404, 0.0
      %v3423 = vand.u32 2147483647, %v3329
      %v3424 = vand.u32 2147483647, %v3334
      %v3425 = vand.u32 2147483647, %v3339
      %v3426 = vand.u32 2147483647, %v3344
      %v3427 = vand.u32 2147483647, %v3349
      %v3428 = vand.u32 2147483647, %v3354
      %v3429 = vand.u32 2147483647, %v3359
      %v3430 = vand.u32 2147483647, %v3364
      %v3431 = vand.u32 2147483647, %v3369
      %v3432 = vand.u32 2147483647, %v3374
      %v3433 = vand.u32 2147483647, %v3379
      %v3434 = vand.u32 2147483647, %v3384
      %v3435 = vand.u32 2147483647, %v3389
      %v3436 = vand.u32 2147483647, %v3394
      %v3437 = vand.u32 2147483647, %v3399
      %v3438 = vand.u32 2147483647, %v3404
      %v3439 = vsub.f32 0.0, %v3423
      %v3440 = vsub.f32 0.0, %v3424
      %v3441 = vsub.f32 0.0, %v3425
      %v3442 = vsub.f32 0.0, %v3426
      %v3443 = vsub.f32 0.0, %v3427
      %v3444 = vsub.f32 0.0, %v3428
      %v3445 = vsub.f32 0.0, %v3429
      %v3446 = vsub.f32 0.0, %v3430
      %v3447 = vsub.f32 0.0, %v3431
      %v3448 = vsub.f32 0.0, %v3432
      %v3449 = vsub.f32 0.0, %v3433
      %v3450 = vsub.f32 0.0, %v3434
      %v3451 = vsub.f32 0.0, %v3435
      %v3452 = vsub.f32 0.0, %v3436
      %v3453 = vsub.f32 0.0, %v3437
      %v3454 = vsub.f32 0.0, %v3438
      %v3455 = vmul.f32 %v3439, 1.442695
      %v3456 = vpow.pop %v3455
      %v3457 = vmul.f32 %v3440, 1.442695
      %v3458 = vpow.pop %v3457
      %v3459 = vmul.f32 %v3441, 1.442695
      %v3460 = vpow.pop %v3459
      %v3461 = vmul.f32 %v3442, 1.442695
      %v3462 = vpow.pop %v3461
      %v3463 = vmul.f32 %v3443, 1.442695
      %v3464 = vpow.pop %v3463
      %v3465 = vmul.f32 %v3444, 1.442695
      %v3466 = vpow.pop %v3465
      %v3467 = vmul.f32 %v3445, 1.442695
      %v3468 = vpow.pop %v3467
      %v3469 = vmul.f32 %v3446, 1.442695
      %v3470 = vpow.pop %v3469
      %v3471 = vmul.f32 %v3447, 1.442695
      %v3472 = vpow.pop %v3471
      %v3473 = vmul.f32 %v3448, 1.442695
      %v3474 = vpow.pop %v3473
      %v3475 = vmul.f32 %v3449, 1.442695
      %v3476 = vpow.pop %v3475
      %v3477 = vmul.f32 %v3450, 1.442695
      %v3478 = vpow.pop %v3477
      %v3479 = vmul.f32 %v3451, 1.442695
      %v3480 = vpow.pop %v3479
      %v3481 = vmul.f32 %v3452, 1.442695
      %v3482 = vpow.pop %v3481
      %v3483 = vmul.f32 %v3453, 1.442695
      %v3484 = vpow.pop %v3483
      %v3485 = vmul.f32 %v3454, 1.442695
      %v3486 = vpow.pop %v3485
      %v3487 = vadd.f32 %v3456, 1.0
      %v3488 = vlog2.pop %v3487
      %v3489 = vmul.f32 %v3488, 0.6931472
      %v3490 = vmul.f32 -0.5, %v3456
      %v3491 = vadd.f32 %v3490, 1.0
      %v3492 = vmul.f32 %v3491, %v3456
      %v3493 = vand.u32 2147483647, %v3456
      %vm3494 = vcmp.lt.f32.partialorder %v3493, 0.0004427343
      %v3495 = vsel %vm3494, %v3492, %v3489
      %v3496 = vadd.f32 %v3458, 1.0
      %v3497 = vlog2.pop %v3496
      %v3498 = vmul.f32 %v3497, 0.6931472
      %v3499 = vmul.f32 -0.5, %v3458
      %v3500 = vadd.f32 %v3499, 1.0
      %v3501 = vmul.f32 %v3500, %v3458
      %v3502 = vand.u32 2147483647, %v3458
      %vm3503 = vcmp.lt.f32.partialorder %v3502, 0.0004427343
      %v3504 = vsel %vm3503, %v3501, %v3498
      %v3505 = vadd.f32 %v3460, 1.0
      %v3506 = vlog2.pop %v3505
      %v3507 = vmul.f32 %v3506, 0.6931472
      %v3508 = vmul.f32 -0.5, %v3460
      %v3509 = vadd.f32 %v3508, 1.0
      %v3510 = vmul.f32 %v3509, %v3460
      %v3511 = vand.u32 2147483647, %v3460
      %vm3512 = vcmp.lt.f32.partialorder %v3511, 0.0004427343
      %v3513 = vsel %vm3512, %v3510, %v3507
      %v3514 = vadd.f32 %v3462, 1.0
      %v3515 = vlog2.pop %v3514
      %v3516 = vmul.f32 %v3515, 0.6931472
      %v3517 = vmul.f32 -0.5, %v3462
      %v3518 = vadd.f32 %v3517, 1.0
      %v3519 = vmul.f32 %v3518, %v3462
      %v3520 = vand.u32 2147483647, %v3462
      %vm3521 = vcmp.lt.f32.partialorder %v3520, 0.0004427343
      %v3522 = vsel %vm3521, %v3519, %v3516
      %v3523 = vadd.f32 %v3464, 1.0
      %v3524 = vlog2.pop %v3523
      %v3525 = vmul.f32 %v3524, 0.6931472
      %v3526 = vmul.f32 -0.5, %v3464
      %v3527 = vadd.f32 %v3526, 1.0
      %v3528 = vmul.f32 %v3527, %v3464
      %v3529 = vand.u32 2147483647, %v3464
      %vm3530 = vcmp.lt.f32.partialorder %v3529, 0.0004427343
      %v3531 = vsel %vm3530, %v3528, %v3525
      %v3532 = vadd.f32 %v3466, 1.0
      %v3533 = vlog2.pop %v3532
      %v3534 = vmul.f32 %v3533, 0.6931472
      %v3535 = vmul.f32 -0.5, %v3466
      %v3536 = vadd.f32 %v3535, 1.0
      %v3537 = vmul.f32 %v3536, %v3466
      %v3538 = vand.u32 2147483647, %v3466
      %vm3539 = vcmp.lt.f32.partialorder %v3538, 0.0004427343
      %v3540 = vsel %vm3539, %v3537, %v3534
      %v3541 = vadd.f32 %v3468, 1.0
      %v3542 = vlog2.pop %v3541
      %v3543 = vmul.f32 %v3542, 0.6931472
      %v3544 = vmul.f32 -0.5, %v3468
      %v3545 = vadd.f32 %v3544, 1.0
      %v3546 = vmul.f32 %v3545, %v3468
      %v3547 = vand.u32 2147483647, %v3468
      %vm3548 = vcmp.lt.f32.partialorder %v3547, 0.0004427343
      %v3549 = vsel %vm3548, %v3546, %v3543
      %v3550 = vadd.f32 %v3470, 1.0
      %v3551 = vlog2.pop %v3550
      %v3552 = vmul.f32 %v3551, 0.6931472
      %v3553 = vmul.f32 -0.5, %v3470
      %v3554 = vadd.f32 %v3553, 1.0
      %v3555 = vmul.f32 %v3554, %v3470
      %v3556 = vand.u32 2147483647, %v3470
      %vm3557 = vcmp.lt.f32.partialorder %v3556, 0.0004427343
      %v3558 = vsel %vm3557, %v3555, %v3552
      %v3559 = vadd.f32 %v3472, 1.0
      %v3560 = vlog2.pop %v3559
      %v3561 = vmul.f32 %v3560, 0.6931472
      %v3562 = vmul.f32 -0.5, %v3472
      %v3563 = vadd.f32 %v3562, 1.0
      %v3564 = vmul.f32 %v3563, %v3472
      %v3565 = vand.u32 2147483647, %v3472
      %vm3566 = vcmp.lt.f32.partialorder %v3565, 0.0004427343
      %v3567 = vsel %vm3566, %v3564, %v3561
      %v3568 = vadd.f32 %v3474, 1.0
      %v3569 = vlog2.pop %v3568
      %v3570 = vmul.f32 %v3569, 0.6931472
      %v3571 = vmul.f32 -0.5, %v3474
      %v3572 = vadd.f32 %v3571, 1.0
      %v3573 = vmul.f32 %v3572, %v3474
      %v3574 = vand.u32 2147483647, %v3474
      %vm3575 = vcmp.lt.f32.partialorder %v3574, 0.0004427343
      %v3576 = vsel %vm3575, %v3573, %v3570
      %v3577 = vadd.f32 %v3476, 1.0
      %v3578 = vlog2.pop %v3577
      %v3579 = vmul.f32 %v3578, 0.6931472
      %v3580 = vmul.f32 -0.5, %v3476
      %v3581 = vadd.f32 %v3580, 1.0
      %v3582 = vmul.f32 %v3581, %v3476
      %v3583 = vand.u32 2147483647, %v3476
      %vm3584 = vcmp.lt.f32.partialorder %v3583, 0.0004427343
      %v3585 = vsel %vm3584, %v3582, %v3579
      %v3586 = vadd.f32 %v3478, 1.0
      %v3587 = vlog2.pop %v3586
      %v3588 = vmul.f32 %v3587, 0.6931472
      %v3589 = vmul.f32 -0.5, %v3478
      %v3590 = vadd.f32 %v3589, 1.0
      %v3591 = vmul.f32 %v3590, %v3478
      %v3592 = vand.u32 2147483647, %v3478
      %vm3593 = vcmp.lt.f32.partialorder %v3592, 0.0004427343
      %v3594 = vsel %vm3593, %v3591, %v3588
      %v3595 = vadd.f32 %v3480, 1.0
      %v3596 = vlog2.pop %v3595
      %v3597 = vmul.f32 %v3596, 0.6931472
      %v3598 = vmul.f32 -0.5, %v3480
      %v3599 = vadd.f32 %v3598, 1.0
      %v3600 = vmul.f32 %v3599, %v3480
      %v3601 = vand.u32 2147483647, %v3480
      %vm3602 = vcmp.lt.f32.partialorder %v3601, 0.0004427343
      %v3603 = vsel %vm3602, %v3600, %v3597
      %v3604 = vadd.f32 %v3482, 1.0
      %v3605 = vlog2.pop %v3604
      %v3606 = vmul.f32 %v3605, 0.6931472
      %v3607 = vmul.f32 -0.5, %v3482
      %v3608 = vadd.f32 %v3607, 1.0
      %v3609 = vmul.f32 %v3608, %v3482
      %v3610 = vand.u32 2147483647, %v3482
      %vm3611 = vcmp.lt.f32.partialorder %v3610, 0.0004427343
      %v3612 = vsel %vm3611, %v3609, %v3606
      %v3613 = vadd.f32 %v3484, 1.0
      %v3614 = vlog2.pop %v3613
      %v3615 = vmul.f32 %v3614, 0.6931472
      %v3616 = vmul.f32 -0.5, %v3484
      %v3617 = vadd.f32 %v3616, 1.0
      %v3618 = vmul.f32 %v3617, %v3484
      %v3619 = vand.u32 2147483647, %v3484
      %vm3620 = vcmp.lt.f32.partialorder %v3619, 0.0004427343
      %v3621 = vsel %vm3620, %v3618, %v3615
      %v3622 = vadd.f32 %v3486, 1.0
      %v3623 = vlog2.pop %v3622
      %v3624 = vmul.f32 %v3623, 0.6931472
      %v3625 = vmul.f32 -0.5, %v3486
      %v3626 = vadd.f32 %v3625, 1.0
      %v3627 = vmul.f32 %v3626, %v3486
      %v3628 = vand.u32 2147483647, %v3486
      %vm3629 = vcmp.lt.f32.partialorder %v3628, 0.0004427343
      %v3630 = vsel %vm3629, %v3627, %v3624
      %v3631 = vadd.f32 %v3407, %v3495
      %v3632 = vadd.f32 %v3408, %v3504
      %v3633 = vadd.f32 %v3409, %v3513
      %v3634 = vadd.f32 %v3410, %v3522
      %v3635 = vadd.f32 %v3411, %v3531
      %v3636 = vadd.f32 %v3412, %v3540
      %v3637 = vadd.f32 %v3413, %v3549
      %v3638 = vadd.f32 %v3414, %v3558
      %v3639 = vadd.f32 %v3415, %v3567
      %v3640 = vadd.f32 %v3416, %v3576
      %v3641 = vadd.f32 %v3417, %v3585
      %v3642 = vadd.f32 %v3418, %v3594
      %v3643 = vadd.f32 %v3419, %v3603
      %v3644 = vadd.f32 %v3420, %v3612
      %v3645 = vadd.f32 %v3421, %v3621
      %v3646 = vadd.f32 %v3422, %v3630
      %v3647 = vadd.f32 %v3631, 1e-06
      %v3648 = vadd.f32 %v3632, 1e-06
      %v3649 = vadd.f32 %v3633, 1e-06
      %v3650 = vadd.f32 %v3634, 1e-06
      %v3651 = vadd.f32 %v3635, 1e-06
      %v3652 = vadd.f32 %v3636, 1e-06
      %v3653 = vadd.f32 %v3637, 1e-06
      %v3654 = vadd.f32 %v3638, 1e-06
      %v3655 = vadd.f32 %v3639, 1e-06
      %v3656 = vadd.f32 %v3640, 1e-06
      %v3657 = vadd.f32 %v3641, 1e-06
      %v3658 = vadd.f32 %v3642, 1e-06
      %v3659 = vadd.f32 %v3643, 1e-06
      %v3660 = vadd.f32 %v3644, 1e-06
      %v3661 = vadd.f32 %v3645, 1e-06
      %v3662 = vadd.f32 %v3646, 1e-06
      %v3663 = vlaneseq
      %v3664 = vand.u32 %v3663, 127
      %vm3665 = vcmp.lt.s32.totalorder %v3664, 2
      %v3666 = vsel %vm3665, %v3329, %v3647
      %v3667 = vsel %vm3665, %v3334, %v3648
      %v3668 = vsel %vm3665, %v3339, %v3649
      %v3669 = vsel %vm3665, %v3344, %v3650
      %v3670 = vsel %vm3665, %v3349, %v3651
      %v3671 = vsel %vm3665, %v3354, %v3652
      %v3672 = vsel %vm3665, %v3359, %v3653
      %v3673 = vsel %vm3665, %v3364, %v3654
      %v3674 = vsel %vm3665, %v3369, %v3655
      %v3675 = vsel %vm3665, %v3374, %v3656
      %v3676 = vsel %vm3665, %v3379, %v3657
      %v3677 = vsel %vm3665, %v3384, %v3658
      %v3678 = vsel %vm3665, %v3389, %v3659
      %v3679 = vsel %vm3665, %v3394, %v3660
      %v3680 = vsel %vm3665, %v3399, %v3661
      %v3681 = vsel %vm3665, %v3404, %v3662
      %3682 = vst.msk [vmem:[%s464] sm:$0xff] %vm510, %v3666
      %3683 = vst.msk [vmem:[%s464 + $0x8] sm:$0xff] %vm510, %v3667
      %3684 = vst.msk [vmem:[%s464 + $0x10] sm:$0xff] %vm510, %v3668
      %3685 = vst.msk [vmem:[%s464 + $0x18] sm:$0xff] %vm510, %v3669
      %3686 = vst.msk [vmem:[%s464 + $0x20] sm:$0xff] %vm510, %v3670
      %3687 = vst.msk [vmem:[%s464 + $0x28] sm:$0xff] %vm510, %v3671
      %3688 = vst.msk [vmem:[%s464 + $0x30] sm:$0xff] %vm510, %v3672
      %3689 = vst.msk [vmem:[%s464 + $0x38] sm:$0xff] %vm510, %v3673
      %3690 = vst.msk [vmem:[%s464 + $0x40] sm:$0xff] %vm510, %v3674
      %3691 = vst.msk [vmem:[%s464 + $0x48] sm:$0xff] %vm510, %v3675
      %3692 = vst.msk [vmem:[%s464 + $0x50] sm:$0xff] %vm510, %v3676
      %3693 = vst.msk [vmem:[%s464 + $0x58] sm:$0xff] %vm510, %v3677
      %3694 = vst.msk [vmem:[%s464 + $0x60] sm:$0xff] %vm510, %v3678
      %3695 = vst.msk [vmem:[%s464 + $0x68] sm:$0xff] %vm510, %v3679
      %3696 = vst.msk [vmem:[%s464 + $0x70] sm:$0xff] %vm510, %v3680
      %3697 = vst.msk [vmem:[%s464 + $0x78] sm:$0xff] %vm510, %v3681
      %s3698 = smul.u32 16, %s24
      %p3699 = scmp.lt.s32.totalorder %s3698, 31
      %s3700 = scalar_select %p3699, %s3698, 31
      %s3701 = smul.addr %s3700, 8
      %s3702 = scalar_lea.vmem %s13, %s3701
      // Predicated region
      $region73: #{tpu_custom_call.1} parent=71 // pred_check
        %p3703 = pneg %p325
      $region74: #{tpu_custom_call.1} parent=71 // pred_check_branch
        %3705 = sbr.rel (%p3703) target = $region76
      $region75: #{tpu_custom_call.1} parent=71 // pred_region
        %s3706 = smul.u32 16, %s24
      $region76: #{tpu_custom_call.1} parent=71 // pred_fallthru
        _
    $region72: #{tpu_custom_call.1} parent=5 // pred_fallthru
      _
    %p3707 = scmp.le.s32.totalorder 2, %s19
    // Predicated region
    $region77: #{tpu_custom_call.1} parent=5 // pred_check
      %p3708 = pneg %p3707
    $region78: #{tpu_custom_call.1} parent=5 // pred_check_branch
      %3710 = sbr.rel (%p3708) target = $region80
    $region79: #{tpu_custom_call.1} parent=5 // pred_region
      %s3711 = ssub.s32 %s19, 2
      // Predicated region
      $region81: #{tpu_custom_call.1} parent=79 // pred_check
        %p3712 = pneg %p331
      $region82: #{tpu_custom_call.1} parent=79 // pred_check_branch
        %3714 = sbr.rel (%p3712) target = $region84
      $region83: #{tpu_custom_call.1} parent=79 // pred_region
        %s3715 = smul.u32 16, %s25
        %p3716 = scmp.lt.s32.totalorder %s3715, 31
        %s3717 = scalar_select %p3716, %s3715, 31
        %s3718 = smul.addr %s3717, 8
        %s3719 = scalar_lea.vmem %s13, %s3718
      $region84: #{tpu_custom_call.1} parent=79 // pred_fallthru
        _
    $region80: #{tpu_custom_call.1} parent=5 // pred_fallthru
      _
  $region6: #{tpu_custom_call.1} parent=0 // loop_footer
    %s23 = sadd.s32 1, %s19
  $region7: #{tpu_custom_call.1} parent=0 // loop_footer_branch
    %18 = sbr.rel target = $region3
  $region8: #{tpu_custom_call.1} parent=0 // loop_exit
    _

</llo_original>
